<compile_context>
chip_gen: v5e
topology: v5e:2x2
jax: 0.10.0
libtpu: 0.0.40
codegen_flags: <defaults>
</compile_context>

<pallas_src>
import functools
import math

import jax
import jax.numpy as jnp
from jax import lax
from jax.experimental import pallas as pl
from jax.experimental.pallas import tpu as pltpu


def _rup(v, m):
    return -(-v // m) * m


_VMEM_SPEC = pl.BlockSpec(memory_space=pltpu.MemorySpace.VMEM)


# ----------------------------- Pallas kernels -----------------------------

def _make_conv_pool_kernel(slice_w):
    """conv (one matmul covering all 4 pool phases and all images) + pool + bias + ReLU."""

    def kernel(p_ref, w_ref, b_ref, o_ref):
        # (Cp, Kp) @ (Kp, 4*N*Pp) -> (Cp, 4*N*Pp), f32 accumulation on the MXU.
        y = jnp.dot(w_ref[...], p_ref[...], preferred_element_type=jnp.float32)
        # 2x2 max-pool == max over the four lane-aligned phase slices (width N*Pp,
        # a multiple of 128 -> pure vreg selection, no relayout, no masked ops).
        m = jnp.maximum(jnp.maximum(y[:, 0 * slice_w:1 * slice_w], y[:, 1 * slice_w:2 * slice_w]),
                        jnp.maximum(y[:, 2 * slice_w:3 * slice_w], y[:, 3 * slice_w:4 * slice_w]))
        # bias + ReLU hoisted after the pool (valid: bias is constant per channel).
        o_ref[...] = jnp.maximum(m + b_ref[...], 0.0).astype(o_ref.dtype)

    return kernel


def _make_conv_mlp_kernel(n_img, p_pad, c2):
    """conv2 + pool + bias + ReLU fused with FC3 -> ReLU -> FC4 -> ReLU -> FC5.

    The pooled (c2, p_pad) per-image tile stays in VMEM/vregs; FC3 is accumulated
    channel-wise so no in-kernel flatten / cross-layout reshape is ever needed.
    """
    W = n_img * p_pad

    def kernel(p_ref, w2_ref, b2_ref, w3_ref, b3_ref, w4_ref, b4_ref,
               w5_ref, b5_ref, o_ref):
        # conv2 over all pool phases and images in one MXU matmul.
        y = jnp.dot(w2_ref[...], p_ref[...], preferred_element_type=jnp.float32)
        m = jnp.maximum(jnp.maximum(y[:, 0 * W:1 * W], y[:, 1 * W:2 * W]),
                        jnp.maximum(y[:, 2 * W:3 * W], y[:, 3 * W:4 * W]))
        z = jnp.maximum(m + b2_ref[...], 0.0).astype(jnp.bfloat16)   # (C2p, n_img*p_pad)

        # FC3 without flatten: h_n = b3 + sum_c z[c, n-th 128-lane slice] @ w3_cd[c].
        # Padded pool lanes (positions >= 25) hold relu(b2[c]) != 0, but the
        # corresponding rows of w3_cd are zero, so they cancel exactly.
        h = [b3_ref[...] for _ in range(n_img)]
        for c in range(c2):
            w3c = w3_ref[c]                                          # (P2p, D3) bf16
            for n in range(n_img):
                h[n] = h[n] + jnp.dot(z[c:c + 1, n * p_pad:(n + 1) * p_pad], w3c,
                                      preferred_element_type=jnp.float32)

        rows = []
        for n in range(n_img):
            a = jnp.maximum(h[n], 0.0).astype(jnp.bfloat16)          # (1, D3)
            a = jnp.dot(a, w4_ref[...], preferred_element_type=jnp.float32) + b4_ref[...]
            a = jnp.maximum(a, 0.0).astype(jnp.bfloat16)             # (1, D4)
            rows.append(jnp.dot(a, w5_ref[...], preferred_element_type=jnp.float32)
                        + b5_ref[...])                               # (1, D5) f32
        o_ref[...] = jnp.concatenate(rows, axis=0)                   # (n_img, D5)

    return kernel


# ----------------------------- pallas_call wrappers -----------------------------

def conv_relu_pool(pT, w_cm, b_col):
    """pT: (Kp, 4*N*Pp) bf16 patches (lane order [phase, image, pos]),
    w_cm: (Cp, Kp) bf16, b_col: (Cp, 1) f32.  Returns (Cp, N*Pp) bf16 pooled maps."""
    Cp = w_cm.shape[0]
    slice_w = pT.shape[1] // 4
    return pl.pallas_call(
        _make_conv_pool_kernel(slice_w),
        out_shape=jax.ShapeDtypeStruct((Cp, slice_w), jnp.bfloat16),
        in_specs=[_VMEM_SPEC] * 3,
        out_specs=_VMEM_SPEC,
    )(pT, w_cm, b_col)


def conv2_mlp(p2, w2_cm, b2_col, w3_cd, b3_row, w4p, b4_row, w5p, b5_row,
              *, n_img, p_pad, c2):
    return pl.pallas_call(
        _make_conv_mlp_kernel(n_img, p_pad, c2),
        out_shape=jax.ShapeDtypeStruct((n_img, w5p.shape[1]), jnp.float32),
        in_specs=[_VMEM_SPEC] * 9,
        out_specs=_VMEM_SPEC,
    )(p2, w2_cm, b2_col, w3_cd, b3_row, w4p, b4_row, w5p, b5_row)


# ----------------------------- host-side glue (runs under the same jit) -----------------------------

def _im2col_pool_phases_fold(x_nchw, k):
    """(N, C, H, W) -> (Kp, 4*N*Pp) bf16 transposed im2col patches, batch folded into lanes.

    Lane index = phase*(N*Pp) + n*Pp + pos, with phase = 2*py+px, pos = hp*Wp+wp;
    row index = c*k*k + dy*k + dx (matches torch conv weight flatten order).
    Zero-padded to Kp = rup(C*k*k, 128), Pp = rup(Hp*Wp, 128).
    """
    N, C, H, W = x_nchw.shape
    Ho, Wo = H - k + 1, W - k + 1
    assert Ho % 2 == 0 and Wo % 2 == 0, "2x2 pool-phase trick needs even conv output dims"
    Hp, Wp = Ho // 2, Wo // 2
    K, P = C * k * k, Hp * Wp
    Kp, Pp = _rup(K, 128), _rup(P, 128)
    cols = [x_nchw[:, :, dy:dy + Ho, dx:dx + Wo] for dy in range(k) for dx in range(k)]
    p = jnp.stack(cols, axis=2).reshape(N, K, Ho, Wo)          # K order = (c, dy, dx)
    p = p.reshape(N, K, Hp, 2, Wp, 2)                          # (N, K, hp, py, wp, px)
    p = jnp.transpose(p, (1, 3, 5, 0, 2, 4)).reshape(K, 4, N, P)
    p = jnp.pad(p, ((0, Kp - K), (0, 0), (0, 0), (0, Pp - P)))
    return p.reshape(Kp, 4 * N * Pp).astype(jnp.bfloat16), Hp, Wp, Pp


def _split_pooled(y, n_img, c_real, hp, wp, p_pad):
    """(Cp, N*Pp) pooled output -> (N, c_real, hp, wp), dropping zero padding."""
    y = y[:c_real].reshape(c_real, n_img, p_pad)[:, :, :hp * wp]
    return jnp.transpose(y, (1, 0, 2)).reshape(n_img, c_real, hp, wp)


# ----------------------------- one-time weight preparation (hoisted out of jit) -----------------------------

def prepare_params(params):
    """Pad / re-lay-out / cast all weights ONCE, outside the jitted forward."""
    (w1, b1, w2, b2, w3, b3, w4, b4, w5, b5) = params
    C1, C_in, k, _ = w1.shape
    C2 = w2.shape[0]
    K1, K2 = C_in * k * k, C1 * k * k
    K1p, K2p = _rup(K1, 128), _rup(K2, 128)
    C1p, C2p = _rup(C1, 16), _rup(C2, 16)
    D3, D4, D5 = _rup(w3.shape[0], 128), _rup(w4.shape[0], 128), _rup(w5.shape[0], 128)
    P2 = w3.shape[1] // C2                                     # 25 spatial positions after pool2
    P2p = _rup(P2, 128)

    def pad_cm(w, cp, kp):
        wm = w.reshape(w.shape[0], -1)
        return jnp.pad(wm, ((0, cp - wm.shape[0]), (0, kp - wm.shape[1]))).astype(jnp.bfloat16)

    def pad_col(b, cp):
        return jnp.pad(b, (0, cp - b.shape[0])).reshape(-1, 1).astype(jnp.float32)

    def pad_row(b, dp):
        return jnp.pad(b, (0, dp - b.shape[0])).reshape(1, -1).astype(jnp.float32)

    w1_cm, b1_col = pad_cm(w1, C1p, K1p), pad_col(b1, C1p)
    w2_cm, b2_col = pad_cm(w2, C2p, K2p), pad_col(b2, C2p)
    # w3 re-laid-out to (C2p, P2p, D3) so FC3 is 16 channel-wise matmuls (no flatten).
    w3_cd = w3.reshape(w3.shape[0], C2, P2).transpose(1, 2, 0)             # (C2, P2, 120)
    w3_cd = jnp.pad(w3_cd, ((0, C2p - C2), (0, P2p - P2),
                            (0, D3 - w3.shape[0]))).astype(jnp.bfloat16)   # (16, 128, 128)
    b3_row = pad_row(b3, D3)
    w4p = jnp.pad(w4.T, ((0, D3 - w4.shape[1]), (0, D4 - w4.shape[0]))).astype(jnp.bfloat16)
    b4_row = pad_row(b4, D4)
    w5p = jnp.pad(w5.T, ((0, D4 - w5.shape[1]), (0, D5 - w5.shape[0]))).astype(jnp.bfloat16)
    b5_row = pad_row(b5, D5)
    return (w1_cm, b1_col, w2_cm, b2_col, w3_cd, b3_row, w4p, b4_row, w5p, b5_row)


# ----------------------------- forward -----------------------------

def conv2dnet_forward(x, prepped, *, c1, c2, k, n_classes):
    (w1_cm, b1_col, w2_cm, b2_col, w3_cd, b3_row, w4p, b4_row, w5p, b5_row) = prepped
    N = x.shape[0]

    # stage 1: conv1 -> ReLU -> maxpool(2,2)  (one grid-less kernel, batch folded into lanes)
    p1, Hp1, Wp1, P1p = _im2col_pool_phases_fold(x, k)
    y1 = conv_relu_pool(p1, w1_cm, b1_col)                      # (C1p, N*P1p) bf16
    x2 = _split_pooled(y1, N, c1, Hp1, Wp1, P1p)                # (N, c1, Hp1, Wp1)

    # stage 2: conv2 -> ReLU -> maxpool(2,2) -> FC3 -> ReLU -> FC4 -> ReLU -> FC5 (fused)
    p2, Hp2, Wp2, P2p = _im2col_pool_phases_fold(x2, k)
    assert P2p == w3_cd.shape[1], "stage-2 pool padding must match prepared w3 layout"
    logits = conv2_mlp(p2, w2_cm, b2_col, w3_cd, b3_row, w4p, b4_row, w5p, b5_row,
                       n_img=N, p_pad=P2p, c2=c2)               # (N, D5)
    return logits[:, :n_classes]


# ----------------------------- deterministic params -----------------------------

def init_params(key, c_out=6, c_in=3, k=5):
    """PyTorch-layout parameters, uniform(-1/sqrt(fan_in), 1/sqrt(fan_in))."""
    def u(kk, shape, fan_in):
        bnd = 1.0 / math.sqrt(fan_in)
        return jax.random.uniform(kk, shape, jnp.float32, -bnd, bnd)
    ks = jax.random.split(key, 10)
    w1 = u(ks[0], (c_out, c_in, k, k), c_in * k * k); b1 = u(ks[1], (c_out,), c_in * k * k)
    w2 = u(ks[2], (16, c_out, k, k), c_out * k * k);  b2 = u(ks[3], (16,), c_out * k * k)
    w3 = u(ks[4], (120, 16 * 5 * 5), 400);            b3 = u(ks[5], (120,), 400)
    w4 = u(ks[6], (84, 120), 120);                    b4 = u(ks[7], (84,), 120)
    w5 = u(ks[8], (10, 84), 84);                      b5 = u(ks[9], (10,), 84)
    return (w1, b1, w2, b2, w3, b3, w4, b4, w5, b5)


# ----------------------------- pure-JAX reference (for validation) -----------------------------

def reference_forward(x, params):
    (w1, b1, w2, b2, w3, b3, w4, b4, w5, b5) = params
    dn = ('NCHW', 'OIHW', 'NCHW')

    def pool(v):
        return lax.reduce_window(v, -jnp.inf, lax.max, (1, 1, 2, 2), (1, 1, 2, 2), 'VALID')

    y = lax.conv_general_dilated(x, w1, (1, 1), 'VALID', dimension_numbers=dn)
    y = pool(jax.nn.relu(y + b1[None, :, None, None]))
    y = lax.conv_general_dilated(y, w2, (1, 1), 'VALID', dimension_numbers=dn)
    y = pool(jax.nn.relu(y + b2[None, :, None, None]))
    f = y.reshape(y.shape[0], -1)
    h = jax.nn.relu(f @ w3.T + b3)
    h = jax.nn.relu(h @ w4.T + b4)
    return h @ w5.T + b5


# ----------------------------- main -----------------------------

if __name__ == "__main__":
    key = jax.random.PRNGKey(0)
    kx, kp = jax.random.split(key)

    # NCHW input consistent with the module: 3x32x32 (so the 16*5*5 flatten works), batch=2.
    x = jax.random.normal(kx, (2, 3, 32, 32), jnp.float32)
    params = init_params(kp, c_out=6, c_in=3, k=5)

    # Weight padding / re-layout done ONCE, outside the jitted forward.
    prepped = jax.block_until_ready(prepare_params(params))

    forward = jax.jit(functools.partial(conv2dnet_forward, c1=6, c2=16, k=5, n_classes=10))
    out = jax.block_until_ready(forward(x, prepped))
    assert out.shape == (2, 10), out.shape

    ref = jax.block_until_ready(reference_forward(x, params))
    err = float(jnp.max(jnp.abs(out - ref)))
    # bf16 matmul inputs with f32 accumulation -> expect ~1e-2 absolute error on O(0.1..1) logits.
    assert err < 5e-2, f"mismatch vs reference: max abs err = {err}"

    print("KERNEL_OK")
</pallas_src>

<mosaic_0001>
module attributes {stable_mosaic.version = 11 : i64} {
  func.func @kernel(%arg0: memref<128x2048xbf16, #tpu.memory_space<vmem>>, %arg1: memref<16x128xbf16, #tpu.memory_space<vmem>>, %arg2: memref<16x1xf32, #tpu.memory_space<vmem>>, %arg3: memref<16x512xbf16, #tpu.memory_space<vmem>>) attributes {dimension_semantics = [], scalar_prefetch = 0 : i64, scratch_operands = 0 : i64, tpu.core_type = #tpu.core_type<tc>} {
    %c0 = arith.constant 0 : index
    %c0_0 = arith.constant 0 : index
    %0 = vector.load %arg1[%c0, %c0_0] : memref<16x128xbf16, #tpu.memory_space<vmem>>, vector<16x128xbf16>
    %c0_1 = arith.constant 0 : index
    %c0_2 = arith.constant 0 : index
    %1 = vector.load %arg0[%c0_1, %c0_2] : memref<128x2048xbf16, #tpu.memory_space<vmem>>, vector<128x2048xbf16>
    %cst = arith.constant dense<0.000000e+00> : vector<16x2048xf32>
    %2 = tpu.matmul %0, %1, %cst {dimension_numbers = #tpu.dot_dimension_numbers<[1], [0], [0], [1], [0, 0, 1, 1], [], []>} : vector<16x128xbf16>, vector<128x2048xbf16>, vector<16x2048xf32> -> vector<16x2048xf32>
    %3 = vector.extract_strided_slice %2 {offsets = [0, 0], sizes = [16, 512], strides = [1, 1]} : vector<16x2048xf32> to vector<16x512xf32>
    %4 = vector.extract_strided_slice %2 {offsets = [0, 512], sizes = [16, 512], strides = [1, 1]} : vector<16x2048xf32> to vector<16x512xf32>
    %5 = arith.maximumf %3, %4 : vector<16x512xf32>
    %6 = vector.extract_strided_slice %2 {offsets = [0, 1024], sizes = [16, 512], strides = [1, 1]} : vector<16x2048xf32> to vector<16x512xf32>
    %7 = vector.extract_strided_slice %2 {offsets = [0, 1536], sizes = [16, 512], strides = [1, 1]} : vector<16x2048xf32> to vector<16x512xf32>
    %8 = arith.maximumf %6, %7 : vector<16x512xf32>
    %9 = arith.maximumf %5, %8 : vector<16x512xf32>
    %c0_3 = arith.constant 0 : index
    %c0_4 = arith.constant 0 : index
    %10 = vector.load %arg2[%c0_3, %c0_4] : memref<16x1xf32, #tpu.memory_space<vmem>>, vector<16x1xf32>
    %11 = vector.broadcast %10 : vector<16x1xf32> to vector<16x512xf32>
    %12 = arith.addf %9, %11 : vector<16x512xf32>
    %cst_5 = arith.constant 0.000000e+00 : f32
    %13 = vector.broadcast %cst_5 : f32 to vector<16x512xf32>
    %14 = arith.maximumf %12, %13 : vector<16x512xf32>
    %15 = arith.truncf %14 : vector<16x512xf32> to vector<16x512xbf16>
    %c0_6 = arith.constant 0 : index
    %c0_7 = arith.constant 0 : index
    %16 = vector.load %arg3[%c0_6, %c0_7] : memref<16x512xbf16, #tpu.memory_space<vmem>>, vector<16x512xbf16>
    tpu.vector_store %arg3[%c0_6, %c0_7], %15 {strides = array<i32>} : memref<16x512xbf16, #tpu.memory_space<vmem>>, vector<16x512xbf16>,
    return
  }
}

module attributes {stable_mosaic.version = 11 : i64} {
  func.func @kernel(%arg0: memref<256x1024xbf16, #tpu.memory_space<vmem>>, %arg1: memref<16x256xbf16, #tpu.memory_space<vmem>>, %arg2: memref<16x1xf32, #tpu.memory_space<vmem>>, %arg3: memref<16x128x128xbf16, #tpu.memory_space<vmem>>, %arg4: memref<1x128xf32, #tpu.memory_space<vmem>>, %arg5: memref<128x128xbf16, #tpu.memory_space<vmem>>, %arg6: memref<1x128xf32, #tpu.memory_space<vmem>>, %arg7: memref<128x128xbf16, #tpu.memory_space<vmem>>, %arg8: memref<1x128xf32, #tpu.memory_space<vmem>>, %arg9: memref<2x128xf32, #tpu.memory_space<vmem>>) attributes {dimension_semantics = [], scalar_prefetch = 0 : i64, scratch_operands = 0 : i64, tpu.core_type = #tpu.core_type<tc>} {
    %c0 = arith.constant 0 : index
    %c0_0 = arith.constant 0 : index
    %0 = vector.load %arg1[%c0, %c0_0] : memref<16x256xbf16, #tpu.memory_space<vmem>>, vector<16x256xbf16>
    %c0_1 = arith.constant 0 : index
    %c0_2 = arith.constant 0 : index
    %1 = vector.load %arg0[%c0_1, %c0_2] : memref<256x1024xbf16, #tpu.memory_space<vmem>>, vector<256x1024xbf16>
    %cst = arith.constant dense<0.000000e+00> : vector<16x1024xf32>
    %2 = tpu.matmul %0, %1, %cst {dimension_numbers = #tpu.dot_dimension_numbers<[1], [0], [0], [1], [0, 0, 1, 1], [], []>} : vector<16x256xbf16>, vector<256x1024xbf16>, vector<16x1024xf32> -> vector<16x1024xf32>
    %3 = vector.extract_strided_slice %2 {offsets = [0, 0], sizes = [16, 256], strides = [1, 1]} : vector<16x1024xf32> to vector<16x256xf32>
    %4 = vector.extract_strided_slice %2 {offsets = [0, 256], sizes = [16, 256], strides = [1, 1]} : vector<16x1024xf32> to vector<16x256xf32>
    %5 = arith.maximumf %3, %4 : vector<16x256xf32>
    %6 = vector.extract_strided_slice %2 {offsets = [0, 512], sizes = [16, 256], strides = [1, 1]} : vector<16x1024xf32> to vector<16x256xf32>
    %7 = vector.extract_strided_slice %2 {offsets = [0, 768], sizes = [16, 256], strides = [1, 1]} : vector<16x1024xf32> to vector<16x256xf32>
    %8 = arith.maximumf %6, %7 : vector<16x256xf32>
    %9 = arith.maximumf %5, %8 : vector<16x256xf32>
    %c0_3 = arith.constant 0 : index
    %c0_4 = arith.constant 0 : index
    %10 = vector.load %arg2[%c0_3, %c0_4] : memref<16x1xf32, #tpu.memory_space<vmem>>, vector<16x1xf32>
    %11 = vector.broadcast %10 : vector<16x1xf32> to vector<16x256xf32>
    %12 = arith.addf %9, %11 : vector<16x256xf32>
    %cst_5 = arith.constant 0.000000e+00 : f32
    %13 = vector.broadcast %cst_5 : f32 to vector<16x256xf32>
    %14 = arith.maximumf %12, %13 : vector<16x256xf32>
    %15 = arith.truncf %14 : vector<16x256xf32> to vector<16x256xbf16>
    %c0_6 = arith.constant 0 : index
    %c0_7 = arith.constant 0 : index
    %16 = vector.load %arg4[%c0_6, %c0_7] : memref<1x128xf32, #tpu.memory_space<vmem>>, vector<1x128xf32>
    %c0_8 = arith.constant 0 : index
    %c0_9 = arith.constant 0 : index
    %17 = vector.load %arg4[%c0_8, %c0_9] : memref<1x128xf32, #tpu.memory_space<vmem>>, vector<1x128xf32>
    %c0_10 = arith.constant 0 : index
    %c0_11 = arith.constant 0 : index
    %c0_12 = arith.constant 0 : index
    %18 = vector.load %arg3[%c0_10, %c0_11, %c0_12] : memref<16x128x128xbf16, #tpu.memory_space<vmem>>, vector<1x128x128xbf16>
    %19 = vector.shape_cast %18 : vector<1x128x128xbf16> to vector<128x128xbf16>
    %20 = vector.extract_strided_slice %15 {offsets = [0, 0], sizes = [1, 128], strides = [1, 1]} : vector<16x256xbf16> to vector<1x128xbf16>
    %cst_13 = arith.constant dense<0.000000e+00> : vector<1x128xf32>
    %21 = tpu.matmul %20, %19, %cst_13 {dimension_numbers = #tpu.dot_dimension_numbers<[1], [0], [0], [1], [0, 0, 1, 1], [], []>} : vector<1x128xbf16>, vector<128x128xbf16>, vector<1x128xf32> -> vector<1x128xf32>
    %22 = arith.addf %16, %21 : vector<1x128xf32>
    %23 = vector.extract_strided_slice %15 {offsets = [0, 128], sizes = [1, 128], strides = [1, 1]} : vector<16x256xbf16> to vector<1x128xbf16>
    %cst_14 = arith.constant dense<0.000000e+00> : vector<1x128xf32>
    %24 = tpu.matmul %23, %19, %cst_14 {dimension_numbers = #tpu.dot_dimension_numbers<[1], [0], [0], [1], [0, 0, 1, 1], [], []>} : vector<1x128xbf16>, vector<128x128xbf16>, vector<1x128xf32> -> vector<1x128xf32>
    %25 = arith.addf %17, %24 : vector<1x128xf32>
    %c1 = arith.constant 1 : index
    %c0_15 = arith.constant 0 : index
    %c0_16 = arith.constant 0 : index
    %26 = vector.load %arg3[%c1, %c0_15, %c0_16] : memref<16x128x128xbf16, #tpu.memory_space<vmem>>, vector<1x128x128xbf16>
    %27 = vector.shape_cast %26 : vector<1x128x128xbf16> to vector<128x128xbf16>
    %28 = vector.extract_strided_slice %15 {offsets = [1, 0], sizes = [1, 128], strides = [1, 1]} : vector<16x256xbf16> to vector<1x128xbf16>
    %cst_17 = arith.constant dense<0.000000e+00> : vector<1x128xf32>
    %29 = tpu.matmul %28, %27, %cst_17 {dimension_numbers = #tpu.dot_dimension_numbers<[1], [0], [0], [1], [0, 0, 1, 1], [], []>} : vector<1x128xbf16>, vector<128x128xbf16>, vector<1x128xf32> -> vector<1x128xf32>
    %30 = arith.addf %22, %29 : vector<1x128xf32>
    %31 = vector.extract_strided_slice %15 {offsets = [1, 128], sizes = [1, 128], strides = [1, 1]} : vector<16x256xbf16> to vector<1x128xbf16>
    %cst_18 = arith.constant dense<0.000000e+00> : vector<1x128xf32>
    %32 = tpu.matmul %31, %27, %cst_18 {dimension_numbers = #tpu.dot_dimension_numbers<[1], [0], [0], [1], [0, 0, 1, 1], [], []>} : vector<1x128xbf16>, vector<128x128xbf16>, vector<1x128xf32> -> vector<1x128xf32>
    %33 = arith.addf %25, %32 : vector<1x128xf32>
    %c2 = arith.constant 2 : index
    %c0_19 = arith.constant 0 : index
    %c0_20 = arith.constant 0 : index
    %34 = vector.load %arg3[%c2, %c0_19, %c0_20] : memref<16x128x128xbf16, #tpu.memory_space<vmem>>, vector<1x128x128xbf16>
    %35 = vector.shape_cast %34 : vector<1x128x128xbf16> to vector<128x128xbf16>
    %36 = vector.extract_strided_slice %15 {offsets = [2, 0], sizes = [1, 128], strides = [1, 1]} : vector<16x256xbf16> to vector<1x128xbf16>
    %cst_21 = arith.constant dense<0.000000e+00> : vector<1x128xf32>
    %37 = tpu.matmul %36, %35, %cst_21 {dimension_numbers = #tpu.dot_dimension_numbers<[1], [0], [0], [1], [0, 0, 1, 1], [], []>} : vector<1x128xbf16>, vector<128x128xbf16>, vector<1x128xf32> -> vector<1x128xf32>
    %38 = arith.addf %30, %37 : vector<1x128xf32>
    %39 = vector.extract_strided_slice %15 {offsets = [2, 128], sizes = [1, 128], strides = [1, 1]} : vector<16x256xbf16> to vector<1x128xbf16>
    %cst_22 = arith.constant dense<0.000000e+00> : vector<1x128xf32>
    %40 = tpu.matmul %39, %35, %cst_22 {dimension_numbers = #tpu.dot_dimension_numbers<[1], [0], [0], [1], [0, 0, 1, 1], [], []>} : vector<1x128xbf16>, vector<128x128xbf16>, vector<1x128xf32> -> vector<1x128xf32>
    %41 = arith.addf %33, %40 : vector<1x128xf32>
    %c3 = arith.constant 3 : index
    %c0_23 = arith.constant 0 : index
    %c0_24 = arith.constant 0 : index
    %42 = vector.load %arg3[%c3, %c0_23, %c0_24] : memref<16x128x128xbf16, #tpu.memory_space<vmem>>, vector<1x128x128xbf16>
    %43 = vector.shape_cast %42 : vector<1x128x128xbf16> to vector<128x128xbf16>
    %44 = vector.extract_strided_slice %15 {offsets = [3, 0], sizes = [1, 128], strides = [1, 1]} : vector<16x256xbf16> to vector<1x128xbf16>
    %cst_25 = arith.constant dense<0.000000e+00> : vector<1x128xf32>
    %45 = tpu.matmul %44, %43, %cst_25 {dimension_numbers = #tpu.dot_dimension_numbers<[1], [0], [0], [1], [0, 0, 1, 1], [], []>} : vector<1x128xbf16>, vector<128x128xbf16>, vector<1x128xf32> -> vector<1x128xf32>
    %46 = arith.addf %38, %45 : vector<1x128xf32>
    %47 = vector.extract_strided_slice %15 {offsets = [3, 128], sizes = [1, 128], strides = [1, 1]} : vector<16x256xbf16> to vector<1x128xbf16>
    %cst_26 = arith.constant dense<0.000000e+00> : vector<1x128xf32>
    %48 = tpu.matmul %47, %43, %cst_26 {dimension_numbers = #tpu.dot_dimension_numbers<[1], [0], [0], [1], [0, 0, 1, 1], [], []>} : vector<1x128xbf16>, vector<128x128xbf16>, vector<1x128xf32> -> vector<1x128xf32>
    %49 = arith.addf %41, %48 : vector<1x128xf32>
    %c4 = arith.constant 4 : index
    %c0_27 = arith.constant 0 : index
    %c0_28 = arith.constant 0 : index
    %50 = vector.load %arg3[%c4, %c0_27, %c0_28] : memref<16x128x128xbf16, #tpu.memory_space<vmem>>, vector<1x128x128xbf16>
    %51 = vector.shape_cast %50 : vector<1x128x128xbf16> to vector<128x128xbf16>
    %52 = vector.extract_strided_slice %15 {offsets = [4, 0], sizes = [1, 128], strides = [1, 1]} : vector<16x256xbf16> to vector<1x128xbf16>
    %cst_29 = arith.constant dense<0.000000e+00> : vector<1x128xf32>
    %53 = tpu.matmul %52, %51, %cst_29 {dimension_numbers = #tpu.dot_dimension_numbers<[1], [0], [0], [1], [0, 0, 1, 1], [], []>} : vector<1x128xbf16>, vector<128x128xbf16>, vector<1x128xf32> -> vector<1x128xf32>
    %54 = arith.addf %46, %53 : vector<1x128xf32>
    %55 = vector.extract_strided_slice %15 {offsets = [4, 128], sizes = [1, 128], strides = [1, 1]} : vector<16x256xbf16> to vector<1x128xbf16>
    %cst_30 = arith.constant dense<0.000000e+00> : vector<1x128xf32>
    %56 = tpu.matmul %55, %51, %cst_30 {dimension_numbers = #tpu.dot_dimension_numbers<[1], [0], [0], [1], [0, 0, 1, 1], [], []>} : vector<1x128xbf16>, vector<128x128xbf16>, vector<1x128xf32> -> vector<1x128xf32>
    %57 = arith.addf %49, %56 : vector<1x128xf32>
    %c5 = arith.constant 5 : index
    %c0_31 = arith.constant 0 : index
    %c0_32 = arith.constant 0 : index
    %58 = vector.load %arg3[%c5, %c0_31, %c0_32] : memref<16x128x128xbf16, #tpu.memory_space<vmem>>, vector<1x128x128xbf16>
    %59 = vector.shape_cast %58 : vector<1x128x128xbf16> to vector<128x128xbf16>
    %60 = vector.extract_strided_slice %15 {offsets = [5, 0], sizes = [1, 128], strides = [1, 1]} : vector<16x256xbf16> to vector<1x128xbf16>
    %cst_33 = arith.constant dense<0.000000e+00> : vector<1x128xf32>
    %61 = tpu.matmul %60, %59, %cst_33 {dimension_numbers = #tpu.dot_dimension_numbers<[1], [0], [0], [1], [0, 0, 1, 1], [], []>} : vector<1x128xbf16>, vector<128x128xbf16>, vector<1x128xf32> -> vector<1x128xf32>
    %62 = arith.addf %54, %61 : vector<1x128xf32>
    %63 = vector.extract_strided_slice %15 {offsets = [5, 128], sizes = [1, 128], strides = [1, 1]} : vector<16x256xbf16> to vector<1x128xbf16>
    %cst_34 = arith.constant dense<0.000000e+00> : vector<1x128xf32>
    %64 = tpu.matmul %63, %59, %cst_34 {dimension_numbers = #tpu.dot_dimension_numbers<[1], [0], [0], [1], [0, 0, 1, 1], [], []>} : vector<1x128xbf16>, vector<128x128xbf16>, vector<1x128xf32> -> vector<1x128xf32>
    %65 = arith.addf %57, %64 : vector<1x128xf32>
    %c6 = arith.constant 6 : index
    %c0_35 = arith.constant 0 : index
    %c0_36 = arith.constant 0 : index
    %66 = vector.load %arg3[%c6, %c0_35, %c0_36] : memref<16x128x128xbf16, #tpu.memory_space<vmem>>, vector<1x128x128xbf16>
    %67 = vector.shape_cast %66 : vector<1x128x128xbf16> to vector<128x128xbf16>
    %68 = vector.extract_strided_slice %15 {offsets = [6, 0], sizes = [1, 128], strides = [1, 1]} : vector<16x256xbf16> to vector<1x128xbf16>
    %cst_37 = arith.constant dense<0.000000e+00> : vector<1x128xf32>
    %69 = tpu.matmul %68, %67, %cst_37 {dimension_numbers = #tpu.dot_dimension_numbers<[1], [0], [0], [1], [0, 0, 1, 1], [], []>} : vector<1x128xbf16>, vector<128x128xbf16>, vector<1x128xf32> -> vector<1x128xf32>
    %70 = arith.addf %62, %69 : vector<1x128xf32>
    %71 = vector.extract_strided_slice %15 {offsets = [6, 128], sizes = [1, 128], strides = [1, 1]} : vector<16x256xbf16> to vector<1x128xbf16>
    %cst_38 = arith.constant dense<0.000000e+00> : vector<1x128xf32>
    %72 = tpu.matmul %71, %67, %cst_38 {dimension_numbers = #tpu.dot_dimension_numbers<[1], [0], [0], [1], [0, 0, 1, 1], [], []>} : vector<1x128xbf16>, vector<128x128xbf16>, vector<1x128xf32> -> vector<1x128xf32>
    %73 = arith.addf %65, %72 : vector<1x128xf32>
    %c7 = arith.constant 7 : index
    %c0_39 = arith.constant 0 : index
    %c0_40 = arith.constant 0 : index
    %74 = vector.load %arg3[%c7, %c0_39, %c0_40] : memref<16x128x128xbf16, #tpu.memory_space<vmem>>, vector<1x128x128xbf16>
    %75 = vector.shape_cast %74 : vector<1x128x128xbf16> to vector<128x128xbf16>
    %76 = vector.extract_strided_slice %15 {offsets = [7, 0], sizes = [1, 128], strides = [1, 1]} : vector<16x256xbf16> to vector<1x128xbf16>
    %cst_41 = arith.constant dense<0.000000e+00> : vector<1x128xf32>
    %77 = tpu.matmul %76, %75, %cst_41 {dimension_numbers = #tpu.dot_dimension_numbers<[1], [0], [0], [1], [0, 0, 1, 1], [], []>} : vector<1x128xbf16>, vector<128x128xbf16>, vector<1x128xf32> -> vector<1x128xf32>
    %78 = arith.addf %70, %77 : vector<1x128xf32>
    %79 = vector.extract_strided_slice %15 {offsets = [7, 128], sizes = [1, 128], strides = [1, 1]} : vector<16x256xbf16> to vector<1x128xbf16>
    %cst_42 = arith.constant dense<0.000000e+00> : vector<1x128xf32>
    %80 = tpu.matmul %79, %75, %cst_42 {dimension_numbers = #tpu.dot_dimension_numbers<[1], [0], [0], [1], [0, 0, 1, 1], [], []>} : vector<1x128xbf16>, vector<128x128xbf16>, vector<1x128xf32> -> vector<1x128xf32>
    %81 = arith.addf %73, %80 : vector<1x128xf32>
    %c8 = arith.constant 8 : index
    %c0_43 = arith.constant 0 : index
    %c0_44 = arith.constant 0 : index
    %82 = vector.load %arg3[%c8, %c0_43, %c0_44] : memref<16x128x128xbf16, #tpu.memory_space<vmem>>, vector<1x128x128xbf16>
    %83 = vector.shape_cast %82 : vector<1x128x128xbf16> to vector<128x128xbf16>
    %84 = vector.extract_strided_slice %15 {offsets = [8, 0], sizes = [1, 128], strides = [1, 1]} : vector<16x256xbf16> to vector<1x128xbf16>
    %cst_45 = arith.constant dense<0.000000e+00> : vector<1x128xf32>
    %85 = tpu.matmul %84, %83, %cst_45 {dimension_numbers = #tpu.dot_dimension_numbers<[1], [0], [0], [1], [0, 0, 1, 1], [], []>} : vector<1x128xbf16>, vector<128x128xbf16>, vector<1x128xf32> -> vector<1x128xf32>
    %86 = arith.addf %78, %85 : vector<1x128xf32>
    %87 = vector.extract_strided_slice %15 {offsets = [8, 128], sizes = [1, 128], strides = [1, 1]} : vector<16x256xbf16> to vector<1x128xbf16>
    %cst_46 = arith.constant dense<0.000000e+00> : vector<1x128xf32>
    %88 = tpu.matmul %87, %83, %cst_46 {dimension_numbers = #tpu.dot_dimension_numbers<[1], [0], [0], [1], [0, 0, 1, 1], [], []>} : vector<1x128xbf16>, vector<128x128xbf16>, vector<1x128xf32> -> vector<1x128xf32>
    %89 = arith.addf %81, %88 : vector<1x128xf32>
    %c9 = arith.constant 9 : index
    %c0_47 = arith.constant 0 : index
    %c0_48 = arith.constant 0 : index
    %90 = vector.load %arg3[%c9, %c0_47, %c0_48] : memref<16x128x128xbf16, #tpu.memory_space<vmem>>, vector<1x128x128xbf16>
    %91 = vector.shape_cast %90 : vector<1x128x128xbf16> to vector<128x128xbf16>
    %92 = vector.extract_strided_slice %15 {offsets = [9, 0], sizes = [1, 128], strides = [1, 1]} : vector<16x256xbf16> to vector<1x128xbf16>
    %cst_49 = arith.constant dense<0.000000e+00> : vector<1x128xf32>
    %93 = tpu.matmul %92, %91, %cst_49 {dimension_numbers = #tpu.dot_dimension_numbers<[1], [0], [0], [1], [0, 0, 1, 1], [], []>} : vector<1x128xbf16>, vector<128x128xbf16>, vector<1x128xf32> -> vector<1x128xf32>
    %94 = arith.addf %86, %93 : vector<1x128xf32>
    %95 = vector.extract_strided_slice %15 {offsets = [9, 128], sizes = [1, 128], strides = [1, 1]} : vector<16x256xbf16> to vector<1x128xbf16>
    %cst_50 = arith.constant dense<0.000000e+00> : vector<1x128xf32>
    %96 = tpu.matmul %95, %91, %cst_50 {dimension_numbers = #tpu.dot_dimension_numbers<[1], [0], [0], [1], [0, 0, 1, 1], [], []>} : vector<1x128xbf16>, vector<128x128xbf16>, vector<1x128xf32> -> vector<1x128xf32>
    %97 = arith.addf %89, %96 : vector<1x128xf32>
    %c10 = arith.constant 10 : index
    %c0_51 = arith.constant 0 : index
    %c0_52 = arith.constant 0 : index
    %98 = vector.load %arg3[%c10, %c0_51, %c0_52] : memref<16x128x128xbf16, #tpu.memory_space<vmem>>, vector<1x128x128xbf16>
    %99 = vector.shape_cast %98 : vector<1x128x128xbf16> to vector<128x128xbf16>
    %100 = vector.extract_strided_slice %15 {offsets = [10, 0], sizes = [1, 128], strides = [1, 1]} : vector<16x256xbf16> to vector<1x128xbf16>
    %cst_53 = arith.constant dense<0.000000e+00> : vector<1x128xf32>
    %101 = tpu.matmul %100, %99, %cst_53 {dimension_numbers = #tpu.dot_dimension_numbers<[1], [0], [0], [1], [0, 0, 1, 1], [], []>} : vector<1x128xbf16>, vector<128x128xbf16>, vector<1x128xf32> -> vector<1x128xf32>
    %102 = arith.addf %94, %101 : vector<1x128xf32>
    %103 = vector.extract_strided_slice %15 {offsets = [10, 128], sizes = [1, 128], strides = [1, 1]} : vector<16x256xbf16> to vector<1x128xbf16>
    %cst_54 = arith.constant dense<0.000000e+00> : vector<1x128xf32>
    %104 = tpu.matmul %103, %99, %cst_54 {dimension_numbers = #tpu.dot_dimension_numbers<[1], [0], [0], [1], [0, 0, 1, 1], [], []>} : vector<1x128xbf16>, vector<128x128xbf16>, vector<1x128xf32> -> vector<1x128xf32>
    %105 = arith.addf %97, %104 : vector<1x128xf32>
    %c11 = arith.constant 11 : index
    %c0_55 = arith.constant 0 : index
    %c0_56 = arith.constant 0 : index
    %106 = vector.load %arg3[%c11, %c0_55, %c0_56] : memref<16x128x128xbf16, #tpu.memory_space<vmem>>, vector<1x128x128xbf16>
    %107 = vector.shape_cast %106 : vector<1x128x128xbf16> to vector<128x128xbf16>
    %108 = vector.extract_strided_slice %15 {offsets = [11, 0], sizes = [1, 128], strides = [1, 1]} : vector<16x256xbf16> to vector<1x128xbf16>
    %cst_57 = arith.constant dense<0.000000e+00> : vector<1x128xf32>
    %109 = tpu.matmul %108, %107, %cst_57 {dimension_numbers = #tpu.dot_dimension_numbers<[1], [0], [0], [1], [0, 0, 1, 1], [], []>} : vector<1x128xbf16>, vector<128x128xbf16>, vector<1x128xf32> -> vector<1x128xf32>
    %110 = arith.addf %102, %109 : vector<1x128xf32>
    %111 = vector.extract_strided_slice %15 {offsets = [11, 128], sizes = [1, 128], strides = [1, 1]} : vector<16x256xbf16> to vector<1x128xbf16>
    %cst_58 = arith.constant dense<0.000000e+00> : vector<1x128xf32>
    %112 = tpu.matmul %111, %107, %cst_58 {dimension_numbers = #tpu.dot_dimension_numbers<[1], [0], [0], [1], [0, 0, 1, 1], [], []>} : vector<1x128xbf16>, vector<128x128xbf16>, vector<1x128xf32> -> vector<1x128xf32>
    %113 = arith.addf %105, %112 : vector<1x128xf32>
    %c12 = arith.constant 12 : index
    %c0_59 = arith.constant 0 : index
    %c0_60 = arith.constant 0 : index
    %114 = vector.load %arg3[%c12, %c0_59, %c0_60] : memref<16x128x128xbf16, #tpu.memory_space<vmem>>, vector<1x128x128xbf16>
    %115 = vector.shape_cast %114 : vector<1x128x128xbf16> to vector<128x128xbf16>
    %116 = vector.extract_strided_slice %15 {offsets = [12, 0], sizes = [1, 128], strides = [1, 1]} : vector<16x256xbf16> to vector<1x128xbf16>
    %cst_61 = arith.constant dense<0.000000e+00> : vector<1x128xf32>
    %117 = tpu.matmul %116, %115, %cst_61 {dimension_numbers = #tpu.dot_dimension_numbers<[1], [0], [0], [1], [0, 0, 1, 1], [], []>} : vector<1x128xbf16>, vector<128x128xbf16>, vector<1x128xf32> -> vector<1x128xf32>
    %118 = arith.addf %110, %117 : vector<1x128xf32>
    %119 = vector.extract_strided_slice %15 {offsets = [12, 128], sizes = [1, 128], strides = [1, 1]} : vector<16x256xbf16> to vector<1x128xbf16>
    %cst_62 = arith.constant dense<0.000000e+00> : vector<1x128xf32>
    %120 = tpu.matmul %119, %115, %cst_62 {dimension_numbers = #tpu.dot_dimension_numbers<[1], [0], [0], [1], [0, 0, 1, 1], [], []>} : vector<1x128xbf16>, vector<128x128xbf16>, vector<1x128xf32> -> vector<1x128xf32>
    %121 = arith.addf %113, %120 : vector<1x128xf32>
    %c13 = arith.constant 13 : index
    %c0_63 = arith.constant 0 : index
    %c0_64 = arith.constant 0 : index
    %122 = vector.load %arg3[%c13, %c0_63, %c0_64] : memref<16x128x128xbf16, #tpu.memory_space<vmem>>, vector<1x128x128xbf16>
    %123 = vector.shape_cast %122 : vector<1x128x128xbf16> to vector<128x128xbf16>
    %124 = vector.extract_strided_slice %15 {offsets = [13, 0], sizes = [1, 128], strides = [1, 1]} : vector<16x256xbf16> to vector<1x128xbf16>
    %cst_65 = arith.constant dense<0.000000e+00> : vector<1x128xf32>
    %125 = tpu.matmul %124, %123, %cst_65 {dimension_numbers = #tpu.dot_dimension_numbers<[1], [0], [0], [1], [0, 0, 1, 1], [], []>} : vector<1x128xbf16>, vector<128x128xbf16>, vector<1x128xf32> -> vector<1x128xf32>
    %126 = arith.addf %118, %125 : vector<1x128xf32>
    %127 = vector.extract_strided_slice %15 {offsets = [13, 128], sizes = [1, 128], strides = [1, 1]} : vector<16x256xbf16> to vector<1x128xbf16>
    %cst_66 = arith.constant dense<0.000000e+00> : vector<1x128xf32>
    %128 = tpu.matmul %127, %123, %cst_66 {dimension_numbers = #tpu.dot_dimension_numbers<[1], [0], [0], [1], [0, 0, 1, 1], [], []>} : vector<1x128xbf16>, vector<128x128xbf16>, vector<1x128xf32> -> vector<1x128xf32>
    %129 = arith.addf %121, %128 : vector<1x128xf32>
    %c14 = arith.constant 14 : index
    %c0_67 = arith.constant 0 : index
    %c0_68 = arith.constant 0 : index
    %130 = vector.load %arg3[%c14, %c0_67, %c0_68] : memref<16x128x128xbf16, #tpu.memory_space<vmem>>, vector<1x128x128xbf16>
    %131 = vector.shape_cast %130 : vector<1x128x128xbf16> to vector<128x128xbf16>
    %132 = vector.extract_strided_slice %15 {offsets = [14, 0], sizes = [1, 128], strides = [1, 1]} : vector<16x256xbf16> to vector<1x128xbf16>
    %cst_69 = arith.constant dense<0.000000e+00> : vector<1x128xf32>
    %133 = tpu.matmul %132, %131, %cst_69 {dimension_numbers = #tpu.dot_dimension_numbers<[1], [0], [0], [1], [0, 0, 1, 1], [], []>} : vector<1x128xbf16>, vector<128x128xbf16>, vector<1x128xf32> -> vector<1x128xf32>
    %134 = arith.addf %126, %133 : vector<1x128xf32>
    %135 = vector.extract_strided_slice %15 {offsets = [14, 128], sizes = [1, 128], strides = [1, 1]} : vector<16x256xbf16> to vector<1x128xbf16>
    %cst_70 = arith.constant dense<0.000000e+00> : vector<1x128xf32>
    %136 = tpu.matmul %135, %131, %cst_70 {dimension_numbers = #tpu.dot_dimension_numbers<[1], [0], [0], [1], [0, 0, 1, 1], [], []>} : vector<1x128xbf16>, vector<128x128xbf16>, vector<1x128xf32> -> vector<1x128xf32>
    %137 = arith.addf %129, %136 : vector<1x128xf32>
    %c15 = arith.constant 15 : index
    %c0_71 = arith.constant 0 : index
    %c0_72 = arith.constant 0 : index
    %138 = vector.load %arg3[%c15, %c0_71, %c0_72] : memref<16x128x128xbf16, #tpu.memory_space<vmem>>, vector<1x128x128xbf16>
    %139 = vector.shape_cast %138 : vector<1x128x128xbf16> to vector<128x128xbf16>
    %140 = vector.extract_strided_slice %15 {offsets = [15, 0], sizes = [1, 128], strides = [1, 1]} : vector<16x256xbf16> to vector<1x128xbf16>
    %cst_73 = arith.constant dense<0.000000e+00> : vector<1x128xf32>
    %141 = tpu.matmul %140, %139, %cst_73 {dimension_numbers = #tpu.dot_dimension_numbers<[1], [0], [0], [1], [0, 0, 1, 1], [], []>} : vector<1x128xbf16>, vector<128x128xbf16>, vector<1x128xf32> -> vector<1x128xf32>
    %142 = arith.addf %134, %141 : vector<1x128xf32>
    %143 = vector.extract_strided_slice %15 {offsets = [15, 128], sizes = [1, 128], strides = [1, 1]} : vector<16x256xbf16> to vector<1x128xbf16>
    %cst_74 = arith.constant dense<0.000000e+00> : vector<1x128xf32>
    %144 = tpu.matmul %143, %139, %cst_74 {dimension_numbers = #tpu.dot_dimension_numbers<[1], [0], [0], [1], [0, 0, 1, 1], [], []>} : vector<1x128xbf16>, vector<128x128xbf16>, vector<1x128xf32> -> vector<1x128xf32>
    %145 = arith.addf %137, %144 : vector<1x128xf32>
    %cst_75 = arith.constant 0.000000e+00 : f32
    %146 = vector.broadcast %cst_75 : f32 to vector<1x128xf32>
    %147 = arith.maximumf %142, %146 : vector<1x128xf32>
    %148 = arith.truncf %147 : vector<1x128xf32> to vector<1x128xbf16>
    %c0_76 = arith.constant 0 : index
    %c0_77 = arith.constant 0 : index
    %149 = vector.load %arg5[%c0_76, %c0_77] : memref<128x128xbf16, #tpu.memory_space<vmem>>, vector<128x128xbf16>
    %cst_78 = arith.constant dense<0.000000e+00> : vector<1x128xf32>
    %150 = tpu.matmul %148, %149, %cst_78 {dimension_numbers = #tpu.dot_dimension_numbers<[1], [0], [0], [1], [0, 0, 1, 1], [], []>} : vector<1x128xbf16>, vector<128x128xbf16>, vector<1x128xf32> -> vector<1x128xf32>
    %c0_79 = arith.constant 0 : index
    %c0_80 = arith.constant 0 : index
    %151 = vector.load %arg6[%c0_79, %c0_80] : memref<1x128xf32, #tpu.memory_space<vmem>>, vector<1x128xf32>
    %152 = arith.addf %150, %151 : vector<1x128xf32>
    %cst_81 = arith.constant 0.000000e+00 : f32
    %153 = vector.broadcast %cst_81 : f32 to vector<1x128xf32>
    %154 = arith.maximumf %152, %153 : vector<1x128xf32>
    %155 = arith.truncf %154 : vector<1x128xf32> to vector<1x128xbf16>
    %c0_82 = arith.constant 0 : index
    %c0_83 = arith.constant 0 : index
    %156 = vector.load %arg7[%c0_82, %c0_83] : memref<128x128xbf16, #tpu.memory_space<vmem>>, vector<128x128xbf16>
    %cst_84 = arith.constant dense<0.000000e+00> : vector<1x128xf32>
    %157 = tpu.matmul %155, %156, %cst_84 {dimension_numbers = #tpu.dot_dimension_numbers<[1], [0], [0], [1], [0, 0, 1, 1], [], []>} : vector<1x128xbf16>, vector<128x128xbf16>, vector<1x128xf32> -> vector<1x128xf32>
    %c0_85 = arith.constant 0 : index
    %c0_86 = arith.constant 0 : index
    %158 = vector.load %arg8[%c0_85, %c0_86] : memref<1x128xf32, #tpu.memory_space<vmem>>, vector<1x128xf32>
    %159 = arith.addf %157, %158 : vector<1x128xf32>
    %cst_87 = arith.constant 0.000000e+00 : f32
    %160 = vector.broadcast %cst_87 : f32 to vector<1x128xf32>
    %161 = arith.maximumf %145, %160 : vector<1x128xf32>
    %162 = arith.truncf %161 : vector<1x128xf32> to vector<1x128xbf16>
    %c0_88 = arith.constant 0 : index
    %c0_89 = arith.constant 0 : index
    %163 = vector.load %arg5[%c0_88, %c0_89] : memref<128x128xbf16, #tpu.memory_space<vmem>>, vector<128x128xbf16>
    %cst_90 = arith.constant dense<0.000000e+00> : vector<1x128xf32>
    %164 = tpu.matmul %162, %163, %cst_90 {dimension_numbers = #tpu.dot_dimension_numbers<[1], [0], [0], [1], [0, 0, 1, 1], [], []>} : vector<1x128xbf16>, vector<128x128xbf16>, vector<1x128xf32> -> vector<1x128xf32>
    %c0_91 = arith.constant 0 : index
    %c0_92 = arith.constant 0 : index
    %165 = vector.load %arg6[%c0_91, %c0_92] : memref<1x128xf32, #tpu.memory_space<vmem>>, vector<1x128xf32>
    %166 = arith.addf %164, %165 : vector<1x128xf32>
    %cst_93 = arith.constant 0.000000e+00 : f32
    %167 = vector.broadcast %cst_93 : f32 to vector<1x128xf32>
    %168 = arith.maximumf %166, %167 : vector<1x128xf32>
    %169 = arith.truncf %168 : vector<1x128xf32> to vector<1x128xbf16>
    %c0_94 = arith.constant 0 : index
    %c0_95 = arith.constant 0 : index
    %170 = vector.load %arg7[%c0_94, %c0_95] : memref<128x128xbf16, #tpu.memory_space<vmem>>, vector<128x128xbf16>
    %cst_96 = arith.constant dense<0.000000e+00> : vector<1x128xf32>
    %171 = tpu.matmul %169, %170, %cst_96 {dimension_numbers = #tpu.dot_dimension_numbers<[1], [0], [0], [1], [0, 0, 1, 1], [], []>} : vector<1x128xbf16>, vector<128x128xbf16>, vector<1x128xf32> -> vector<1x128xf32>
    %c0_97 = arith.constant 0 : index
    %c0_98 = arith.constant 0 : index
    %172 = vector.load %arg8[%c0_97, %c0_98] : memref<1x128xf32, #tpu.memory_space<vmem>>, vector<1x128xf32>
    %173 = arith.addf %171, %172 : vector<1x128xf32>
    %174 = tpu.concatenate %159, %173 in 0 : vector<1x128xf32>, vector<1x128xf32> -> vector<2x128xf32>
    %c0_99 = arith.constant 0 : index
    %c0_100 = arith.constant 0 : index
    %175 = vector.load %arg9[%c0_99, %c0_100] : memref<2x128xf32, #tpu.memory_space<vmem>>, vector<2x128xf32>
    tpu.vector_store %arg9[%c0_99, %c0_100], %174 {strides = array<i32>} : memref<2x128xf32, #tpu.memory_space<vmem>>, vector<2x128xf32>,
    return
  }
}

</mosaic_0001>

<llo_original>
// kernel: conv2dnet_forward.2
$region0: #{conv2dnet_forward.2}
  #allocation0 [shape = 'u32[]', space=smem, size = 0x4, offset = 0x4, fixed_abs, tag = 'smem constant byte address 0x4 - core index']
  #allocation1 [shape = 'u32[72,128]{1,0:T(1,128)}', space=vmem, size = 0x9000, scoped, tag = 'internal scratch']
  %s0 = inlined_call_operand.vmem [shape: bf16[128,2048], index: 0, kind: input, shape index: {}]
  %s1 = inlined_call_operand.vmem [shape: bf16[16,128], index: 1, kind: input, shape index: {}]
  %s2 = inlined_call_operand.vmem [shape: f32[16,1], index: 2, kind: input, shape index: {}]
  %s3 = inlined_call_operand.vmem [shape: bf16[16,512], index: 3, kind: output, shape index: {}]
  %s4 = sld [smem:[#allocation0]]
  $region22: #{conv2dnet_forward.2} parent=0
    _
  %s6 = ssub.s32 1, %s4
  %s7 = scalar_select 0, %s6, %s4
  // Predicated region
  $region2: #{conv2dnet_forward.2} parent=0 // pred_check
    _
  $region3: #{conv2dnet_forward.2} parent=0 // pred_check_branch
    %9 = sbr.rel (0) target = $region5
  $region4: #{conv2dnet_forward.2} parent=0 // pred_region
    _
  $region5: #{conv2dnet_forward.2} parent=0 // pred_fallthru
    _
  // Predicated region
  $region6: #{conv2dnet_forward.2} parent=0 // pred_check
    _
  $region7: #{conv2dnet_forward.2} parent=0 // pred_check_branch
    %11 = sbr.rel (0) target = $region9
  $region8: #{conv2dnet_forward.2} parent=0 // pred_region
    _
  $region9: #{conv2dnet_forward.2} parent=0 // pred_fallthru
    _
  // Predicated region
  $region10: #{conv2dnet_forward.2} parent=0 // pred_check
    _
  $region11: #{conv2dnet_forward.2} parent=0 // pred_check_branch
    %13 = sbr.rel (0) target = $region13
  $region12: #{conv2dnet_forward.2} parent=0 // pred_region
    _
  $region13: #{conv2dnet_forward.2} parent=0 // pred_fallthru
    _
  %v14 = vld [vmem:[%s1] sm:$0xf]
  %v15 = vld [vmem:[%s1 + $0x4] sm:$0xf]
  %v16 = vld [vmem:[%s0] sm:$0xff]
  %v17 = vld [vmem:[%s0 + $0x8] sm:$0xff]
  %v18 = vld [vmem:[%s0 + $0x10] sm:$0xff]
  %v19 = vld [vmem:[%s0 + $0x18] sm:$0xff]
  %v20 = vld [vmem:[%s0 + $0x20] sm:$0xff]
  %v21 = vld [vmem:[%s0 + $0x28] sm:$0xff]
  %v22 = vld [vmem:[%s0 + $0x30] sm:$0xff]
  %v23 = vld [vmem:[%s0 + $0x38] sm:$0xff]
  %v24 = vld [vmem:[%s0 + $0x40] sm:$0xff]
  %v25 = vld [vmem:[%s0 + $0x48] sm:$0xff]
  %v26 = vld [vmem:[%s0 + $0x50] sm:$0xff]
  %v27 = vld [vmem:[%s0 + $0x58] sm:$0xff]
  %v28 = vld [vmem:[%s0 + $0x60] sm:$0xff]
  %v29 = vld [vmem:[%s0 + $0x68] sm:$0xff]
  %v30 = vld [vmem:[%s0 + $0x70] sm:$0xff]
  %v31 = vld [vmem:[%s0 + $0x78] sm:$0xff]
  %v32 = vld [vmem:[%s0 + $0x80] sm:$0xff]
  %v33 = vld [vmem:[%s0 + $0x88] sm:$0xff]
  %v34 = vld [vmem:[%s0 + $0x90] sm:$0xff]
  %v35 = vld [vmem:[%s0 + $0x98] sm:$0xff]
  %v36 = vld [vmem:[%s0 + $0xa0] sm:$0xff]
  %v37 = vld [vmem:[%s0 + $0xa8] sm:$0xff]
  %v38 = vld [vmem:[%s0 + $0xb0] sm:$0xff]
  %v39 = vld [vmem:[%s0 + $0xb8] sm:$0xff]
  %v40 = vld [vmem:[%s0 + $0xc0] sm:$0xff]
  %v41 = vld [vmem:[%s0 + $0xc8] sm:$0xff]
  %v42 = vld [vmem:[%s0 + $0xd0] sm:$0xff]
  %v43 = vld [vmem:[%s0 + $0xd8] sm:$0xff]
  %v44 = vld [vmem:[%s0 + $0xe0] sm:$0xff]
  %v45 = vld [vmem:[%s0 + $0xe8] sm:$0xff]
  %v46 = vld [vmem:[%s0 + $0xf0] sm:$0xff]
  %v47 = vld [vmem:[%s0 + $0xf8] sm:$0xff]
  %v48 = vld [vmem:[%s0 + $0x100] sm:$0xff]
  %v49 = vld [vmem:[%s0 + $0x108] sm:$0xff]
  %v50 = vld [vmem:[%s0 + $0x110] sm:$0xff]
  %v51 = vld [vmem:[%s0 + $0x118] sm:$0xff]
  %v52 = vld [vmem:[%s0 + $0x120] sm:$0xff]
  %v53 = vld [vmem:[%s0 + $0x128] sm:$0xff]
  %v54 = vld [vmem:[%s0 + $0x130] sm:$0xff]
  %v55 = vld [vmem:[%s0 + $0x138] sm:$0xff]
  %v56 = vld [vmem:[%s0 + $0x140] sm:$0xff]
  %v57 = vld [vmem:[%s0 + $0x148] sm:$0xff]
  %v58 = vld [vmem:[%s0 + $0x150] sm:$0xff]
  %v59 = vld [vmem:[%s0 + $0x158] sm:$0xff]
  %v60 = vld [vmem:[%s0 + $0x160] sm:$0xff]
  %v61 = vld [vmem:[%s0 + $0x168] sm:$0xff]
  %v62 = vld [vmem:[%s0 + $0x170] sm:$0xff]
  %v63 = vld [vmem:[%s0 + $0x178] sm:$0xff]
  %v64 = vld [vmem:[%s0 + $0x180] sm:$0xff]
  %v65 = vld [vmem:[%s0 + $0x188] sm:$0xff]
  %v66 = vld [vmem:[%s0 + $0x190] sm:$0xff]
  %v67 = vld [vmem:[%s0 + $0x198] sm:$0xff]
  %v68 = vld [vmem:[%s0 + $0x1a0] sm:$0xff]
  %v69 = vld [vmem:[%s0 + $0x1a8] sm:$0xff]
  %v70 = vld [vmem:[%s0 + $0x1b0] sm:$0xff]
  %v71 = vld [vmem:[%s0 + $0x1b8] sm:$0xff]
  %v72 = vld [vmem:[%s0 + $0x1c0] sm:$0xff]
  %v73 = vld [vmem:[%s0 + $0x1c8] sm:$0xff]
  %v74 = vld [vmem:[%s0 + $0x1d0] sm:$0xff]
  %v75 = vld [vmem:[%s0 + $0x1d8] sm:$0xff]
  %v76 = vld [vmem:[%s0 + $0x1e0] sm:$0xff]
  %v77 = vld [vmem:[%s0 + $0x1e8] sm:$0xff]
  %v78 = vld [vmem:[%s0 + $0x1f0] sm:$0xff]
  %v79 = vld [vmem:[%s0 + $0x1f8] sm:$0xff]
  %v80 = vld [vmem:[%s0 + $0x200] sm:$0xff]
  %v81 = vld [vmem:[%s0 + $0x208] sm:$0xff]
  %v82 = vld [vmem:[%s0 + $0x210] sm:$0xff]
  %v83 = vld [vmem:[%s0 + $0x218] sm:$0xff]
  %v84 = vld [vmem:[%s0 + $0x220] sm:$0xff]
  %v85 = vld [vmem:[%s0 + $0x228] sm:$0xff]
  %v86 = vld [vmem:[%s0 + $0x230] sm:$0xff]
  %v87 = vld [vmem:[%s0 + $0x238] sm:$0xff]
  %v88 = vld [vmem:[%s0 + $0x240] sm:$0xff]
  %v89 = vld [vmem:[%s0 + $0x248] sm:$0xff]
  %v90 = vld [vmem:[%s0 + $0x250] sm:$0xff]
  %v91 = vld [vmem:[%s0 + $0x258] sm:$0xff]
  %v92 = vld [vmem:[%s0 + $0x260] sm:$0xff]
  %v93 = vld [vmem:[%s0 + $0x268] sm:$0xff]
  %v94 = vld [vmem:[%s0 + $0x270] sm:$0xff]
  %v95 = vld [vmem:[%s0 + $0x278] sm:$0xff]
  %v96 = vld [vmem:[%s0 + $0x280] sm:$0xff]
  %v97 = vld [vmem:[%s0 + $0x288] sm:$0xff]
  %v98 = vld [vmem:[%s0 + $0x290] sm:$0xff]
  %v99 = vld [vmem:[%s0 + $0x298] sm:$0xff]
  %v100 = vld [vmem:[%s0 + $0x2a0] sm:$0xff]
  %v101 = vld [vmem:[%s0 + $0x2a8] sm:$0xff]
  %v102 = vld [vmem:[%s0 + $0x2b0] sm:$0xff]
  %v103 = vld [vmem:[%s0 + $0x2b8] sm:$0xff]
  %v104 = vld [vmem:[%s0 + $0x2c0] sm:$0xff]
  %v105 = vld [vmem:[%s0 + $0x2c8] sm:$0xff]
  %v106 = vld [vmem:[%s0 + $0x2d0] sm:$0xff]
  %v107 = vld [vmem:[%s0 + $0x2d8] sm:$0xff]
  %v108 = vld [vmem:[%s0 + $0x2e0] sm:$0xff]
  %v109 = vld [vmem:[%s0 + $0x2e8] sm:$0xff]
  %v110 = vld [vmem:[%s0 + $0x2f0] sm:$0xff]
  %v111 = vld [vmem:[%s0 + $0x2f8] sm:$0xff]
  %v112 = vld [vmem:[%s0 + $0x300] sm:$0xff]
  %v113 = vld [vmem:[%s0 + $0x308] sm:$0xff]
  %v114 = vld [vmem:[%s0 + $0x310] sm:$0xff]
  %v115 = vld [vmem:[%s0 + $0x318] sm:$0xff]
  %v116 = vld [vmem:[%s0 + $0x320] sm:$0xff]
  %v117 = vld [vmem:[%s0 + $0x328] sm:$0xff]
  %v118 = vld [vmem:[%s0 + $0x330] sm:$0xff]
  %v119 = vld [vmem:[%s0 + $0x338] sm:$0xff]
  %v120 = vld [vmem:[%s0 + $0x340] sm:$0xff]
  %v121 = vld [vmem:[%s0 + $0x348] sm:$0xff]
  %v122 = vld [vmem:[%s0 + $0x350] sm:$0xff]
  %v123 = vld [vmem:[%s0 + $0x358] sm:$0xff]
  %v124 = vld [vmem:[%s0 + $0x360] sm:$0xff]
  %v125 = vld [vmem:[%s0 + $0x368] sm:$0xff]
  %v126 = vld [vmem:[%s0 + $0x370] sm:$0xff]
  %v127 = vld [vmem:[%s0 + $0x378] sm:$0xff]
  %v128 = vld [vmem:[%s0 + $0x380] sm:$0xff]
  %v129 = vld [vmem:[%s0 + $0x388] sm:$0xff]
  %v130 = vld [vmem:[%s0 + $0x390] sm:$0xff]
  %v131 = vld [vmem:[%s0 + $0x398] sm:$0xff]
  %v132 = vld [vmem:[%s0 + $0x3a0] sm:$0xff]
  %v133 = vld [vmem:[%s0 + $0x3a8] sm:$0xff]
  %v134 = vld [vmem:[%s0 + $0x3b0] sm:$0xff]
  %v135 = vld [vmem:[%s0 + $0x3b8] sm:$0xff]
  %v136 = vld [vmem:[%s0 + $0x3c0] sm:$0xff]
  %v137 = vld [vmem:[%s0 + $0x3c8] sm:$0xff]
  %v138 = vld [vmem:[%s0 + $0x3d0] sm:$0xff]
  %v139 = vld [vmem:[%s0 + $0x3d8] sm:$0xff]
  %v140 = vld [vmem:[%s0 + $0x3e0] sm:$0xff]
  %v141 = vld [vmem:[%s0 + $0x3e8] sm:$0xff]
  %v142 = vld [vmem:[%s0 + $0x3f0] sm:$0xff]
  %v143 = vld [vmem:[%s0 + $0x3f8] sm:$0xff]
  %v146 = vunpack.c.l.b16 %v14
  %v147 = vunpack.c.l.b16 %v15
  %v148 = vpack.c.b16 %v147, %v146
  %v278 = vunpack.c.l.b16 %v16
  %v279 = vunpack.c.h.b16 %v16
  %v280 = vunpack.c.l.b16 %v17
  %v281 = vunpack.c.h.b16 %v17
  %v282 = vunpack.c.l.b16 %v18
  %v283 = vunpack.c.h.b16 %v18
  %v284 = vunpack.c.l.b16 %v19
  %v285 = vunpack.c.h.b16 %v19
  %v286 = vunpack.c.l.b16 %v20
  %v287 = vunpack.c.h.b16 %v20
  %v288 = vunpack.c.l.b16 %v21
  %v289 = vunpack.c.h.b16 %v21
  %v290 = vunpack.c.l.b16 %v22
  %v291 = vunpack.c.h.b16 %v22
  %v292 = vunpack.c.l.b16 %v23
  %v293 = vunpack.c.h.b16 %v23
  %v294 = vunpack.c.l.b16 %v24
  %v295 = vunpack.c.h.b16 %v24
  %v296 = vunpack.c.l.b16 %v25
  %v297 = vunpack.c.h.b16 %v25
  %v298 = vunpack.c.l.b16 %v26
  %v299 = vunpack.c.h.b16 %v26
  %v300 = vunpack.c.l.b16 %v27
  %v301 = vunpack.c.h.b16 %v27
  %v302 = vunpack.c.l.b16 %v28
  %v303 = vunpack.c.h.b16 %v28
  %v304 = vunpack.c.l.b16 %v29
  %v305 = vunpack.c.h.b16 %v29
  %v306 = vunpack.c.l.b16 %v30
  %v307 = vunpack.c.h.b16 %v30
  %v308 = vunpack.c.l.b16 %v31
  %v309 = vunpack.c.h.b16 %v31
  %v310 = vunpack.c.l.b16 %v32
  %v311 = vunpack.c.h.b16 %v32
  %v312 = vunpack.c.l.b16 %v33
  %v313 = vunpack.c.h.b16 %v33
  %v314 = vunpack.c.l.b16 %v34
  %v315 = vunpack.c.h.b16 %v34
  %v316 = vunpack.c.l.b16 %v35
  %v317 = vunpack.c.h.b16 %v35
  %v318 = vunpack.c.l.b16 %v36
  %v319 = vunpack.c.h.b16 %v36
  %v320 = vunpack.c.l.b16 %v37
  %v321 = vunpack.c.h.b16 %v37
  %v322 = vunpack.c.l.b16 %v38
  %v323 = vunpack.c.h.b16 %v38
  %v324 = vunpack.c.l.b16 %v39
  %v325 = vunpack.c.h.b16 %v39
  %v326 = vunpack.c.l.b16 %v40
  %v327 = vunpack.c.h.b16 %v40
  %v328 = vunpack.c.l.b16 %v41
  %v329 = vunpack.c.h.b16 %v41
  %v330 = vunpack.c.l.b16 %v42
  %v331 = vunpack.c.h.b16 %v42
  %v332 = vunpack.c.l.b16 %v43
  %v333 = vunpack.c.h.b16 %v43
  %v334 = vunpack.c.l.b16 %v44
  %v335 = vunpack.c.h.b16 %v44
  %v336 = vunpack.c.l.b16 %v45
  %v337 = vunpack.c.h.b16 %v45
  %v338 = vunpack.c.l.b16 %v46
  %v339 = vunpack.c.h.b16 %v46
  %v340 = vunpack.c.l.b16 %v47
  %v341 = vunpack.c.h.b16 %v47
  %v342 = vunpack.c.l.b16 %v48
  %v343 = vunpack.c.h.b16 %v48
  %v344 = vunpack.c.l.b16 %v49
  %v345 = vunpack.c.h.b16 %v49
  %v346 = vunpack.c.l.b16 %v50
  %v347 = vunpack.c.h.b16 %v50
  %v348 = vunpack.c.l.b16 %v51
  %v349 = vunpack.c.h.b16 %v51
  %v350 = vunpack.c.l.b16 %v52
  %v351 = vunpack.c.h.b16 %v52
  %v352 = vunpack.c.l.b16 %v53
  %v353 = vunpack.c.h.b16 %v53
  %v354 = vunpack.c.l.b16 %v54
  %v355 = vunpack.c.h.b16 %v54
  %v356 = vunpack.c.l.b16 %v55
  %v357 = vunpack.c.h.b16 %v55
  %v358 = vunpack.c.l.b16 %v56
  %v359 = vunpack.c.h.b16 %v56
  %v360 = vunpack.c.l.b16 %v57
  %v361 = vunpack.c.h.b16 %v57
  %v362 = vunpack.c.l.b16 %v58
  %v363 = vunpack.c.h.b16 %v58
  %v364 = vunpack.c.l.b16 %v59
  %v365 = vunpack.c.h.b16 %v59
  %v366 = vunpack.c.l.b16 %v60
  %v367 = vunpack.c.h.b16 %v60
  %v368 = vunpack.c.l.b16 %v61
  %v369 = vunpack.c.h.b16 %v61
  %v370 = vunpack.c.l.b16 %v62
  %v371 = vunpack.c.h.b16 %v62
  %v372 = vunpack.c.l.b16 %v63
  %v373 = vunpack.c.h.b16 %v63
  %v374 = vunpack.c.l.b16 %v64
  %v375 = vunpack.c.h.b16 %v64
  %v376 = vunpack.c.l.b16 %v65
  %v377 = vunpack.c.h.b16 %v65
  %v378 = vunpack.c.l.b16 %v66
  %v379 = vunpack.c.h.b16 %v66
  %v380 = vunpack.c.l.b16 %v67
  %v381 = vunpack.c.h.b16 %v67
  %v382 = vunpack.c.l.b16 %v68
  %v383 = vunpack.c.h.b16 %v68
  %v384 = vunpack.c.l.b16 %v69
  %v385 = vunpack.c.h.b16 %v69
  %v386 = vunpack.c.l.b16 %v70
  %v387 = vunpack.c.h.b16 %v70
  %v388 = vunpack.c.l.b16 %v71
  %v389 = vunpack.c.h.b16 %v71
  %v390 = vunpack.c.l.b16 %v72
  %v391 = vunpack.c.h.b16 %v72
  %v392 = vunpack.c.l.b16 %v73
  %v393 = vunpack.c.h.b16 %v73
  %v394 = vunpack.c.l.b16 %v74
  %v395 = vunpack.c.h.b16 %v74
  %v396 = vunpack.c.l.b16 %v75
  %v397 = vunpack.c.h.b16 %v75
  %v398 = vunpack.c.l.b16 %v76
  %v399 = vunpack.c.h.b16 %v76
  %v400 = vunpack.c.l.b16 %v77
  %v401 = vunpack.c.h.b16 %v77
  %v402 = vunpack.c.l.b16 %v78
  %v403 = vunpack.c.h.b16 %v78
  %v404 = vunpack.c.l.b16 %v79
  %v405 = vunpack.c.h.b16 %v79
  %v406 = vunpack.c.l.b16 %v80
  %v407 = vunpack.c.h.b16 %v80
  %v408 = vunpack.c.l.b16 %v81
  %v409 = vunpack.c.h.b16 %v81
  %v410 = vunpack.c.l.b16 %v82
  %v411 = vunpack.c.h.b16 %v82
  %v412 = vunpack.c.l.b16 %v83
  %v413 = vunpack.c.h.b16 %v83
  %v414 = vunpack.c.l.b16 %v84
  %v415 = vunpack.c.h.b16 %v84
  %v416 = vunpack.c.l.b16 %v85
  %v417 = vunpack.c.h.b16 %v85
  %v418 = vunpack.c.l.b16 %v86
  %v419 = vunpack.c.h.b16 %v86
  %v420 = vunpack.c.l.b16 %v87
  %v421 = vunpack.c.h.b16 %v87
  %v422 = vunpack.c.l.b16 %v88
  %v423 = vunpack.c.h.b16 %v88
  %v424 = vunpack.c.l.b16 %v89
  %v425 = vunpack.c.h.b16 %v89
  %v426 = vunpack.c.l.b16 %v90
  %v427 = vunpack.c.h.b16 %v90
  %v428 = vunpack.c.l.b16 %v91
  %v429 = vunpack.c.h.b16 %v91
  %v430 = vunpack.c.l.b16 %v92
  %v431 = vunpack.c.h.b16 %v92
  %v432 = vunpack.c.l.b16 %v93
  %v433 = vunpack.c.h.b16 %v93
  %v434 = vunpack.c.l.b16 %v94
  %v435 = vunpack.c.h.b16 %v94
  %v436 = vunpack.c.l.b16 %v95
  %v437 = vunpack.c.h.b16 %v95
  %v438 = vunpack.c.l.b16 %v96
  %v439 = vunpack.c.h.b16 %v96
  %v440 = vunpack.c.l.b16 %v97
  %v441 = vunpack.c.h.b16 %v97
  %v442 = vunpack.c.l.b16 %v98
  %v443 = vunpack.c.h.b16 %v98
  %v444 = vunpack.c.l.b16 %v99
  %v445 = vunpack.c.h.b16 %v99
  %v446 = vunpack.c.l.b16 %v100
  %v447 = vunpack.c.h.b16 %v100
  %v448 = vunpack.c.l.b16 %v101
  %v449 = vunpack.c.h.b16 %v101
  %v450 = vunpack.c.l.b16 %v102
  %v451 = vunpack.c.h.b16 %v102
  %v452 = vunpack.c.l.b16 %v103
  %v453 = vunpack.c.h.b16 %v103
  %v454 = vunpack.c.l.b16 %v104
  %v455 = vunpack.c.h.b16 %v104
  %v456 = vunpack.c.l.b16 %v105
  %v457 = vunpack.c.h.b16 %v105
  %v458 = vunpack.c.l.b16 %v106
  %v459 = vunpack.c.h.b16 %v106
  %v460 = vunpack.c.l.b16 %v107
  %v461 = vunpack.c.h.b16 %v107
  %v462 = vunpack.c.l.b16 %v108
  %v463 = vunpack.c.h.b16 %v108
  %v464 = vunpack.c.l.b16 %v109
  %v465 = vunpack.c.h.b16 %v109
  %v466 = vunpack.c.l.b16 %v110
  %v467 = vunpack.c.h.b16 %v110
  %v468 = vunpack.c.l.b16 %v111
  %v469 = vunpack.c.h.b16 %v111
  %v470 = vunpack.c.l.b16 %v112
  %v471 = vunpack.c.h.b16 %v112
  %v472 = vunpack.c.l.b16 %v113
  %v473 = vunpack.c.h.b16 %v113
  %v474 = vunpack.c.l.b16 %v114
  %v475 = vunpack.c.h.b16 %v114
  %v476 = vunpack.c.l.b16 %v115
  %v477 = vunpack.c.h.b16 %v115
  %v478 = vunpack.c.l.b16 %v116
  %v479 = vunpack.c.h.b16 %v116
  %v480 = vunpack.c.l.b16 %v117
  %v481 = vunpack.c.h.b16 %v117
  %v482 = vunpack.c.l.b16 %v118
  %v483 = vunpack.c.h.b16 %v118
  %v484 = vunpack.c.l.b16 %v119
  %v485 = vunpack.c.h.b16 %v119
  %v486 = vunpack.c.l.b16 %v120
  %v487 = vunpack.c.h.b16 %v120
  %v488 = vunpack.c.l.b16 %v121
  %v489 = vunpack.c.h.b16 %v121
  %v490 = vunpack.c.l.b16 %v122
  %v491 = vunpack.c.h.b16 %v122
  %v492 = vunpack.c.l.b16 %v123
  %v493 = vunpack.c.h.b16 %v123
  %v494 = vunpack.c.l.b16 %v124
  %v495 = vunpack.c.h.b16 %v124
  %v496 = vunpack.c.l.b16 %v125
  %v497 = vunpack.c.h.b16 %v125
  %v498 = vunpack.c.l.b16 %v126
  %v499 = vunpack.c.h.b16 %v126
  %v500 = vunpack.c.l.b16 %v127
  %v501 = vunpack.c.h.b16 %v127
  %v502 = vunpack.c.l.b16 %v128
  %v503 = vunpack.c.h.b16 %v128
  %v504 = vunpack.c.l.b16 %v129
  %v505 = vunpack.c.h.b16 %v129
  %v506 = vunpack.c.l.b16 %v130
  %v507 = vunpack.c.h.b16 %v130
  %v508 = vunpack.c.l.b16 %v131
  %v509 = vunpack.c.h.b16 %v131
  %v510 = vunpack.c.l.b16 %v132
  %v511 = vunpack.c.h.b16 %v132
  %v512 = vunpack.c.l.b16 %v133
  %v513 = vunpack.c.h.b16 %v133
  %v514 = vunpack.c.l.b16 %v134
  %v515 = vunpack.c.h.b16 %v134
  %v516 = vunpack.c.l.b16 %v135
  %v517 = vunpack.c.h.b16 %v135
  %v518 = vunpack.c.l.b16 %v136
  %v519 = vunpack.c.h.b16 %v136
  %v520 = vunpack.c.l.b16 %v137
  %v521 = vunpack.c.h.b16 %v137
  %v522 = vunpack.c.l.b16 %v138
  %v523 = vunpack.c.h.b16 %v138
  %v524 = vunpack.c.l.b16 %v139
  %v525 = vunpack.c.h.b16 %v139
  %v526 = vunpack.c.l.b16 %v140
  %v527 = vunpack.c.h.b16 %v140
  %v528 = vunpack.c.l.b16 %v141
  %v529 = vunpack.c.h.b16 %v141
  %v530 = vunpack.c.l.b16 %v142
  %v531 = vunpack.c.h.b16 %v142
  %v532 = vunpack.c.l.b16 %v143
  %v533 = vunpack.c.h.b16 %v143
  %v534 = vpack.c.b16 %v294, %v278
  %v535 = vpack.c.b16 %v295, %v279
  %v536 = vpack.c.b16 %v296, %v280
  %v537 = vpack.c.b16 %v297, %v281
  %v538 = vpack.c.b16 %v298, %v282
  %v539 = vpack.c.b16 %v299, %v283
  %v540 = vpack.c.b16 %v300, %v284
  %v541 = vpack.c.b16 %v301, %v285
  %v542 = vpack.c.b16 %v302, %v286
  %v543 = vpack.c.b16 %v303, %v287
  %v544 = vpack.c.b16 %v304, %v288
  %v545 = vpack.c.b16 %v305, %v289
  %v546 = vpack.c.b16 %v306, %v290
  %v547 = vpack.c.b16 %v307, %v291
  %v548 = vpack.c.b16 %v308, %v292
  %v549 = vpack.c.b16 %v309, %v293
  %v550 = vpack.c.b16 %v326, %v310
  %v551 = vpack.c.b16 %v327, %v311
  %v552 = vpack.c.b16 %v328, %v312
  %v553 = vpack.c.b16 %v329, %v313
  %v554 = vpack.c.b16 %v330, %v314
  %v555 = vpack.c.b16 %v331, %v315
  %v556 = vpack.c.b16 %v332, %v316
  %v557 = vpack.c.b16 %v333, %v317
  %v558 = vpack.c.b16 %v334, %v318
  %v559 = vpack.c.b16 %v335, %v319
  %v560 = vpack.c.b16 %v336, %v320
  %v561 = vpack.c.b16 %v337, %v321
  %v562 = vpack.c.b16 %v338, %v322
  %v563 = vpack.c.b16 %v339, %v323
  %v564 = vpack.c.b16 %v340, %v324
  %v565 = vpack.c.b16 %v341, %v325
  %v566 = vpack.c.b16 %v358, %v342
  %v567 = vpack.c.b16 %v359, %v343
  %v568 = vpack.c.b16 %v360, %v344
  %v569 = vpack.c.b16 %v361, %v345
  %v570 = vpack.c.b16 %v362, %v346
  %v571 = vpack.c.b16 %v363, %v347
  %v572 = vpack.c.b16 %v364, %v348
  %v573 = vpack.c.b16 %v365, %v349
  %v574 = vpack.c.b16 %v366, %v350
  %v575 = vpack.c.b16 %v367, %v351
  %v576 = vpack.c.b16 %v368, %v352
  %v577 = vpack.c.b16 %v369, %v353
  %v578 = vpack.c.b16 %v370, %v354
  %v579 = vpack.c.b16 %v371, %v355
  %v580 = vpack.c.b16 %v372, %v356
  %v581 = vpack.c.b16 %v373, %v357
  %v582 = vpack.c.b16 %v390, %v374
  %v583 = vpack.c.b16 %v391, %v375
  %v584 = vpack.c.b16 %v392, %v376
  %v585 = vpack.c.b16 %v393, %v377
  %v586 = vpack.c.b16 %v394, %v378
  %v587 = vpack.c.b16 %v395, %v379
  %v588 = vpack.c.b16 %v396, %v380
  %v589 = vpack.c.b16 %v397, %v381
  %v590 = vpack.c.b16 %v398, %v382
  %v591 = vpack.c.b16 %v399, %v383
  %v592 = vpack.c.b16 %v400, %v384
  %v593 = vpack.c.b16 %v401, %v385
  %v594 = vpack.c.b16 %v402, %v386
  %v595 = vpack.c.b16 %v403, %v387
  %v596 = vpack.c.b16 %v404, %v388
  %v597 = vpack.c.b16 %v405, %v389
  %v598 = vpack.c.b16 %v422, %v406
  %v599 = vpack.c.b16 %v423, %v407
  %v600 = vpack.c.b16 %v424, %v408
  %v601 = vpack.c.b16 %v425, %v409
  %v602 = vpack.c.b16 %v426, %v410
  %v603 = vpack.c.b16 %v427, %v411
  %v604 = vpack.c.b16 %v428, %v412
  %v605 = vpack.c.b16 %v429, %v413
  %v606 = vpack.c.b16 %v430, %v414
  %v607 = vpack.c.b16 %v431, %v415
  %v608 = vpack.c.b16 %v432, %v416
  %v609 = vpack.c.b16 %v433, %v417
  %v610 = vpack.c.b16 %v434, %v418
  %v611 = vpack.c.b16 %v435, %v419
  %v612 = vpack.c.b16 %v436, %v420
  %v613 = vpack.c.b16 %v437, %v421
  %v614 = vpack.c.b16 %v454, %v438
  %v615 = vpack.c.b16 %v455, %v439
  %v616 = vpack.c.b16 %v456, %v440
  %v617 = vpack.c.b16 %v457, %v441
  %v618 = vpack.c.b16 %v458, %v442
  %v619 = vpack.c.b16 %v459, %v443
  %v620 = vpack.c.b16 %v460, %v444
  %v621 = vpack.c.b16 %v461, %v445
  %v622 = vpack.c.b16 %v462, %v446
  %v623 = vpack.c.b16 %v463, %v447
  %v624 = vpack.c.b16 %v464, %v448
  %v625 = vpack.c.b16 %v465, %v449
  %v626 = vpack.c.b16 %v466, %v450
  %v627 = vpack.c.b16 %v467, %v451
  %v628 = vpack.c.b16 %v468, %v452
  %v629 = vpack.c.b16 %v469, %v453
  %v630 = vpack.c.b16 %v486, %v470
  %v631 = vpack.c.b16 %v487, %v471
  %v632 = vpack.c.b16 %v488, %v472
  %v633 = vpack.c.b16 %v489, %v473
  %v634 = vpack.c.b16 %v490, %v474
  %v635 = vpack.c.b16 %v491, %v475
  %v636 = vpack.c.b16 %v492, %v476
  %v637 = vpack.c.b16 %v493, %v477
  %v638 = vpack.c.b16 %v494, %v478
  %v639 = vpack.c.b16 %v495, %v479
  %v640 = vpack.c.b16 %v496, %v480
  %v641 = vpack.c.b16 %v497, %v481
  %v642 = vpack.c.b16 %v498, %v482
  %v643 = vpack.c.b16 %v499, %v483
  %v644 = vpack.c.b16 %v500, %v484
  %v645 = vpack.c.b16 %v501, %v485
  %v646 = vpack.c.b16 %v518, %v502
  %v647 = vpack.c.b16 %v519, %v503
  %v648 = vpack.c.b16 %v520, %v504
  %v649 = vpack.c.b16 %v521, %v505
  %v650 = vpack.c.b16 %v522, %v506
  %v651 = vpack.c.b16 %v523, %v507
  %v652 = vpack.c.b16 %v524, %v508
  %v653 = vpack.c.b16 %v525, %v509
  %v654 = vpack.c.b16 %v526, %v510
  %v655 = vpack.c.b16 %v527, %v511
  %v656 = vpack.c.b16 %v528, %v512
  %v657 = vpack.c.b16 %v529, %v513
  %v658 = vpack.c.b16 %v530, %v514
  %v659 = vpack.c.b16 %v531, %v515
  %v660 = vpack.c.b16 %v532, %v516
  %v661 = vpack.c.b16 %v533, %v517
  %790 = vmatpush.bf16.msra.mxu0 %v646
  %791 = vmatpush.bf16.msra.mxu0 %v630
  %792 = vmatpush.bf16.msra.mxu0 %v614
  %793 = vmatpush.bf16.msra.mxu0 %v598
  %794 = vmatpush.bf16.msra.mxu0 %v582
  %795 = vmatpush.bf16.msra.mxu0 %v566
  %796 = vmatpush.bf16.msra.mxu0 %v550
  %797 = vmatpush.bf16.msra.mxu0 %v534
  %798 = vmatmul.bf16.gmra.mxu0 %v148
  %v799 = vpop.f32.mrf.mxu0
  %v800 = vadd.f32 0.0, %v799
  %v801 = vpop.f32.mrf.mxu0
  %v802 = vadd.f32 0.0, %v801
  %803 = vdwg.mxu0
  %804 = vmatpush.bf16.msra.mxu0 %v647
  %805 = vmatpush.bf16.msra.mxu0 %v631
  %806 = vmatpush.bf16.msra.mxu0 %v615
  %807 = vmatpush.bf16.msra.mxu0 %v599
  %808 = vmatpush.bf16.msra.mxu0 %v583
  %809 = vmatpush.bf16.msra.mxu0 %v567
  %810 = vmatpush.bf16.msra.mxu0 %v551
  %811 = vmatpush.bf16.msra.mxu0 %v535
  %812 = vmatmul.bf16.gmra.mxu0 %v148
  %v813 = vpop.f32.mrf.mxu0
  %v814 = vadd.f32 0.0, %v813
  %v815 = vpop.f32.mrf.mxu0
  %v816 = vadd.f32 0.0, %v815
  %817 = vdwg.mxu0
  %818 = vmatpush.bf16.msra.mxu0 %v648
  %819 = vmatpush.bf16.msra.mxu0 %v632
  %820 = vmatpush.bf16.msra.mxu0 %v616
  %821 = vmatpush.bf16.msra.mxu0 %v600
  %822 = vmatpush.bf16.msra.mxu0 %v584
  %823 = vmatpush.bf16.msra.mxu0 %v568
  %824 = vmatpush.bf16.msra.mxu0 %v552
  %825 = vmatpush.bf16.msra.mxu0 %v536
  %826 = vmatmul.bf16.gmra.mxu0 %v148
  %v827 = vpop.f32.mrf.mxu0
  %v828 = vadd.f32 0.0, %v827
  %v829 = vpop.f32.mrf.mxu0
  %v830 = vadd.f32 0.0, %v829
  %831 = vdwg.mxu0
  %832 = vmatpush.bf16.msra.mxu0 %v649
  %833 = vmatpush.bf16.msra.mxu0 %v633
  %834 = vmatpush.bf16.msra.mxu0 %v617
  %835 = vmatpush.bf16.msra.mxu0 %v601
  %836 = vmatpush.bf16.msra.mxu0 %v585
  %837 = vmatpush.bf16.msra.mxu0 %v569
  %838 = vmatpush.bf16.msra.mxu0 %v553
  %839 = vmatpush.bf16.msra.mxu0 %v537
  %840 = vmatmul.bf16.gmra.mxu0 %v148
  %v841 = vpop.f32.mrf.mxu0
  %v842 = vadd.f32 0.0, %v841
  %v843 = vpop.f32.mrf.mxu0
  %v844 = vadd.f32 0.0, %v843
  %845 = vdwg.mxu0
  %846 = vmatpush.bf16.msra.mxu0 %v650
  %847 = vmatpush.bf16.msra.mxu0 %v634
  %848 = vmatpush.bf16.msra.mxu0 %v618
  %849 = vmatpush.bf16.msra.mxu0 %v602
  %850 = vmatpush.bf16.msra.mxu0 %v586
  %851 = vmatpush.bf16.msra.mxu0 %v570
  %852 = vmatpush.bf16.msra.mxu0 %v554
  %853 = vmatpush.bf16.msra.mxu0 %v538
  %854 = vmatmul.bf16.gmra.mxu0 %v148
  %v855 = vpop.f32.mrf.mxu0
  %v856 = vadd.f32 0.0, %v855
  %v857 = vpop.f32.mrf.mxu0
  %v858 = vadd.f32 0.0, %v857
  %859 = vdwg.mxu0
  %860 = vmatpush.bf16.msra.mxu0 %v651
  %861 = vmatpush.bf16.msra.mxu0 %v635
  %862 = vmatpush.bf16.msra.mxu0 %v619
  %863 = vmatpush.bf16.msra.mxu0 %v603
  %864 = vmatpush.bf16.msra.mxu0 %v587
  %865 = vmatpush.bf16.msra.mxu0 %v571
  %866 = vmatpush.bf16.msra.mxu0 %v555
  %867 = vmatpush.bf16.msra.mxu0 %v539
  %868 = vmatmul.bf16.gmra.mxu0 %v148
  %v869 = vpop.f32.mrf.mxu0
  %v870 = vadd.f32 0.0, %v869
  %v871 = vpop.f32.mrf.mxu0
  %v872 = vadd.f32 0.0, %v871
  %873 = vdwg.mxu0
  %874 = vmatpush.bf16.msra.mxu0 %v652
  %875 = vmatpush.bf16.msra.mxu0 %v636
  %876 = vmatpush.bf16.msra.mxu0 %v620
  %877 = vmatpush.bf16.msra.mxu0 %v604
  %878 = vmatpush.bf16.msra.mxu0 %v588
  %879 = vmatpush.bf16.msra.mxu0 %v572
  %880 = vmatpush.bf16.msra.mxu0 %v556
  %881 = vmatpush.bf16.msra.mxu0 %v540
  %882 = vmatmul.bf16.gmra.mxu0 %v148
  %v883 = vpop.f32.mrf.mxu0
  %v884 = vadd.f32 0.0, %v883
  %v885 = vpop.f32.mrf.mxu0
  %v886 = vadd.f32 0.0, %v885
  %887 = vdwg.mxu0
  %888 = vmatpush.bf16.msra.mxu0 %v653
  %889 = vmatpush.bf16.msra.mxu0 %v637
  %890 = vmatpush.bf16.msra.mxu0 %v621
  %891 = vmatpush.bf16.msra.mxu0 %v605
  %892 = vmatpush.bf16.msra.mxu0 %v589
  %893 = vmatpush.bf16.msra.mxu0 %v573
  %894 = vmatpush.bf16.msra.mxu0 %v557
  %895 = vmatpush.bf16.msra.mxu0 %v541
  %896 = vmatmul.bf16.gmra.mxu0 %v148
  %v897 = vpop.f32.mrf.mxu0
  %v898 = vadd.f32 0.0, %v897
  %v899 = vpop.f32.mrf.mxu0
  %v900 = vadd.f32 0.0, %v899
  %901 = vdwg.mxu0
  %902 = vmatpush.bf16.msra.mxu0 %v654
  %903 = vmatpush.bf16.msra.mxu0 %v638
  %904 = vmatpush.bf16.msra.mxu0 %v622
  %905 = vmatpush.bf16.msra.mxu0 %v606
  %906 = vmatpush.bf16.msra.mxu0 %v590
  %907 = vmatpush.bf16.msra.mxu0 %v574
  %908 = vmatpush.bf16.msra.mxu0 %v558
  %909 = vmatpush.bf16.msra.mxu0 %v542
  %910 = vmatmul.bf16.gmra.mxu0 %v148
  %v911 = vpop.f32.mrf.mxu0
  %v912 = vadd.f32 0.0, %v911
  %v913 = vpop.f32.mrf.mxu0
  %v914 = vadd.f32 0.0, %v913
  %915 = vdwg.mxu0
  %916 = vmatpush.bf16.msra.mxu0 %v655
  %917 = vmatpush.bf16.msra.mxu0 %v639
  %918 = vmatpush.bf16.msra.mxu0 %v623
  %919 = vmatpush.bf16.msra.mxu0 %v607
  %920 = vmatpush.bf16.msra.mxu0 %v591
  %921 = vmatpush.bf16.msra.mxu0 %v575
  %922 = vmatpush.bf16.msra.mxu0 %v559
  %923 = vmatpush.bf16.msra.mxu0 %v543
  %924 = vmatmul.bf16.gmra.mxu0 %v148
  %v925 = vpop.f32.mrf.mxu0
  %v926 = vadd.f32 0.0, %v925
  %v927 = vpop.f32.mrf.mxu0
  %v928 = vadd.f32 0.0, %v927
  %929 = vdwg.mxu0
  %930 = vmatpush.bf16.msra.mxu0 %v656
  %931 = vmatpush.bf16.msra.mxu0 %v640
  %932 = vmatpush.bf16.msra.mxu0 %v624
  %933 = vmatpush.bf16.msra.mxu0 %v608
  %934 = vmatpush.bf16.msra.mxu0 %v592
  %935 = vmatpush.bf16.msra.mxu0 %v576
  %936 = vmatpush.bf16.msra.mxu0 %v560
  %937 = vmatpush.bf16.msra.mxu0 %v544
  %938 = vmatmul.bf16.gmra.mxu0 %v148
  %v939 = vpop.f32.mrf.mxu0
  %v940 = vadd.f32 0.0, %v939
  %v941 = vpop.f32.mrf.mxu0
  %v942 = vadd.f32 0.0, %v941
  %943 = vdwg.mxu0
  %944 = vmatpush.bf16.msra.mxu0 %v657
  %945 = vmatpush.bf16.msra.mxu0 %v641
  %946 = vmatpush.bf16.msra.mxu0 %v625
  %947 = vmatpush.bf16.msra.mxu0 %v609
  %948 = vmatpush.bf16.msra.mxu0 %v593
  %949 = vmatpush.bf16.msra.mxu0 %v577
  %950 = vmatpush.bf16.msra.mxu0 %v561
  %951 = vmatpush.bf16.msra.mxu0 %v545
  %952 = vmatmul.bf16.gmra.mxu0 %v148
  %v953 = vpop.f32.mrf.mxu0
  %v954 = vadd.f32 0.0, %v953
  %v955 = vpop.f32.mrf.mxu0
  %v956 = vadd.f32 0.0, %v955
  %957 = vdwg.mxu0
  %958 = vmatpush.bf16.msra.mxu0 %v658
  %959 = vmatpush.bf16.msra.mxu0 %v642
  %960 = vmatpush.bf16.msra.mxu0 %v626
  %961 = vmatpush.bf16.msra.mxu0 %v610
  %962 = vmatpush.bf16.msra.mxu0 %v594
  %963 = vmatpush.bf16.msra.mxu0 %v578
  %964 = vmatpush.bf16.msra.mxu0 %v562
  %965 = vmatpush.bf16.msra.mxu0 %v546
  %966 = vmatmul.bf16.gmra.mxu0 %v148
  %v967 = vpop.f32.mrf.mxu0
  %v968 = vadd.f32 0.0, %v967
  %v969 = vpop.f32.mrf.mxu0
  %v970 = vadd.f32 0.0, %v969
  %971 = vdwg.mxu0
  %972 = vmatpush.bf16.msra.mxu0 %v659
  %973 = vmatpush.bf16.msra.mxu0 %v643
  %974 = vmatpush.bf16.msra.mxu0 %v627
  %975 = vmatpush.bf16.msra.mxu0 %v611
  %976 = vmatpush.bf16.msra.mxu0 %v595
  %977 = vmatpush.bf16.msra.mxu0 %v579
  %978 = vmatpush.bf16.msra.mxu0 %v563
  %979 = vmatpush.bf16.msra.mxu0 %v547
  %980 = vmatmul.bf16.gmra.mxu0 %v148
  %v981 = vpop.f32.mrf.mxu0
  %v982 = vadd.f32 0.0, %v981
  %v983 = vpop.f32.mrf.mxu0
  %v984 = vadd.f32 0.0, %v983
  %985 = vdwg.mxu0
  %986 = vmatpush.bf16.msra.mxu0 %v660
  %987 = vmatpush.bf16.msra.mxu0 %v644
  %988 = vmatpush.bf16.msra.mxu0 %v628
  %989 = vmatpush.bf16.msra.mxu0 %v612
  %990 = vmatpush.bf16.msra.mxu0 %v596
  %991 = vmatpush.bf16.msra.mxu0 %v580
  %992 = vmatpush.bf16.msra.mxu0 %v564
  %993 = vmatpush.bf16.msra.mxu0 %v548
  %994 = vmatmul.bf16.gmra.mxu0 %v148
  %v995 = vpop.f32.mrf.mxu0
  %v996 = vadd.f32 0.0, %v995
  %v997 = vpop.f32.mrf.mxu0
  %v998 = vadd.f32 0.0, %v997
  %999 = vdwg.mxu0
  %1000 = vmatpush.bf16.msra.mxu0 %v661
  %1001 = vmatpush.bf16.msra.mxu0 %v645
  %1002 = vmatpush.bf16.msra.mxu0 %v629
  %1003 = vmatpush.bf16.msra.mxu0 %v613
  %1004 = vmatpush.bf16.msra.mxu0 %v597
  %1005 = vmatpush.bf16.msra.mxu0 %v581
  %1006 = vmatpush.bf16.msra.mxu0 %v565
  %1007 = vmatpush.bf16.msra.mxu0 %v549
  %1008 = vmatmul.bf16.gmra.mxu0 %v148
  %v1009 = vpop.f32.mrf.mxu0
  %v1010 = vadd.f32 0.0, %v1009
  %v1011 = vpop.f32.mrf.mxu0
  %v1012 = vadd.f32 0.0, %v1011
  %1013 = vdwg.mxu0
  %v1014 = vmax.f32 %v800, %v856
  %v1015 = vmax.f32 %v814, %v870
  %v1016 = vmax.f32 %v828, %v884
  %v1017 = vmax.f32 %v842, %v898
  %v1018 = vmax.f32 %v802, %v858
  %v1019 = vmax.f32 %v816, %v872
  %v1020 = vmax.f32 %v830, %v886
  %v1021 = vmax.f32 %v844, %v900
  %v1022 = vmax.f32 %v912, %v968
  %v1023 = vmax.f32 %v926, %v982
  %v1024 = vmax.f32 %v940, %v996
  %v1025 = vmax.f32 %v954, %v1010
  %v1026 = vmax.f32 %v914, %v970
  %v1027 = vmax.f32 %v928, %v984
  %v1028 = vmax.f32 %v942, %v998
  %v1029 = vmax.f32 %v956, %v1012
  %v1030 = vmax.f32 %v1014, %v1022
  %v1031 = vmax.f32 %v1015, %v1023
  %v1032 = vmax.f32 %v1016, %v1024
  %v1033 = vmax.f32 %v1017, %v1025
  %v1034 = vmax.f32 %v1018, %v1026
  %v1035 = vmax.f32 %v1019, %v1027
  %v1036 = vmax.f32 %v1020, %v1028
  %v1037 = vmax.f32 %v1021, %v1029
  %v1038 = vld [vmem:[%s2] sm:$0xff]
  %v1039 = vld [vmem:[%s2 + $0x8] sm:$0xff]
  %1041 = vset.pattern.permute.xlu0 0
  %1042 = vperm.xlu0 %1041, %v1038
  %v1043 = vpop.permute.xlu0 %1042
  %1046 = vset.pattern.permute.xlu0 0
  %1047 = vperm.xlu0 %1046, %v1039
  %v1048 = vpop.permute.xlu0 %1047
  %v1050 = vadd.f32 %v1030, %v1043
  %v1051 = vadd.f32 %v1031, %v1043
  %v1052 = vadd.f32 %v1032, %v1043
  %v1053 = vadd.f32 %v1033, %v1043
  %v1054 = vadd.f32 %v1034, %v1048
  %v1055 = vadd.f32 %v1035, %v1048
  %v1056 = vadd.f32 %v1036, %v1048
  %v1057 = vadd.f32 %v1037, %v1048
  %v1058 = vmax.f32 %v1050, 0.0
  %v1059 = vmax.f32 %v1051, 0.0
  %v1060 = vmax.f32 %v1052, 0.0
  %v1061 = vmax.f32 %v1053, 0.0
  %v1062 = vmax.f32 %v1054, 0.0
  %v1063 = vmax.f32 %v1055, 0.0
  %v1064 = vmax.f32 %v1056, 0.0
  %v1065 = vmax.f32 %v1057, 0.0
  %v1066 = vpack.c.bf16 %v1059, %v1058
  %v1067 = vpack.c.bf16 %v1061, %v1060
  %v1068 = vpack.c.bf16 %v1063, %v1062
  %v1069 = vpack.c.bf16 %v1065, %v1064
  %1070 = vst [vmem:[%s3] sm:$0xff] %v1066
  %1071 = vst [vmem:[%s3 + $0x8] sm:$0xff] %v1067
  %1072 = vst [vmem:[%s3 + $0x10] sm:$0xff] %v1068
  %1073 = vst [vmem:[%s3 + $0x18] sm:$0xff] %v1069
  // Predicated region
  $region14: #{conv2dnet_forward.2} parent=0 // pred_check
    _
  $region15: #{conv2dnet_forward.2} parent=0 // pred_check_branch
    %1075 = sbr.rel (0) target = $region17
  $region16: #{conv2dnet_forward.2} parent=0 // pred_region
    _
  $region17: #{conv2dnet_forward.2} parent=0 // pred_fallthru
    _
  // Predicated region
  $region18: #{conv2dnet_forward.2} parent=0 // pred_check
    _
  $region19: #{conv2dnet_forward.2} parent=0 // pred_check_branch
    %1077 = sbr.rel (0) target = $region21
  $region20: #{conv2dnet_forward.2} parent=0 // pred_region
    _
  $region21: #{conv2dnet_forward.2} parent=0 // pred_fallthru
    _

// kernel: conv2dnet_forward.3
$region0: #{conv2dnet_forward.3}
  #allocation0 [shape = 'u32[]', space=smem, size = 0x4, offset = 0x4, fixed_abs, tag = 'smem constant byte address 0x4 - core index']
  #allocation1 [shape = 'u32[72,128]{1,0:T(1,128)}', space=vmem, size = 0x9000, scoped, tag = 'internal scratch']
  %s0 = inlined_call_operand.vmem [shape: bf16[256,1024], index: 0, kind: input, shape index: {}]
  %s1 = inlined_call_operand.vmem [shape: bf16[16,256], index: 1, kind: input, shape index: {}]
  %s2 = inlined_call_operand.vmem [shape: f32[16,1], index: 2, kind: input, shape index: {}]
  %s3 = inlined_call_operand.vmem [shape: bf16[16,128,128], index: 3, kind: input, shape index: {}]
  %s4 = inlined_call_operand.vmem [shape: f32[1,128], index: 4, kind: input, shape index: {}]
  %s5 = inlined_call_operand.vmem [shape: bf16[128,128], index: 5, kind: input, shape index: {}]
  %s6 = inlined_call_operand.vmem [shape: f32[1,128], index: 6, kind: input, shape index: {}]
  %s7 = inlined_call_operand.vmem [shape: bf16[128,128], index: 7, kind: input, shape index: {}]
  %s8 = inlined_call_operand.vmem [shape: f32[1,128], index: 8, kind: input, shape index: {}]
  %s9 = inlined_call_operand.hbm [shape: f32[2,128], index: 9, kind: output, shape index: {}]
  %s10 = sld [smem:[#allocation0]]
  $region46: #{conv2dnet_forward.3} parent=0
    _
  %s12 = ssub.s32 1, %s10
  %s13 = scalar_select 0, %s12, %s10
  $region1: #{conv2dnet_forward.3} parent=0
    #allocation2 [shape = 'u8[1024]{0}', space=vmem, size = 0x400, scoped, tag = 'output window, operand 0, single buffered']
    #allocation3 [shape = 's32[1]{0}', space=sflag, size = 0x4, scoped, tag = 'scoped memory for conv2dnet_forward.3']
    %14 = vsyncpa [#allocation3], 0
    // Predicated region
    $region2: #{conv2dnet_forward.3} parent=1 // pred_check
      _
    $region3: #{conv2dnet_forward.3} parent=1 // pred_check_branch
      %16 = sbr.rel (0) target = $region5
    $region4: #{conv2dnet_forward.3} parent=1 // pred_region
      _
    $region5: #{conv2dnet_forward.3} parent=1 // pred_fallthru
      _
    // Predicated region
    $region6: #{conv2dnet_forward.3} parent=1 // pred_check
      _
    $region7: #{conv2dnet_forward.3} parent=1 // pred_check_branch
      %18 = sbr.rel (0) target = $region9
    $region8: #{conv2dnet_forward.3} parent=1 // pred_region
      _
    $region9: #{conv2dnet_forward.3} parent=1 // pred_fallthru
      _
    // Predicated region
    $region10: #{conv2dnet_forward.3} parent=1 // pred_check
      _
    $region11: #{conv2dnet_forward.3} parent=1 // pred_check_branch
      %20 = sbr.rel (0) target = $region13
    $region12: #{conv2dnet_forward.3} parent=1 // pred_region
      _
    $region13: #{conv2dnet_forward.3} parent=1 // pred_fallthru
      _
    // Predicated region
    $region14: #{conv2dnet_forward.3} parent=1 // pred_check
      _
    $region15: #{conv2dnet_forward.3} parent=1 // pred_check_branch
      %22 = sbr.rel (0) target = $region17
    $region16: #{conv2dnet_forward.3} parent=1 // pred_region
      _
    $region17: #{conv2dnet_forward.3} parent=1 // pred_fallthru
      _
    // Predicated region
    $region18: #{conv2dnet_forward.3} parent=1 // pred_check
      _
    $region19: #{conv2dnet_forward.3} parent=1 // pred_check_branch
      %24 = sbr.rel (0) target = $region21
    $region20: #{conv2dnet_forward.3} parent=1 // pred_region
      _
    $region21: #{conv2dnet_forward.3} parent=1 // pred_fallthru
      _
    // Predicated region
    $region22: #{conv2dnet_forward.3} parent=1 // pred_check
      _
    $region23: #{conv2dnet_forward.3} parent=1 // pred_check_branch
      %26 = sbr.rel (0) target = $region25
    $region24: #{conv2dnet_forward.3} parent=1 // pred_region
      _
    $region25: #{conv2dnet_forward.3} parent=1 // pred_fallthru
      _
    // Predicated region
    $region26: #{conv2dnet_forward.3} parent=1 // pred_check
      _
    $region27: #{conv2dnet_forward.3} parent=1 // pred_check_branch
      %28 = sbr.rel (0) target = $region29
    $region28: #{conv2dnet_forward.3} parent=1 // pred_region
      _
    $region29: #{conv2dnet_forward.3} parent=1 // pred_fallthru
      _
    // Predicated region
    $region30: #{conv2dnet_forward.3} parent=1 // pred_check
      _
    $region31: #{conv2dnet_forward.3} parent=1 // pred_check_branch
      %30 = sbr.rel (0) target = $region33
    $region32: #{conv2dnet_forward.3} parent=1 // pred_region
      _
    $region33: #{conv2dnet_forward.3} parent=1 // pred_fallthru
      _
    // Predicated region
    $region34: #{conv2dnet_forward.3} parent=1 // pred_check
      _
    $region35: #{conv2dnet_forward.3} parent=1 // pred_check_branch
      %32 = sbr.rel (0) target = $region37
    $region36: #{conv2dnet_forward.3} parent=1 // pred_region
      _
    $region37: #{conv2dnet_forward.3} parent=1 // pred_fallthru
      _
    %v33 = vld [vmem:[%s1] sm:$0xff]
    %v34 = vld [vmem:[%s1 + $0x8] sm:$0xff]
    %v35 = vld [vmem:[%s0] sm:$0xff]
    %v36 = vld [vmem:[%s0 + $0x8] sm:$0xff]
    %v37 = vld [vmem:[%s0 + $0x10] sm:$0xff]
    %v38 = vld [vmem:[%s0 + $0x18] sm:$0xff]
    %v39 = vld [vmem:[%s0 + $0x20] sm:$0xff]
    %v40 = vld [vmem:[%s0 + $0x28] sm:$0xff]
    %v41 = vld [vmem:[%s0 + $0x30] sm:$0xff]
    %v42 = vld [vmem:[%s0 + $0x38] sm:$0xff]
    %v43 = vld [vmem:[%s0 + $0x40] sm:$0xff]
    %v44 = vld [vmem:[%s0 + $0x48] sm:$0xff]
    %v45 = vld [vmem:[%s0 + $0x50] sm:$0xff]
    %v46 = vld [vmem:[%s0 + $0x58] sm:$0xff]
    %v47 = vld [vmem:[%s0 + $0x60] sm:$0xff]
    %v48 = vld [vmem:[%s0 + $0x68] sm:$0xff]
    %v49 = vld [vmem:[%s0 + $0x70] sm:$0xff]
    %v50 = vld [vmem:[%s0 + $0x78] sm:$0xff]
    %v51 = vld [vmem:[%s0 + $0x80] sm:$0xff]
    %v52 = vld [vmem:[%s0 + $0x88] sm:$0xff]
    %v53 = vld [vmem:[%s0 + $0x90] sm:$0xff]
    %v54 = vld [vmem:[%s0 + $0x98] sm:$0xff]
    %v55 = vld [vmem:[%s0 + $0xa0] sm:$0xff]
    %v56 = vld [vmem:[%s0 + $0xa8] sm:$0xff]
    %v57 = vld [vmem:[%s0 + $0xb0] sm:$0xff]
    %v58 = vld [vmem:[%s0 + $0xb8] sm:$0xff]
    %v59 = vld [vmem:[%s0 + $0xc0] sm:$0xff]
    %v60 = vld [vmem:[%s0 + $0xc8] sm:$0xff]
    %v61 = vld [vmem:[%s0 + $0xd0] sm:$0xff]
    %v62 = vld [vmem:[%s0 + $0xd8] sm:$0xff]
    %v63 = vld [vmem:[%s0 + $0xe0] sm:$0xff]
    %v64 = vld [vmem:[%s0 + $0xe8] sm:$0xff]
    %v65 = vld [vmem:[%s0 + $0xf0] sm:$0xff]
    %v66 = vld [vmem:[%s0 + $0xf8] sm:$0xff]
    %v67 = vld [vmem:[%s0 + $0x100] sm:$0xff]
    %v68 = vld [vmem:[%s0 + $0x108] sm:$0xff]
    %v69 = vld [vmem:[%s0 + $0x110] sm:$0xff]
    %v70 = vld [vmem:[%s0 + $0x118] sm:$0xff]
    %v71 = vld [vmem:[%s0 + $0x120] sm:$0xff]
    %v72 = vld [vmem:[%s0 + $0x128] sm:$0xff]
    %v73 = vld [vmem:[%s0 + $0x130] sm:$0xff]
    %v74 = vld [vmem:[%s0 + $0x138] sm:$0xff]
    %v75 = vld [vmem:[%s0 + $0x140] sm:$0xff]
    %v76 = vld [vmem:[%s0 + $0x148] sm:$0xff]
    %v77 = vld [vmem:[%s0 + $0x150] sm:$0xff]
    %v78 = vld [vmem:[%s0 + $0x158] sm:$0xff]
    %v79 = vld [vmem:[%s0 + $0x160] sm:$0xff]
    %v80 = vld [vmem:[%s0 + $0x168] sm:$0xff]
    %v81 = vld [vmem:[%s0 + $0x170] sm:$0xff]
    %v82 = vld [vmem:[%s0 + $0x178] sm:$0xff]
    %v83 = vld [vmem:[%s0 + $0x180] sm:$0xff]
    %v84 = vld [vmem:[%s0 + $0x188] sm:$0xff]
    %v85 = vld [vmem:[%s0 + $0x190] sm:$0xff]
    %v86 = vld [vmem:[%s0 + $0x198] sm:$0xff]
    %v87 = vld [vmem:[%s0 + $0x1a0] sm:$0xff]
    %v88 = vld [vmem:[%s0 + $0x1a8] sm:$0xff]
    %v89 = vld [vmem:[%s0 + $0x1b0] sm:$0xff]
    %v90 = vld [vmem:[%s0 + $0x1b8] sm:$0xff]
    %v91 = vld [vmem:[%s0 + $0x1c0] sm:$0xff]
    %v92 = vld [vmem:[%s0 + $0x1c8] sm:$0xff]
    %v93 = vld [vmem:[%s0 + $0x1d0] sm:$0xff]
    %v94 = vld [vmem:[%s0 + $0x1d8] sm:$0xff]
    %v95 = vld [vmem:[%s0 + $0x1e0] sm:$0xff]
    %v96 = vld [vmem:[%s0 + $0x1e8] sm:$0xff]
    %v97 = vld [vmem:[%s0 + $0x1f0] sm:$0xff]
    %v98 = vld [vmem:[%s0 + $0x1f8] sm:$0xff]
    %v99 = vld [vmem:[%s0 + $0x200] sm:$0xff]
    %v100 = vld [vmem:[%s0 + $0x208] sm:$0xff]
    %v101 = vld [vmem:[%s0 + $0x210] sm:$0xff]
    %v102 = vld [vmem:[%s0 + $0x218] sm:$0xff]
    %v103 = vld [vmem:[%s0 + $0x220] sm:$0xff]
    %v104 = vld [vmem:[%s0 + $0x228] sm:$0xff]
    %v105 = vld [vmem:[%s0 + $0x230] sm:$0xff]
    %v106 = vld [vmem:[%s0 + $0x238] sm:$0xff]
    %v107 = vld [vmem:[%s0 + $0x240] sm:$0xff]
    %v108 = vld [vmem:[%s0 + $0x248] sm:$0xff]
    %v109 = vld [vmem:[%s0 + $0x250] sm:$0xff]
    %v110 = vld [vmem:[%s0 + $0x258] sm:$0xff]
    %v111 = vld [vmem:[%s0 + $0x260] sm:$0xff]
    %v112 = vld [vmem:[%s0 + $0x268] sm:$0xff]
    %v113 = vld [vmem:[%s0 + $0x270] sm:$0xff]
    %v114 = vld [vmem:[%s0 + $0x278] sm:$0xff]
    %v115 = vld [vmem:[%s0 + $0x280] sm:$0xff]
    %v116 = vld [vmem:[%s0 + $0x288] sm:$0xff]
    %v117 = vld [vmem:[%s0 + $0x290] sm:$0xff]
    %v118 = vld [vmem:[%s0 + $0x298] sm:$0xff]
    %v119 = vld [vmem:[%s0 + $0x2a0] sm:$0xff]
    %v120 = vld [vmem:[%s0 + $0x2a8] sm:$0xff]
    %v121 = vld [vmem:[%s0 + $0x2b0] sm:$0xff]
    %v122 = vld [vmem:[%s0 + $0x2b8] sm:$0xff]
    %v123 = vld [vmem:[%s0 + $0x2c0] sm:$0xff]
    %v124 = vld [vmem:[%s0 + $0x2c8] sm:$0xff]
    %v125 = vld [vmem:[%s0 + $0x2d0] sm:$0xff]
    %v126 = vld [vmem:[%s0 + $0x2d8] sm:$0xff]
    %v127 = vld [vmem:[%s0 + $0x2e0] sm:$0xff]
    %v128 = vld [vmem:[%s0 + $0x2e8] sm:$0xff]
    %v129 = vld [vmem:[%s0 + $0x2f0] sm:$0xff]
    %v130 = vld [vmem:[%s0 + $0x2f8] sm:$0xff]
    %v131 = vld [vmem:[%s0 + $0x300] sm:$0xff]
    %v132 = vld [vmem:[%s0 + $0x308] sm:$0xff]
    %v133 = vld [vmem:[%s0 + $0x310] sm:$0xff]
    %v134 = vld [vmem:[%s0 + $0x318] sm:$0xff]
    %v135 = vld [vmem:[%s0 + $0x320] sm:$0xff]
    %v136 = vld [vmem:[%s0 + $0x328] sm:$0xff]
    %v137 = vld [vmem:[%s0 + $0x330] sm:$0xff]
    %v138 = vld [vmem:[%s0 + $0x338] sm:$0xff]
    %v139 = vld [vmem:[%s0 + $0x340] sm:$0xff]
    %v140 = vld [vmem:[%s0 + $0x348] sm:$0xff]
    %v141 = vld [vmem:[%s0 + $0x350] sm:$0xff]
    %v142 = vld [vmem:[%s0 + $0x358] sm:$0xff]
    %v143 = vld [vmem:[%s0 + $0x360] sm:$0xff]
    %v144 = vld [vmem:[%s0 + $0x368] sm:$0xff]
    %v145 = vld [vmem:[%s0 + $0x370] sm:$0xff]
    %v146 = vld [vmem:[%s0 + $0x378] sm:$0xff]
    %v147 = vld [vmem:[%s0 + $0x380] sm:$0xff]
    %v148 = vld [vmem:[%s0 + $0x388] sm:$0xff]
    %v149 = vld [vmem:[%s0 + $0x390] sm:$0xff]
    %v150 = vld [vmem:[%s0 + $0x398] sm:$0xff]
    %v151 = vld [vmem:[%s0 + $0x3a0] sm:$0xff]
    %v152 = vld [vmem:[%s0 + $0x3a8] sm:$0xff]
    %v153 = vld [vmem:[%s0 + $0x3b0] sm:$0xff]
    %v154 = vld [vmem:[%s0 + $0x3b8] sm:$0xff]
    %v155 = vld [vmem:[%s0 + $0x3c0] sm:$0xff]
    %v156 = vld [vmem:[%s0 + $0x3c8] sm:$0xff]
    %v157 = vld [vmem:[%s0 + $0x3d0] sm:$0xff]
    %v158 = vld [vmem:[%s0 + $0x3d8] sm:$0xff]
    %v159 = vld [vmem:[%s0 + $0x3e0] sm:$0xff]
    %v160 = vld [vmem:[%s0 + $0x3e8] sm:$0xff]
    %v161 = vld [vmem:[%s0 + $0x3f0] sm:$0xff]
    %v162 = vld [vmem:[%s0 + $0x3f8] sm:$0xff]
    %v165 = vunpack.c.l.b16 %v33
    %v166 = vunpack.c.h.b16 %v33
    %v167 = vunpack.c.l.b16 %v34
    %v168 = vunpack.c.h.b16 %v34
    %v169 = vpack.c.b16 %v167, %v165
    %v170 = vpack.c.b16 %v168, %v166
    %v301 = vunpack.c.l.b16 %v35
    %v302 = vunpack.c.h.b16 %v35
    %v303 = vunpack.c.l.b16 %v36
    %v304 = vunpack.c.h.b16 %v36
    %v305 = vunpack.c.l.b16 %v37
    %v306 = vunpack.c.h.b16 %v37
    %v307 = vunpack.c.l.b16 %v38
    %v308 = vunpack.c.h.b16 %v38
    %v309 = vunpack.c.l.b16 %v39
    %v310 = vunpack.c.h.b16 %v39
    %v311 = vunpack.c.l.b16 %v40
    %v312 = vunpack.c.h.b16 %v40
    %v313 = vunpack.c.l.b16 %v41
    %v314 = vunpack.c.h.b16 %v41
    %v315 = vunpack.c.l.b16 %v42
    %v316 = vunpack.c.h.b16 %v42
    %v317 = vunpack.c.l.b16 %v43
    %v318 = vunpack.c.h.b16 %v43
    %v319 = vunpack.c.l.b16 %v44
    %v320 = vunpack.c.h.b16 %v44
    %v321 = vunpack.c.l.b16 %v45
    %v322 = vunpack.c.h.b16 %v45
    %v323 = vunpack.c.l.b16 %v46
    %v324 = vunpack.c.h.b16 %v46
    %v325 = vunpack.c.l.b16 %v47
    %v326 = vunpack.c.h.b16 %v47
    %v327 = vunpack.c.l.b16 %v48
    %v328 = vunpack.c.h.b16 %v48
    %v329 = vunpack.c.l.b16 %v49
    %v330 = vunpack.c.h.b16 %v49
    %v331 = vunpack.c.l.b16 %v50
    %v332 = vunpack.c.h.b16 %v50
    %v333 = vunpack.c.l.b16 %v51
    %v334 = vunpack.c.h.b16 %v51
    %v335 = vunpack.c.l.b16 %v52
    %v336 = vunpack.c.h.b16 %v52
    %v337 = vunpack.c.l.b16 %v53
    %v338 = vunpack.c.h.b16 %v53
    %v339 = vunpack.c.l.b16 %v54
    %v340 = vunpack.c.h.b16 %v54
    %v341 = vunpack.c.l.b16 %v55
    %v342 = vunpack.c.h.b16 %v55
    %v343 = vunpack.c.l.b16 %v56
    %v344 = vunpack.c.h.b16 %v56
    %v345 = vunpack.c.l.b16 %v57
    %v346 = vunpack.c.h.b16 %v57
    %v347 = vunpack.c.l.b16 %v58
    %v348 = vunpack.c.h.b16 %v58
    %v349 = vunpack.c.l.b16 %v59
    %v350 = vunpack.c.h.b16 %v59
    %v351 = vunpack.c.l.b16 %v60
    %v352 = vunpack.c.h.b16 %v60
    %v353 = vunpack.c.l.b16 %v61
    %v354 = vunpack.c.h.b16 %v61
    %v355 = vunpack.c.l.b16 %v62
    %v356 = vunpack.c.h.b16 %v62
    %v357 = vunpack.c.l.b16 %v63
    %v358 = vunpack.c.h.b16 %v63
    %v359 = vunpack.c.l.b16 %v64
    %v360 = vunpack.c.h.b16 %v64
    %v361 = vunpack.c.l.b16 %v65
    %v362 = vunpack.c.h.b16 %v65
    %v363 = vunpack.c.l.b16 %v66
    %v364 = vunpack.c.h.b16 %v66
    %v365 = vunpack.c.l.b16 %v67
    %v366 = vunpack.c.h.b16 %v67
    %v367 = vunpack.c.l.b16 %v68
    %v368 = vunpack.c.h.b16 %v68
    %v369 = vunpack.c.l.b16 %v69
    %v370 = vunpack.c.h.b16 %v69
    %v371 = vunpack.c.l.b16 %v70
    %v372 = vunpack.c.h.b16 %v70
    %v373 = vunpack.c.l.b16 %v71
    %v374 = vunpack.c.h.b16 %v71
    %v375 = vunpack.c.l.b16 %v72
    %v376 = vunpack.c.h.b16 %v72
    %v377 = vunpack.c.l.b16 %v73
    %v378 = vunpack.c.h.b16 %v73
    %v379 = vunpack.c.l.b16 %v74
    %v380 = vunpack.c.h.b16 %v74
    %v381 = vunpack.c.l.b16 %v75
    %v382 = vunpack.c.h.b16 %v75
    %v383 = vunpack.c.l.b16 %v76
    %v384 = vunpack.c.h.b16 %v76
    %v385 = vunpack.c.l.b16 %v77
    %v386 = vunpack.c.h.b16 %v77
    %v387 = vunpack.c.l.b16 %v78
    %v388 = vunpack.c.h.b16 %v78
    %v389 = vunpack.c.l.b16 %v79
    %v390 = vunpack.c.h.b16 %v79
    %v391 = vunpack.c.l.b16 %v80
    %v392 = vunpack.c.h.b16 %v80
    %v393 = vunpack.c.l.b16 %v81
    %v394 = vunpack.c.h.b16 %v81
    %v395 = vunpack.c.l.b16 %v82
    %v396 = vunpack.c.h.b16 %v82
    %v397 = vunpack.c.l.b16 %v83
    %v398 = vunpack.c.h.b16 %v83
    %v399 = vunpack.c.l.b16 %v84
    %v400 = vunpack.c.h.b16 %v84
    %v401 = vunpack.c.l.b16 %v85
    %v402 = vunpack.c.h.b16 %v85
    %v403 = vunpack.c.l.b16 %v86
    %v404 = vunpack.c.h.b16 %v86
    %v405 = vunpack.c.l.b16 %v87
    %v406 = vunpack.c.h.b16 %v87
    %v407 = vunpack.c.l.b16 %v88
    %v408 = vunpack.c.h.b16 %v88
    %v409 = vunpack.c.l.b16 %v89
    %v410 = vunpack.c.h.b16 %v89
    %v411 = vunpack.c.l.b16 %v90
    %v412 = vunpack.c.h.b16 %v90
    %v413 = vunpack.c.l.b16 %v91
    %v414 = vunpack.c.h.b16 %v91
    %v415 = vunpack.c.l.b16 %v92
    %v416 = vunpack.c.h.b16 %v92
    %v417 = vunpack.c.l.b16 %v93
    %v418 = vunpack.c.h.b16 %v93
    %v419 = vunpack.c.l.b16 %v94
    %v420 = vunpack.c.h.b16 %v94
    %v421 = vunpack.c.l.b16 %v95
    %v422 = vunpack.c.h.b16 %v95
    %v423 = vunpack.c.l.b16 %v96
    %v424 = vunpack.c.h.b16 %v96
    %v425 = vunpack.c.l.b16 %v97
    %v426 = vunpack.c.h.b16 %v97
    %v427 = vunpack.c.l.b16 %v98
    %v428 = vunpack.c.h.b16 %v98
    %v429 = vunpack.c.l.b16 %v99
    %v430 = vunpack.c.h.b16 %v99
    %v431 = vunpack.c.l.b16 %v100
    %v432 = vunpack.c.h.b16 %v100
    %v433 = vunpack.c.l.b16 %v101
    %v434 = vunpack.c.h.b16 %v101
    %v435 = vunpack.c.l.b16 %v102
    %v436 = vunpack.c.h.b16 %v102
    %v437 = vunpack.c.l.b16 %v103
    %v438 = vunpack.c.h.b16 %v103
    %v439 = vunpack.c.l.b16 %v104
    %v440 = vunpack.c.h.b16 %v104
    %v441 = vunpack.c.l.b16 %v105
    %v442 = vunpack.c.h.b16 %v105
    %v443 = vunpack.c.l.b16 %v106
    %v444 = vunpack.c.h.b16 %v106
    %v445 = vunpack.c.l.b16 %v107
    %v446 = vunpack.c.h.b16 %v107
    %v447 = vunpack.c.l.b16 %v108
    %v448 = vunpack.c.h.b16 %v108
    %v449 = vunpack.c.l.b16 %v109
    %v450 = vunpack.c.h.b16 %v109
    %v451 = vunpack.c.l.b16 %v110
    %v452 = vunpack.c.h.b16 %v110
    %v453 = vunpack.c.l.b16 %v111
    %v454 = vunpack.c.h.b16 %v111
    %v455 = vunpack.c.l.b16 %v112
    %v456 = vunpack.c.h.b16 %v112
    %v457 = vunpack.c.l.b16 %v113
    %v458 = vunpack.c.h.b16 %v113
    %v459 = vunpack.c.l.b16 %v114
    %v460 = vunpack.c.h.b16 %v114
    %v461 = vunpack.c.l.b16 %v115
    %v462 = vunpack.c.h.b16 %v115
    %v463 = vunpack.c.l.b16 %v116
    %v464 = vunpack.c.h.b16 %v116
    %v465 = vunpack.c.l.b16 %v117
    %v466 = vunpack.c.h.b16 %v117
    %v467 = vunpack.c.l.b16 %v118
    %v468 = vunpack.c.h.b16 %v118
    %v469 = vunpack.c.l.b16 %v119
    %v470 = vunpack.c.h.b16 %v119
    %v471 = vunpack.c.l.b16 %v120
    %v472 = vunpack.c.h.b16 %v120
    %v473 = vunpack.c.l.b16 %v121
    %v474 = vunpack.c.h.b16 %v121
    %v475 = vunpack.c.l.b16 %v122
    %v476 = vunpack.c.h.b16 %v122
    %v477 = vunpack.c.l.b16 %v123
    %v478 = vunpack.c.h.b16 %v123
    %v479 = vunpack.c.l.b16 %v124
    %v480 = vunpack.c.h.b16 %v124
    %v481 = vunpack.c.l.b16 %v125
    %v482 = vunpack.c.h.b16 %v125
    %v483 = vunpack.c.l.b16 %v126
    %v484 = vunpack.c.h.b16 %v126
    %v485 = vunpack.c.l.b16 %v127
    %v486 = vunpack.c.h.b16 %v127
    %v487 = vunpack.c.l.b16 %v128
    %v488 = vunpack.c.h.b16 %v128
    %v489 = vunpack.c.l.b16 %v129
    %v490 = vunpack.c.h.b16 %v129
    %v491 = vunpack.c.l.b16 %v130
    %v492 = vunpack.c.h.b16 %v130
    %v493 = vunpack.c.l.b16 %v131
    %v494 = vunpack.c.h.b16 %v131
    %v495 = vunpack.c.l.b16 %v132
    %v496 = vunpack.c.h.b16 %v132
    %v497 = vunpack.c.l.b16 %v133
    %v498 = vunpack.c.h.b16 %v133
    %v499 = vunpack.c.l.b16 %v134
    %v500 = vunpack.c.h.b16 %v134
    %v501 = vunpack.c.l.b16 %v135
    %v502 = vunpack.c.h.b16 %v135
    %v503 = vunpack.c.l.b16 %v136
    %v504 = vunpack.c.h.b16 %v136
    %v505 = vunpack.c.l.b16 %v137
    %v506 = vunpack.c.h.b16 %v137
    %v507 = vunpack.c.l.b16 %v138
    %v508 = vunpack.c.h.b16 %v138
    %v509 = vunpack.c.l.b16 %v139
    %v510 = vunpack.c.h.b16 %v139
    %v511 = vunpack.c.l.b16 %v140
    %v512 = vunpack.c.h.b16 %v140
    %v513 = vunpack.c.l.b16 %v141
    %v514 = vunpack.c.h.b16 %v141
    %v515 = vunpack.c.l.b16 %v142
    %v516 = vunpack.c.h.b16 %v142
    %v517 = vunpack.c.l.b16 %v143
    %v518 = vunpack.c.h.b16 %v143
    %v519 = vunpack.c.l.b16 %v144
    %v520 = vunpack.c.h.b16 %v144
    %v521 = vunpack.c.l.b16 %v145
    %v522 = vunpack.c.h.b16 %v145
    %v523 = vunpack.c.l.b16 %v146
    %v524 = vunpack.c.h.b16 %v146
    %v525 = vunpack.c.l.b16 %v147
    %v526 = vunpack.c.h.b16 %v147
    %v527 = vunpack.c.l.b16 %v148
    %v528 = vunpack.c.h.b16 %v148
    %v529 = vunpack.c.l.b16 %v149
    %v530 = vunpack.c.h.b16 %v149
    %v531 = vunpack.c.l.b16 %v150
    %v532 = vunpack.c.h.b16 %v150
    %v533 = vunpack.c.l.b16 %v151
    %v534 = vunpack.c.h.b16 %v151
    %v535 = vunpack.c.l.b16 %v152
    %v536 = vunpack.c.h.b16 %v152
    %v537 = vunpack.c.l.b16 %v153
    %v538 = vunpack.c.h.b16 %v153
    %v539 = vunpack.c.l.b16 %v154
    %v540 = vunpack.c.h.b16 %v154
    %v541 = vunpack.c.l.b16 %v155
    %v542 = vunpack.c.h.b16 %v155
    %v543 = vunpack.c.l.b16 %v156
    %v544 = vunpack.c.h.b16 %v156
    %v545 = vunpack.c.l.b16 %v157
    %v546 = vunpack.c.h.b16 %v157
    %v547 = vunpack.c.l.b16 %v158
    %v548 = vunpack.c.h.b16 %v158
    %v549 = vunpack.c.l.b16 %v159
    %v550 = vunpack.c.h.b16 %v159
    %v551 = vunpack.c.l.b16 %v160
    %v552 = vunpack.c.h.b16 %v160
    %v553 = vunpack.c.l.b16 %v161
    %v554 = vunpack.c.h.b16 %v161
    %v555 = vunpack.c.l.b16 %v162
    %v556 = vunpack.c.h.b16 %v162
    %v557 = vpack.c.b16 %v309, %v301
    %v558 = vpack.c.b16 %v310, %v302
    %v559 = vpack.c.b16 %v311, %v303
    %v560 = vpack.c.b16 %v312, %v304
    %v561 = vpack.c.b16 %v313, %v305
    %v562 = vpack.c.b16 %v314, %v306
    %v563 = vpack.c.b16 %v315, %v307
    %v564 = vpack.c.b16 %v316, %v308
    %v565 = vpack.c.b16 %v325, %v317
    %v566 = vpack.c.b16 %v326, %v318
    %v567 = vpack.c.b16 %v327, %v319
    %v568 = vpack.c.b16 %v328, %v320
    %v569 = vpack.c.b16 %v329, %v321
    %v570 = vpack.c.b16 %v330, %v322
    %v571 = vpack.c.b16 %v331, %v323
    %v572 = vpack.c.b16 %v332, %v324
    %v573 = vpack.c.b16 %v341, %v333
    %v574 = vpack.c.b16 %v342, %v334
    %v575 = vpack.c.b16 %v343, %v335
    %v576 = vpack.c.b16 %v344, %v336
    %v577 = vpack.c.b16 %v345, %v337
    %v578 = vpack.c.b16 %v346, %v338
    %v579 = vpack.c.b16 %v347, %v339
    %v580 = vpack.c.b16 %v348, %v340
    %v581 = vpack.c.b16 %v357, %v349
    %v582 = vpack.c.b16 %v358, %v350
    %v583 = vpack.c.b16 %v359, %v351
    %v584 = vpack.c.b16 %v360, %v352
    %v585 = vpack.c.b16 %v361, %v353
    %v586 = vpack.c.b16 %v362, %v354
    %v587 = vpack.c.b16 %v363, %v355
    %v588 = vpack.c.b16 %v364, %v356
    %v589 = vpack.c.b16 %v373, %v365
    %v590 = vpack.c.b16 %v374, %v366
    %v591 = vpack.c.b16 %v375, %v367
    %v592 = vpack.c.b16 %v376, %v368
    %v593 = vpack.c.b16 %v377, %v369
    %v594 = vpack.c.b16 %v378, %v370
    %v595 = vpack.c.b16 %v379, %v371
    %v596 = vpack.c.b16 %v380, %v372
    %v597 = vpack.c.b16 %v389, %v381
    %v598 = vpack.c.b16 %v390, %v382
    %v599 = vpack.c.b16 %v391, %v383
    %v600 = vpack.c.b16 %v392, %v384
    %v601 = vpack.c.b16 %v393, %v385
    %v602 = vpack.c.b16 %v394, %v386
    %v603 = vpack.c.b16 %v395, %v387
    %v604 = vpack.c.b16 %v396, %v388
    %v605 = vpack.c.b16 %v405, %v397
    %v606 = vpack.c.b16 %v406, %v398
    %v607 = vpack.c.b16 %v407, %v399
    %v608 = vpack.c.b16 %v408, %v400
    %v609 = vpack.c.b16 %v409, %v401
    %v610 = vpack.c.b16 %v410, %v402
    %v611 = vpack.c.b16 %v411, %v403
    %v612 = vpack.c.b16 %v412, %v404
    %v613 = vpack.c.b16 %v421, %v413
    %v614 = vpack.c.b16 %v422, %v414
    %v615 = vpack.c.b16 %v423, %v415
    %v616 = vpack.c.b16 %v424, %v416
    %v617 = vpack.c.b16 %v425, %v417
    %v618 = vpack.c.b16 %v426, %v418
    %v619 = vpack.c.b16 %v427, %v419
    %v620 = vpack.c.b16 %v428, %v420
    %v621 = vpack.c.b16 %v437, %v429
    %v622 = vpack.c.b16 %v438, %v430
    %v623 = vpack.c.b16 %v439, %v431
    %v624 = vpack.c.b16 %v440, %v432
    %v625 = vpack.c.b16 %v441, %v433
    %v626 = vpack.c.b16 %v442, %v434
    %v627 = vpack.c.b16 %v443, %v435
    %v628 = vpack.c.b16 %v444, %v436
    %v629 = vpack.c.b16 %v453, %v445
    %v630 = vpack.c.b16 %v454, %v446
    %v631 = vpack.c.b16 %v455, %v447
    %v632 = vpack.c.b16 %v456, %v448
    %v633 = vpack.c.b16 %v457, %v449
    %v634 = vpack.c.b16 %v458, %v450
    %v635 = vpack.c.b16 %v459, %v451
    %v636 = vpack.c.b16 %v460, %v452
    %v637 = vpack.c.b16 %v469, %v461
    %v638 = vpack.c.b16 %v470, %v462
    %v639 = vpack.c.b16 %v471, %v463
    %v640 = vpack.c.b16 %v472, %v464
    %v641 = vpack.c.b16 %v473, %v465
    %v642 = vpack.c.b16 %v474, %v466
    %v643 = vpack.c.b16 %v475, %v467
    %v644 = vpack.c.b16 %v476, %v468
    %v645 = vpack.c.b16 %v485, %v477
    %v646 = vpack.c.b16 %v486, %v478
    %v647 = vpack.c.b16 %v487, %v479
    %v648 = vpack.c.b16 %v488, %v480
    %v649 = vpack.c.b16 %v489, %v481
    %v650 = vpack.c.b16 %v490, %v482
    %v651 = vpack.c.b16 %v491, %v483
    %v652 = vpack.c.b16 %v492, %v484
    %v653 = vpack.c.b16 %v501, %v493
    %v654 = vpack.c.b16 %v502, %v494
    %v655 = vpack.c.b16 %v503, %v495
    %v656 = vpack.c.b16 %v504, %v496
    %v657 = vpack.c.b16 %v505, %v497
    %v658 = vpack.c.b16 %v506, %v498
    %v659 = vpack.c.b16 %v507, %v499
    %v660 = vpack.c.b16 %v508, %v500
    %v661 = vpack.c.b16 %v517, %v509
    %v662 = vpack.c.b16 %v518, %v510
    %v663 = vpack.c.b16 %v519, %v511
    %v664 = vpack.c.b16 %v520, %v512
    %v665 = vpack.c.b16 %v521, %v513
    %v666 = vpack.c.b16 %v522, %v514
    %v667 = vpack.c.b16 %v523, %v515
    %v668 = vpack.c.b16 %v524, %v516
    %v669 = vpack.c.b16 %v533, %v525
    %v670 = vpack.c.b16 %v534, %v526
    %v671 = vpack.c.b16 %v535, %v527
    %v672 = vpack.c.b16 %v536, %v528
    %v673 = vpack.c.b16 %v537, %v529
    %v674 = vpack.c.b16 %v538, %v530
    %v675 = vpack.c.b16 %v539, %v531
    %v676 = vpack.c.b16 %v540, %v532
    %v677 = vpack.c.b16 %v549, %v541
    %v678 = vpack.c.b16 %v550, %v542
    %v679 = vpack.c.b16 %v551, %v543
    %v680 = vpack.c.b16 %v552, %v544
    %v681 = vpack.c.b16 %v553, %v545
    %v682 = vpack.c.b16 %v554, %v546
    %v683 = vpack.c.b16 %v555, %v547
    %v684 = vpack.c.b16 %v556, %v548
    %813 = vmatpush.bf16.msra.mxu0 %v613
    %814 = vmatpush.bf16.msra.mxu0 %v605
    %815 = vmatpush.bf16.msra.mxu0 %v597
    %816 = vmatpush.bf16.msra.mxu0 %v589
    %817 = vmatpush.bf16.msra.mxu0 %v581
    %818 = vmatpush.bf16.msra.mxu0 %v573
    %819 = vmatpush.bf16.msra.mxu0 %v565
    %820 = vmatpush.bf16.msra.mxu0 %v557
    %821 = vmatmul.bf16.gmra.mxu0 %v169
    %v822 = vpop.f32.mrf.mxu0
    %v823 = vadd.f32 0.0, %v822
    %v824 = vpop.f32.mrf.mxu0
    %v825 = vadd.f32 0.0, %v824
    %826 = vdwg.mxu0
    %827 = vmatpush.bf16.msra.mxu0 %v677
    %828 = vmatpush.bf16.msra.mxu0 %v669
    %829 = vmatpush.bf16.msra.mxu0 %v661
    %830 = vmatpush.bf16.msra.mxu0 %v653
    %831 = vmatpush.bf16.msra.mxu0 %v645
    %832 = vmatpush.bf16.msra.mxu0 %v637
    %833 = vmatpush.bf16.msra.mxu0 %v629
    %834 = vmatpush.bf16.msra.mxu0 %v621
    %835 = vmatmul.bf16.gmra.mxu0 %v170
    %v836 = vpop.f32.mrf.mxu0
    %v837 = vadd.f32 %v823, %v836
    %v838 = vpop.f32.mrf.mxu0
    %v839 = vadd.f32 %v825, %v838
    %840 = vdwg.mxu0
    %841 = vmatpush.bf16.msra.mxu0 %v614
    %842 = vmatpush.bf16.msra.mxu0 %v606
    %843 = vmatpush.bf16.msra.mxu0 %v598
    %844 = vmatpush.bf16.msra.mxu0 %v590
    %845 = vmatpush.bf16.msra.mxu0 %v582
    %846 = vmatpush.bf16.msra.mxu0 %v574
    %847 = vmatpush.bf16.msra.mxu0 %v566
    %848 = vmatpush.bf16.msra.mxu0 %v558
    %849 = vmatmul.bf16.gmra.mxu0 %v169
    %v850 = vpop.f32.mrf.mxu0
    %v851 = vadd.f32 0.0, %v850
    %v852 = vpop.f32.mrf.mxu0
    %v853 = vadd.f32 0.0, %v852
    %854 = vdwg.mxu0
    %855 = vmatpush.bf16.msra.mxu0 %v678
    %856 = vmatpush.bf16.msra.mxu0 %v670
    %857 = vmatpush.bf16.msra.mxu0 %v662
    %858 = vmatpush.bf16.msra.mxu0 %v654
    %859 = vmatpush.bf16.msra.mxu0 %v646
    %860 = vmatpush.bf16.msra.mxu0 %v638
    %861 = vmatpush.bf16.msra.mxu0 %v630
    %862 = vmatpush.bf16.msra.mxu0 %v622
    %863 = vmatmul.bf16.gmra.mxu0 %v170
    %v864 = vpop.f32.mrf.mxu0
    %v865 = vadd.f32 %v851, %v864
    %v866 = vpop.f32.mrf.mxu0
    %v867 = vadd.f32 %v853, %v866
    %868 = vdwg.mxu0
    %869 = vmatpush.bf16.msra.mxu0 %v615
    %870 = vmatpush.bf16.msra.mxu0 %v607
    %871 = vmatpush.bf16.msra.mxu0 %v599
    %872 = vmatpush.bf16.msra.mxu0 %v591
    %873 = vmatpush.bf16.msra.mxu0 %v583
    %874 = vmatpush.bf16.msra.mxu0 %v575
    %875 = vmatpush.bf16.msra.mxu0 %v567
    %876 = vmatpush.bf16.msra.mxu0 %v559
    %877 = vmatmul.bf16.gmra.mxu0 %v169
    %v878 = vpop.f32.mrf.mxu0
    %v879 = vadd.f32 0.0, %v878
    %v880 = vpop.f32.mrf.mxu0
    %v881 = vadd.f32 0.0, %v880
    %882 = vdwg.mxu0
    %883 = vmatpush.bf16.msra.mxu0 %v679
    %884 = vmatpush.bf16.msra.mxu0 %v671
    %885 = vmatpush.bf16.msra.mxu0 %v663
    %886 = vmatpush.bf16.msra.mxu0 %v655
    %887 = vmatpush.bf16.msra.mxu0 %v647
    %888 = vmatpush.bf16.msra.mxu0 %v639
    %889 = vmatpush.bf16.msra.mxu0 %v631
    %890 = vmatpush.bf16.msra.mxu0 %v623
    %891 = vmatmul.bf16.gmra.mxu0 %v170
    %v892 = vpop.f32.mrf.mxu0
    %v893 = vadd.f32 %v879, %v892
    %v894 = vpop.f32.mrf.mxu0
    %v895 = vadd.f32 %v881, %v894
    %896 = vdwg.mxu0
    %897 = vmatpush.bf16.msra.mxu0 %v616
    %898 = vmatpush.bf16.msra.mxu0 %v608
    %899 = vmatpush.bf16.msra.mxu0 %v600
    %900 = vmatpush.bf16.msra.mxu0 %v592
    %901 = vmatpush.bf16.msra.mxu0 %v584
    %902 = vmatpush.bf16.msra.mxu0 %v576
    %903 = vmatpush.bf16.msra.mxu0 %v568
    %904 = vmatpush.bf16.msra.mxu0 %v560
    %905 = vmatmul.bf16.gmra.mxu0 %v169
    %v906 = vpop.f32.mrf.mxu0
    %v907 = vadd.f32 0.0, %v906
    %v908 = vpop.f32.mrf.mxu0
    %v909 = vadd.f32 0.0, %v908
    %910 = vdwg.mxu0
    %911 = vmatpush.bf16.msra.mxu0 %v680
    %912 = vmatpush.bf16.msra.mxu0 %v672
    %913 = vmatpush.bf16.msra.mxu0 %v664
    %914 = vmatpush.bf16.msra.mxu0 %v656
    %915 = vmatpush.bf16.msra.mxu0 %v648
    %916 = vmatpush.bf16.msra.mxu0 %v640
    %917 = vmatpush.bf16.msra.mxu0 %v632
    %918 = vmatpush.bf16.msra.mxu0 %v624
    %919 = vmatmul.bf16.gmra.mxu0 %v170
    %v920 = vpop.f32.mrf.mxu0
    %v921 = vadd.f32 %v907, %v920
    %v922 = vpop.f32.mrf.mxu0
    %v923 = vadd.f32 %v909, %v922
    %924 = vdwg.mxu0
    %925 = vmatpush.bf16.msra.mxu0 %v617
    %926 = vmatpush.bf16.msra.mxu0 %v609
    %927 = vmatpush.bf16.msra.mxu0 %v601
    %928 = vmatpush.bf16.msra.mxu0 %v593
    %929 = vmatpush.bf16.msra.mxu0 %v585
    %930 = vmatpush.bf16.msra.mxu0 %v577
    %931 = vmatpush.bf16.msra.mxu0 %v569
    %932 = vmatpush.bf16.msra.mxu0 %v561
    %933 = vmatmul.bf16.gmra.mxu0 %v169
    %v934 = vpop.f32.mrf.mxu0
    %v935 = vadd.f32 0.0, %v934
    %v936 = vpop.f32.mrf.mxu0
    %v937 = vadd.f32 0.0, %v936
    %938 = vdwg.mxu0
    %939 = vmatpush.bf16.msra.mxu0 %v681
    %940 = vmatpush.bf16.msra.mxu0 %v673
    %941 = vmatpush.bf16.msra.mxu0 %v665
    %942 = vmatpush.bf16.msra.mxu0 %v657
    %943 = vmatpush.bf16.msra.mxu0 %v649
    %944 = vmatpush.bf16.msra.mxu0 %v641
    %945 = vmatpush.bf16.msra.mxu0 %v633
    %946 = vmatpush.bf16.msra.mxu0 %v625
    %947 = vmatmul.bf16.gmra.mxu0 %v170
    %v948 = vpop.f32.mrf.mxu0
    %v949 = vadd.f32 %v935, %v948
    %v950 = vpop.f32.mrf.mxu0
    %v951 = vadd.f32 %v937, %v950
    %952 = vdwg.mxu0
    %953 = vmatpush.bf16.msra.mxu0 %v618
    %954 = vmatpush.bf16.msra.mxu0 %v610
    %955 = vmatpush.bf16.msra.mxu0 %v602
    %956 = vmatpush.bf16.msra.mxu0 %v594
    %957 = vmatpush.bf16.msra.mxu0 %v586
    %958 = vmatpush.bf16.msra.mxu0 %v578
    %959 = vmatpush.bf16.msra.mxu0 %v570
    %960 = vmatpush.bf16.msra.mxu0 %v562
    %961 = vmatmul.bf16.gmra.mxu0 %v169
    %v962 = vpop.f32.mrf.mxu0
    %v963 = vadd.f32 0.0, %v962
    %v964 = vpop.f32.mrf.mxu0
    %v965 = vadd.f32 0.0, %v964
    %966 = vdwg.mxu0
    %967 = vmatpush.bf16.msra.mxu0 %v682
    %968 = vmatpush.bf16.msra.mxu0 %v674
    %969 = vmatpush.bf16.msra.mxu0 %v666
    %970 = vmatpush.bf16.msra.mxu0 %v658
    %971 = vmatpush.bf16.msra.mxu0 %v650
    %972 = vmatpush.bf16.msra.mxu0 %v642
    %973 = vmatpush.bf16.msra.mxu0 %v634
    %974 = vmatpush.bf16.msra.mxu0 %v626
    %975 = vmatmul.bf16.gmra.mxu0 %v170
    %v976 = vpop.f32.mrf.mxu0
    %v977 = vadd.f32 %v963, %v976
    %v978 = vpop.f32.mrf.mxu0
    %v979 = vadd.f32 %v965, %v978
    %980 = vdwg.mxu0
    %981 = vmatpush.bf16.msra.mxu0 %v619
    %982 = vmatpush.bf16.msra.mxu0 %v611
    %983 = vmatpush.bf16.msra.mxu0 %v603
    %984 = vmatpush.bf16.msra.mxu0 %v595
    %985 = vmatpush.bf16.msra.mxu0 %v587
    %986 = vmatpush.bf16.msra.mxu0 %v579
    %987 = vmatpush.bf16.msra.mxu0 %v571
    %988 = vmatpush.bf16.msra.mxu0 %v563
    %989 = vmatmul.bf16.gmra.mxu0 %v169
    %v990 = vpop.f32.mrf.mxu0
    %v991 = vadd.f32 0.0, %v990
    %v992 = vpop.f32.mrf.mxu0
    %v993 = vadd.f32 0.0, %v992
    %994 = vdwg.mxu0
    %995 = vmatpush.bf16.msra.mxu0 %v683
    %996 = vmatpush.bf16.msra.mxu0 %v675
    %997 = vmatpush.bf16.msra.mxu0 %v667
    %998 = vmatpush.bf16.msra.mxu0 %v659
    %999 = vmatpush.bf16.msra.mxu0 %v651
    %1000 = vmatpush.bf16.msra.mxu0 %v643
    %1001 = vmatpush.bf16.msra.mxu0 %v635
    %1002 = vmatpush.bf16.msra.mxu0 %v627
    %1003 = vmatmul.bf16.gmra.mxu0 %v170
    %v1004 = vpop.f32.mrf.mxu0
    %v1005 = vadd.f32 %v991, %v1004
    %v1006 = vpop.f32.mrf.mxu0
    %v1007 = vadd.f32 %v993, %v1006
    %1008 = vdwg.mxu0
    %1009 = vmatpush.bf16.msra.mxu0 %v620
    %1010 = vmatpush.bf16.msra.mxu0 %v612
    %1011 = vmatpush.bf16.msra.mxu0 %v604
    %1012 = vmatpush.bf16.msra.mxu0 %v596
    %1013 = vmatpush.bf16.msra.mxu0 %v588
    %1014 = vmatpush.bf16.msra.mxu0 %v580
    %1015 = vmatpush.bf16.msra.mxu0 %v572
    %1016 = vmatpush.bf16.msra.mxu0 %v564
    %1017 = vmatmul.bf16.gmra.mxu0 %v169
    %v1018 = vpop.f32.mrf.mxu0
    %v1019 = vadd.f32 0.0, %v1018
    %v1020 = vpop.f32.mrf.mxu0
    %v1021 = vadd.f32 0.0, %v1020
    %1022 = vdwg.mxu0
    %1023 = vmatpush.bf16.msra.mxu0 %v684
    %1024 = vmatpush.bf16.msra.mxu0 %v676
    %1025 = vmatpush.bf16.msra.mxu0 %v668
    %1026 = vmatpush.bf16.msra.mxu0 %v660
    %1027 = vmatpush.bf16.msra.mxu0 %v652
    %1028 = vmatpush.bf16.msra.mxu0 %v644
    %1029 = vmatpush.bf16.msra.mxu0 %v636
    %1030 = vmatpush.bf16.msra.mxu0 %v628
    %1031 = vmatmul.bf16.gmra.mxu0 %v170
    %v1032 = vpop.f32.mrf.mxu0
    %v1033 = vadd.f32 %v1019, %v1032
    %v1034 = vpop.f32.mrf.mxu0
    %v1035 = vadd.f32 %v1021, %v1034
    %1036 = vdwg.mxu0
    %v1037 = vmax.f32 %v837, %v893
    %v1038 = vmax.f32 %v865, %v921
    %v1039 = vmax.f32 %v839, %v895
    %v1040 = vmax.f32 %v867, %v923
    %v1041 = vmax.f32 %v949, %v1005
    %v1042 = vmax.f32 %v977, %v1033
    %v1043 = vmax.f32 %v951, %v1007
    %v1044 = vmax.f32 %v979, %v1035
    %v1045 = vmax.f32 %v1037, %v1041
    %v1046 = vmax.f32 %v1038, %v1042
    %v1047 = vmax.f32 %v1039, %v1043
    %v1048 = vmax.f32 %v1040, %v1044
    %v1049 = vld [vmem:[%s2] sm:$0xff]
    %v1050 = vld [vmem:[%s2 + $0x8] sm:$0xff]
    %1052 = vset.pattern.permute.xlu0 0
    %1053 = vperm.xlu0 %1052, %v1049
    %v1054 = vpop.permute.xlu0 %1053
    %1057 = vset.pattern.permute.xlu0 0
    %1058 = vperm.xlu0 %1057, %v1050
    %v1059 = vpop.permute.xlu0 %1058
    %v1061 = vadd.f32 %v1045, %v1054
    %v1062 = vadd.f32 %v1046, %v1054
    %v1063 = vadd.f32 %v1047, %v1059
    %v1064 = vadd.f32 %v1048, %v1059
    %v1065 = vmax.f32 %v1061, 0.0
    %v1066 = vmax.f32 %v1062, 0.0
    %v1067 = vmax.f32 %v1063, 0.0
    %v1068 = vmax.f32 %v1064, 0.0
    %v1069 = vpack.c.bf16 %v1066, %v1065
    %v1070 = vpack.c.bf16 %v1068, %v1067
    %v1071 = vld [vmem:[%s4] sm:$0x1]
    %v1072 = vld [vmem:[%s3] sm:$0xf]
    %v1073 = vld [vmem:[%s3 + $0x4] sm:$0xf]
    %v1074 = vld [vmem:[%s3 + $0x8] sm:$0xf]
    %v1075 = vld [vmem:[%s3 + $0xc] sm:$0xf]
    %v1076 = vld [vmem:[%s3 + $0x10] sm:$0xf]
    %v1077 = vld [vmem:[%s3 + $0x14] sm:$0xf]
    %v1078 = vld [vmem:[%s3 + $0x18] sm:$0xf]
    %v1079 = vld [vmem:[%s3 + $0x1c] sm:$0xf]
    %v1080 = vld [vmem:[%s3 + $0x20] sm:$0xf]
    %v1081 = vld [vmem:[%s3 + $0x24] sm:$0xf]
    %v1082 = vld [vmem:[%s3 + $0x28] sm:$0xf]
    %v1083 = vld [vmem:[%s3 + $0x2c] sm:$0xf]
    %v1084 = vld [vmem:[%s3 + $0x30] sm:$0xf]
    %v1085 = vld [vmem:[%s3 + $0x34] sm:$0xf]
    %v1086 = vld [vmem:[%s3 + $0x38] sm:$0xf]
    %v1087 = vld [vmem:[%s3 + $0x3c] sm:$0xf]
    %v1104 = vunpack.c.l.b16 %v1072
    %v1105 = vunpack.c.l.b16 %v1073
    %v1106 = vunpack.c.l.b16 %v1074
    %v1107 = vunpack.c.l.b16 %v1075
    %v1108 = vunpack.c.l.b16 %v1076
    %v1109 = vunpack.c.l.b16 %v1077
    %v1110 = vunpack.c.l.b16 %v1078
    %v1111 = vunpack.c.l.b16 %v1079
    %v1112 = vunpack.c.l.b16 %v1080
    %v1113 = vunpack.c.l.b16 %v1081
    %v1114 = vunpack.c.l.b16 %v1082
    %v1115 = vunpack.c.l.b16 %v1083
    %v1116 = vunpack.c.l.b16 %v1084
    %v1117 = vunpack.c.l.b16 %v1085
    %v1118 = vunpack.c.l.b16 %v1086
    %v1119 = vunpack.c.l.b16 %v1087
    %v1120 = vpack.c.b16 %v1105, %v1104
    %v1121 = vpack.c.b16 %v1107, %v1106
    %v1122 = vpack.c.b16 %v1109, %v1108
    %v1123 = vpack.c.b16 %v1111, %v1110
    %v1124 = vpack.c.b16 %v1113, %v1112
    %v1125 = vpack.c.b16 %v1115, %v1114
    %v1126 = vpack.c.b16 %v1117, %v1116
    %v1127 = vpack.c.b16 %v1119, %v1118
    %1136 = vmatpush.bf16.msra.mxu0 %v1127
    %1137 = vmatpush.bf16.msra.mxu0 %v1126
    %1138 = vmatpush.bf16.msra.mxu0 %v1125
    %1139 = vmatpush.bf16.msra.mxu0 %v1124
    %1140 = vmatpush.bf16.msra.mxu0 %v1123
    %1141 = vmatpush.bf16.msra.mxu0 %v1122
    %1142 = vmatpush.bf16.msra.mxu0 %v1121
    %1143 = vmatpush.bf16.msra.mxu0 %v1120
    %1144 = vmatmul.bf16.gmra.mxu0 %v1069
    %v1145 = vpop.f32.mrf.mxu0
    %v1146 = vadd.f32 0.0, %v1145
    %v1147 = vpop.f32.mrf.mxu0
    %1148 = vdwg.mxu0
    %v1149 = vadd.f32 %v1071, %v1146
    %v1151 = vunpack.c.h.b16 %v1069
    %v1152 = vpack.c.b16 %v1151, %v1151
    %1154 = vmatpush.bf16.msra.mxu0 %v1127
    %1155 = vmatpush.bf16.msra.mxu0 %v1126
    %1156 = vmatpush.bf16.msra.mxu0 %v1125
    %1157 = vmatpush.bf16.msra.mxu0 %v1124
    %1158 = vmatpush.bf16.msra.mxu0 %v1123
    %1159 = vmatpush.bf16.msra.mxu0 %v1122
    %1160 = vmatpush.bf16.msra.mxu0 %v1121
    %1161 = vmatpush.bf16.msra.mxu0 %v1120
    %1162 = vmatmul.bf16.gmra.mxu0 %v1152
    %v1163 = vpop.f32.mrf.mxu0
    %v1164 = vadd.f32 0.0, %v1163
    %v1165 = vpop.f32.mrf.mxu0
    %1166 = vdwg.mxu0
    %v1167 = vadd.f32 %v1071, %v1164
    %s1168 = scalar_lea.vmem %s3, 64
    %v1169 = vld [vmem:[%s1168] sm:$0xf]
    %v1170 = vld [vmem:[%s1168 + $0x4] sm:$0xf]
    %v1171 = vld [vmem:[%s1168 + $0x8] sm:$0xf]
    %v1172 = vld [vmem:[%s1168 + $0xc] sm:$0xf]
    %v1173 = vld [vmem:[%s1168 + $0x10] sm:$0xf]
    %v1174 = vld [vmem:[%s1168 + $0x14] sm:$0xf]
    %v1175 = vld [vmem:[%s1168 + $0x18] sm:$0xf]
    %v1176 = vld [vmem:[%s1168 + $0x1c] sm:$0xf]
    %v1177 = vld [vmem:[%s1168 + $0x20] sm:$0xf]
    %v1178 = vld [vmem:[%s1168 + $0x24] sm:$0xf]
    %v1179 = vld [vmem:[%s1168 + $0x28] sm:$0xf]
    %v1180 = vld [vmem:[%s1168 + $0x2c] sm:$0xf]
    %v1181 = vld [vmem:[%s1168 + $0x30] sm:$0xf]
    %v1182 = vld [vmem:[%s1168 + $0x34] sm:$0xf]
    %v1183 = vld [vmem:[%s1168 + $0x38] sm:$0xf]
    %v1184 = vld [vmem:[%s1168 + $0x3c] sm:$0xf]
    %v1185 = vunpack.c.l.b16 %v1069
    %v1186 = vpack.c.b16 %v1185, %v1185
    %v1188 = vshrl.u32 %v1186, 16
    %v1207 = vunpack.c.l.b16 %v1169
    %v1208 = vunpack.c.l.b16 %v1170
    %v1209 = vunpack.c.l.b16 %v1171
    %v1210 = vunpack.c.l.b16 %v1172
    %v1211 = vunpack.c.l.b16 %v1173
    %v1212 = vunpack.c.l.b16 %v1174
    %v1213 = vunpack.c.l.b16 %v1175
    %v1214 = vunpack.c.l.b16 %v1176
    %v1215 = vunpack.c.l.b16 %v1177
    %v1216 = vunpack.c.l.b16 %v1178
    %v1217 = vunpack.c.l.b16 %v1179
    %v1218 = vunpack.c.l.b16 %v1180
    %v1219 = vunpack.c.l.b16 %v1181
    %v1220 = vunpack.c.l.b16 %v1182
    %v1221 = vunpack.c.l.b16 %v1183
    %v1222 = vunpack.c.l.b16 %v1184
    %v1223 = vpack.c.b16 %v1208, %v1207
    %v1224 = vpack.c.b16 %v1210, %v1209
    %v1225 = vpack.c.b16 %v1212, %v1211
    %v1226 = vpack.c.b16 %v1214, %v1213
    %v1227 = vpack.c.b16 %v1216, %v1215
    %v1228 = vpack.c.b16 %v1218, %v1217
    %v1229 = vpack.c.b16 %v1220, %v1219
    %v1230 = vpack.c.b16 %v1222, %v1221
    %1239 = vmatpush.bf16.msra.mxu0 %v1230
    %1240 = vmatpush.bf16.msra.mxu0 %v1229
    %1241 = vmatpush.bf16.msra.mxu0 %v1228
    %1242 = vmatpush.bf16.msra.mxu0 %v1227
    %1243 = vmatpush.bf16.msra.mxu0 %v1226
    %1244 = vmatpush.bf16.msra.mxu0 %v1225
    %1245 = vmatpush.bf16.msra.mxu0 %v1224
    %1246 = vmatpush.bf16.msra.mxu0 %v1223
    %1247 = vmatmul.bf16.gmra.mxu0 %v1188
    %v1248 = vpop.f32.mrf.mxu0
    %v1249 = vadd.f32 0.0, %v1248
    %v1250 = vpop.f32.mrf.mxu0
    %1251 = vdwg.mxu0
    %v1252 = vadd.f32 %v1149, %v1249
    %v1254 = vshrl.u32 %v1152, 16
    %1257 = vmatpush.bf16.msra.mxu0 %v1230
    %1258 = vmatpush.bf16.msra.mxu0 %v1229
    %1259 = vmatpush.bf16.msra.mxu0 %v1228
    %1260 = vmatpush.bf16.msra.mxu0 %v1227
    %1261 = vmatpush.bf16.msra.mxu0 %v1226
    %1262 = vmatpush.bf16.msra.mxu0 %v1225
    %1263 = vmatpush.bf16.msra.mxu0 %v1224
    %1264 = vmatpush.bf16.msra.mxu0 %v1223
    %1265 = vmatmul.bf16.gmra.mxu0 %v1254
    %v1266 = vpop.f32.mrf.mxu0
    %v1267 = vadd.f32 0.0, %v1266
    %v1268 = vpop.f32.mrf.mxu0
    %1269 = vdwg.mxu0
    %v1270 = vadd.f32 %v1167, %v1267
    %s1271 = scalar_lea.vmem %s3, 128
    %v1272 = vld [vmem:[%s1271] sm:$0xf]
    %v1273 = vld [vmem:[%s1271 + $0x4] sm:$0xf]
    %v1274 = vld [vmem:[%s1271 + $0x8] sm:$0xf]
    %v1275 = vld [vmem:[%s1271 + $0xc] sm:$0xf]
    %v1276 = vld [vmem:[%s1271 + $0x10] sm:$0xf]
    %v1277 = vld [vmem:[%s1271 + $0x14] sm:$0xf]
    %v1278 = vld [vmem:[%s1271 + $0x18] sm:$0xf]
    %v1279 = vld [vmem:[%s1271 + $0x1c] sm:$0xf]
    %v1280 = vld [vmem:[%s1271 + $0x20] sm:$0xf]
    %v1281 = vld [vmem:[%s1271 + $0x24] sm:$0xf]
    %v1282 = vld [vmem:[%s1271 + $0x28] sm:$0xf]
    %v1283 = vld [vmem:[%s1271 + $0x2c] sm:$0xf]
    %v1284 = vld [vmem:[%s1271 + $0x30] sm:$0xf]
    %v1285 = vld [vmem:[%s1271 + $0x34] sm:$0xf]
    %v1286 = vld [vmem:[%s1271 + $0x38] sm:$0xf]
    %v1287 = vld [vmem:[%s1271 + $0x3c] sm:$0xf]
    %v1288 = vrot.slane %v1186, 1
    %v1306 = vunpack.c.l.b16 %v1272
    %v1307 = vunpack.c.l.b16 %v1273
    %v1308 = vunpack.c.l.b16 %v1274
    %v1309 = vunpack.c.l.b16 %v1275
    %v1310 = vunpack.c.l.b16 %v1276
    %v1311 = vunpack.c.l.b16 %v1277
    %v1312 = vunpack.c.l.b16 %v1278
    %v1313 = vunpack.c.l.b16 %v1279
    %v1314 = vunpack.c.l.b16 %v1280
    %v1315 = vunpack.c.l.b16 %v1281
    %v1316 = vunpack.c.l.b16 %v1282
    %v1317 = vunpack.c.l.b16 %v1283
    %v1318 = vunpack.c.l.b16 %v1284
    %v1319 = vunpack.c.l.b16 %v1285
    %v1320 = vunpack.c.l.b16 %v1286
    %v1321 = vunpack.c.l.b16 %v1287
    %v1322 = vpack.c.b16 %v1307, %v1306
    %v1323 = vpack.c.b16 %v1309, %v1308
    %v1324 = vpack.c.b16 %v1311, %v1310
    %v1325 = vpack.c.b16 %v1313, %v1312
    %v1326 = vpack.c.b16 %v1315, %v1314
    %v1327 = vpack.c.b16 %v1317, %v1316
    %v1328 = vpack.c.b16 %v1319, %v1318
    %v1329 = vpack.c.b16 %v1321, %v1320
    %1338 = vmatpush.bf16.msra.mxu0 %v1329
    %1339 = vmatpush.bf16.msra.mxu0 %v1328
    %1340 = vmatpush.bf16.msra.mxu0 %v1327
    %1341 = vmatpush.bf16.msra.mxu0 %v1326
    %1342 = vmatpush.bf16.msra.mxu0 %v1325
    %1343 = vmatpush.bf16.msra.mxu0 %v1324
    %1344 = vmatpush.bf16.msra.mxu0 %v1323
    %1345 = vmatpush.bf16.msra.mxu0 %v1322
    %1346 = vmatmul.bf16.gmra.mxu0 %v1288
    %v1347 = vpop.f32.mrf.mxu0
    %v1348 = vadd.f32 0.0, %v1347
    %v1349 = vpop.f32.mrf.mxu0
    %1350 = vdwg.mxu0
    %v1351 = vadd.f32 %v1252, %v1348
    %v1352 = vrot.slane %v1152, 1
    %1354 = vmatpush.bf16.msra.mxu0 %v1329
    %1355 = vmatpush.bf16.msra.mxu0 %v1328
    %1356 = vmatpush.bf16.msra.mxu0 %v1327
    %1357 = vmatpush.bf16.msra.mxu0 %v1326
    %1358 = vmatpush.bf16.msra.mxu0 %v1325
    %1359 = vmatpush.bf16.msra.mxu0 %v1324
    %1360 = vmatpush.bf16.msra.mxu0 %v1323
    %1361 = vmatpush.bf16.msra.mxu0 %v1322
    %1362 = vmatmul.bf16.gmra.mxu0 %v1352
    %v1363 = vpop.f32.mrf.mxu0
    %v1364 = vadd.f32 0.0, %v1363
    %v1365 = vpop.f32.mrf.mxu0
    %1366 = vdwg.mxu0
    %v1367 = vadd.f32 %v1270, %v1364
    %s1368 = scalar_lea.vmem %s3, 192
    %v1369 = vld [vmem:[%s1368] sm:$0xf]
    %v1370 = vld [vmem:[%s1368 + $0x4] sm:$0xf]
    %v1371 = vld [vmem:[%s1368 + $0x8] sm:$0xf]
    %v1372 = vld [vmem:[%s1368 + $0xc] sm:$0xf]
    %v1373 = vld [vmem:[%s1368 + $0x10] sm:$0xf]
    %v1374 = vld [vmem:[%s1368 + $0x14] sm:$0xf]
    %v1375 = vld [vmem:[%s1368 + $0x18] sm:$0xf]
    %v1376 = vld [vmem:[%s1368 + $0x1c] sm:$0xf]
    %v1377 = vld [vmem:[%s1368 + $0x20] sm:$0xf]
    %v1378 = vld [vmem:[%s1368 + $0x24] sm:$0xf]
    %v1379 = vld [vmem:[%s1368 + $0x28] sm:$0xf]
    %v1380 = vld [vmem:[%s1368 + $0x2c] sm:$0xf]
    %v1381 = vld [vmem:[%s1368 + $0x30] sm:$0xf]
    %v1382 = vld [vmem:[%s1368 + $0x34] sm:$0xf]
    %v1383 = vld [vmem:[%s1368 + $0x38] sm:$0xf]
    %v1384 = vld [vmem:[%s1368 + $0x3c] sm:$0xf]
    %v1385 = vrot.slane %v1188, 1
    %v1403 = vunpack.c.l.b16 %v1369
    %v1404 = vunpack.c.l.b16 %v1370
    %v1405 = vunpack.c.l.b16 %v1371
    %v1406 = vunpack.c.l.b16 %v1372
    %v1407 = vunpack.c.l.b16 %v1373
    %v1408 = vunpack.c.l.b16 %v1374
    %v1409 = vunpack.c.l.b16 %v1375
    %v1410 = vunpack.c.l.b16 %v1376
    %v1411 = vunpack.c.l.b16 %v1377
    %v1412 = vunpack.c.l.b16 %v1378
    %v1413 = vunpack.c.l.b16 %v1379
    %v1414 = vunpack.c.l.b16 %v1380
    %v1415 = vunpack.c.l.b16 %v1381
    %v1416 = vunpack.c.l.b16 %v1382
    %v1417 = vunpack.c.l.b16 %v1383
    %v1418 = vunpack.c.l.b16 %v1384
    %v1419 = vpack.c.b16 %v1404, %v1403
    %v1420 = vpack.c.b16 %v1406, %v1405
    %v1421 = vpack.c.b16 %v1408, %v1407
    %v1422 = vpack.c.b16 %v1410, %v1409
    %v1423 = vpack.c.b16 %v1412, %v1411
    %v1424 = vpack.c.b16 %v1414, %v1413
    %v1425 = vpack.c.b16 %v1416, %v1415
    %v1426 = vpack.c.b16 %v1418, %v1417
    %1435 = vmatpush.bf16.msra.mxu0 %v1426
    %1436 = vmatpush.bf16.msra.mxu0 %v1425
    %1437 = vmatpush.bf16.msra.mxu0 %v1424
    %1438 = vmatpush.bf16.msra.mxu0 %v1423
    %1439 = vmatpush.bf16.msra.mxu0 %v1422
    %1440 = vmatpush.bf16.msra.mxu0 %v1421
    %1441 = vmatpush.bf16.msra.mxu0 %v1420
    %1442 = vmatpush.bf16.msra.mxu0 %v1419
    %1443 = vmatmul.bf16.gmra.mxu0 %v1385
    %v1444 = vpop.f32.mrf.mxu0
    %v1445 = vadd.f32 0.0, %v1444
    %v1446 = vpop.f32.mrf.mxu0
    %1447 = vdwg.mxu0
    %v1448 = vadd.f32 %v1351, %v1445
    %v1449 = vrot.slane %v1254, 1
    %1451 = vmatpush.bf16.msra.mxu0 %v1426
    %1452 = vmatpush.bf16.msra.mxu0 %v1425
    %1453 = vmatpush.bf16.msra.mxu0 %v1424
    %1454 = vmatpush.bf16.msra.mxu0 %v1423
    %1455 = vmatpush.bf16.msra.mxu0 %v1422
    %1456 = vmatpush.bf16.msra.mxu0 %v1421
    %1457 = vmatpush.bf16.msra.mxu0 %v1420
    %1458 = vmatpush.bf16.msra.mxu0 %v1419
    %1459 = vmatmul.bf16.gmra.mxu0 %v1449
    %v1460 = vpop.f32.mrf.mxu0
    %v1461 = vadd.f32 0.0, %v1460
    %v1462 = vpop.f32.mrf.mxu0
    %1463 = vdwg.mxu0
    %v1464 = vadd.f32 %v1367, %v1461
    %s1465 = scalar_lea.vmem %s3, 256
    %v1466 = vld [vmem:[%s1465] sm:$0xf]
    %v1467 = vld [vmem:[%s1465 + $0x4] sm:$0xf]
    %v1468 = vld [vmem:[%s1465 + $0x8] sm:$0xf]
    %v1469 = vld [vmem:[%s1465 + $0xc] sm:$0xf]
    %v1470 = vld [vmem:[%s1465 + $0x10] sm:$0xf]
    %v1471 = vld [vmem:[%s1465 + $0x14] sm:$0xf]
    %v1472 = vld [vmem:[%s1465 + $0x18] sm:$0xf]
    %v1473 = vld [vmem:[%s1465 + $0x1c] sm:$0xf]
    %v1474 = vld [vmem:[%s1465 + $0x20] sm:$0xf]
    %v1475 = vld [vmem:[%s1465 + $0x24] sm:$0xf]
    %v1476 = vld [vmem:[%s1465 + $0x28] sm:$0xf]
    %v1477 = vld [vmem:[%s1465 + $0x2c] sm:$0xf]
    %v1478 = vld [vmem:[%s1465 + $0x30] sm:$0xf]
    %v1479 = vld [vmem:[%s1465 + $0x34] sm:$0xf]
    %v1480 = vld [vmem:[%s1465 + $0x38] sm:$0xf]
    %v1481 = vld [vmem:[%s1465 + $0x3c] sm:$0xf]
    %v1482 = vrot.slane %v1186, 2
    %v1500 = vunpack.c.l.b16 %v1466
    %v1501 = vunpack.c.l.b16 %v1467
    %v1502 = vunpack.c.l.b16 %v1468
    %v1503 = vunpack.c.l.b16 %v1469
    %v1504 = vunpack.c.l.b16 %v1470
    %v1505 = vunpack.c.l.b16 %v1471
    %v1506 = vunpack.c.l.b16 %v1472
    %v1507 = vunpack.c.l.b16 %v1473
    %v1508 = vunpack.c.l.b16 %v1474
    %v1509 = vunpack.c.l.b16 %v1475
    %v1510 = vunpack.c.l.b16 %v1476
    %v1511 = vunpack.c.l.b16 %v1477
    %v1512 = vunpack.c.l.b16 %v1478
    %v1513 = vunpack.c.l.b16 %v1479
    %v1514 = vunpack.c.l.b16 %v1480
    %v1515 = vunpack.c.l.b16 %v1481
    %v1516 = vpack.c.b16 %v1501, %v1500
    %v1517 = vpack.c.b16 %v1503, %v1502
    %v1518 = vpack.c.b16 %v1505, %v1504
    %v1519 = vpack.c.b16 %v1507, %v1506
    %v1520 = vpack.c.b16 %v1509, %v1508
    %v1521 = vpack.c.b16 %v1511, %v1510
    %v1522 = vpack.c.b16 %v1513, %v1512
    %v1523 = vpack.c.b16 %v1515, %v1514
    %1532 = vmatpush.bf16.msra.mxu0 %v1523
    %1533 = vmatpush.bf16.msra.mxu0 %v1522
    %1534 = vmatpush.bf16.msra.mxu0 %v1521
    %1535 = vmatpush.bf16.msra.mxu0 %v1520
    %1536 = vmatpush.bf16.msra.mxu0 %v1519
    %1537 = vmatpush.bf16.msra.mxu0 %v1518
    %1538 = vmatpush.bf16.msra.mxu0 %v1517
    %1539 = vmatpush.bf16.msra.mxu0 %v1516
    %1540 = vmatmul.bf16.gmra.mxu0 %v1482
    %v1541 = vpop.f32.mrf.mxu0
    %v1542 = vadd.f32 0.0, %v1541
    %v1543 = vpop.f32.mrf.mxu0
    %1544 = vdwg.mxu0
    %v1545 = vadd.f32 %v1448, %v1542
    %v1546 = vrot.slane %v1152, 2
    %1548 = vmatpush.bf16.msra.mxu0 %v1523
    %1549 = vmatpush.bf16.msra.mxu0 %v1522
    %1550 = vmatpush.bf16.msra.mxu0 %v1521
    %1551 = vmatpush.bf16.msra.mxu0 %v1520
    %1552 = vmatpush.bf16.msra.mxu0 %v1519
    %1553 = vmatpush.bf16.msra.mxu0 %v1518
    %1554 = vmatpush.bf16.msra.mxu0 %v1517
    %1555 = vmatpush.bf16.msra.mxu0 %v1516
    %1556 = vmatmul.bf16.gmra.mxu0 %v1546
    %v1557 = vpop.f32.mrf.mxu0
    %v1558 = vadd.f32 0.0, %v1557
    %v1559 = vpop.f32.mrf.mxu0
    %1560 = vdwg.mxu0
    %v1561 = vadd.f32 %v1464, %v1558
    %s1562 = scalar_lea.vmem %s3, 320
    %v1563 = vld [vmem:[%s1562] sm:$0xf]
    %v1564 = vld [vmem:[%s1562 + $0x4] sm:$0xf]
    %v1565 = vld [vmem:[%s1562 + $0x8] sm:$0xf]
    %v1566 = vld [vmem:[%s1562 + $0xc] sm:$0xf]
    %v1567 = vld [vmem:[%s1562 + $0x10] sm:$0xf]
    %v1568 = vld [vmem:[%s1562 + $0x14] sm:$0xf]
    %v1569 = vld [vmem:[%s1562 + $0x18] sm:$0xf]
    %v1570 = vld [vmem:[%s1562 + $0x1c] sm:$0xf]
    %v1571 = vld [vmem:[%s1562 + $0x20] sm:$0xf]
    %v1572 = vld [vmem:[%s1562 + $0x24] sm:$0xf]
    %v1573 = vld [vmem:[%s1562 + $0x28] sm:$0xf]
    %v1574 = vld [vmem:[%s1562 + $0x2c] sm:$0xf]
    %v1575 = vld [vmem:[%s1562 + $0x30] sm:$0xf]
    %v1576 = vld [vmem:[%s1562 + $0x34] sm:$0xf]
    %v1577 = vld [vmem:[%s1562 + $0x38] sm:$0xf]
    %v1578 = vld [vmem:[%s1562 + $0x3c] sm:$0xf]
    %v1579 = vrot.slane %v1188, 2
    %v1597 = vunpack.c.l.b16 %v1563
    %v1598 = vunpack.c.l.b16 %v1564
    %v1599 = vunpack.c.l.b16 %v1565
    %v1600 = vunpack.c.l.b16 %v1566
    %v1601 = vunpack.c.l.b16 %v1567
    %v1602 = vunpack.c.l.b16 %v1568
    %v1603 = vunpack.c.l.b16 %v1569
    %v1604 = vunpack.c.l.b16 %v1570
    %v1605 = vunpack.c.l.b16 %v1571
    %v1606 = vunpack.c.l.b16 %v1572
    %v1607 = vunpack.c.l.b16 %v1573
    %v1608 = vunpack.c.l.b16 %v1574
    %v1609 = vunpack.c.l.b16 %v1575
    %v1610 = vunpack.c.l.b16 %v1576
    %v1611 = vunpack.c.l.b16 %v1577
    %v1612 = vunpack.c.l.b16 %v1578
    %v1613 = vpack.c.b16 %v1598, %v1597
    %v1614 = vpack.c.b16 %v1600, %v1599
    %v1615 = vpack.c.b16 %v1602, %v1601
    %v1616 = vpack.c.b16 %v1604, %v1603
    %v1617 = vpack.c.b16 %v1606, %v1605
    %v1618 = vpack.c.b16 %v1608, %v1607
    %v1619 = vpack.c.b16 %v1610, %v1609
    %v1620 = vpack.c.b16 %v1612, %v1611
    %1629 = vmatpush.bf16.msra.mxu0 %v1620
    %1630 = vmatpush.bf16.msra.mxu0 %v1619
    %1631 = vmatpush.bf16.msra.mxu0 %v1618
    %1632 = vmatpush.bf16.msra.mxu0 %v1617
    %1633 = vmatpush.bf16.msra.mxu0 %v1616
    %1634 = vmatpush.bf16.msra.mxu0 %v1615
    %1635 = vmatpush.bf16.msra.mxu0 %v1614
    %1636 = vmatpush.bf16.msra.mxu0 %v1613
    %1637 = vmatmul.bf16.gmra.mxu0 %v1579
    %v1638 = vpop.f32.mrf.mxu0
    %v1639 = vadd.f32 0.0, %v1638
    %v1640 = vpop.f32.mrf.mxu0
    %1641 = vdwg.mxu0
    %v1642 = vadd.f32 %v1545, %v1639
    %v1643 = vrot.slane %v1254, 2
    %1645 = vmatpush.bf16.msra.mxu0 %v1620
    %1646 = vmatpush.bf16.msra.mxu0 %v1619
    %1647 = vmatpush.bf16.msra.mxu0 %v1618
    %1648 = vmatpush.bf16.msra.mxu0 %v1617
    %1649 = vmatpush.bf16.msra.mxu0 %v1616
    %1650 = vmatpush.bf16.msra.mxu0 %v1615
    %1651 = vmatpush.bf16.msra.mxu0 %v1614
    %1652 = vmatpush.bf16.msra.mxu0 %v1613
    %1653 = vmatmul.bf16.gmra.mxu0 %v1643
    %v1654 = vpop.f32.mrf.mxu0
    %v1655 = vadd.f32 0.0, %v1654
    %v1656 = vpop.f32.mrf.mxu0
    %1657 = vdwg.mxu0
    %v1658 = vadd.f32 %v1561, %v1655
    %s1659 = scalar_lea.vmem %s3, 384
    %v1660 = vld [vmem:[%s1659] sm:$0xf]
    %v1661 = vld [vmem:[%s1659 + $0x4] sm:$0xf]
    %v1662 = vld [vmem:[%s1659 + $0x8] sm:$0xf]
    %v1663 = vld [vmem:[%s1659 + $0xc] sm:$0xf]
    %v1664 = vld [vmem:[%s1659 + $0x10] sm:$0xf]
    %v1665 = vld [vmem:[%s1659 + $0x14] sm:$0xf]
    %v1666 = vld [vmem:[%s1659 + $0x18] sm:$0xf]
    %v1667 = vld [vmem:[%s1659 + $0x1c] sm:$0xf]
    %v1668 = vld [vmem:[%s1659 + $0x20] sm:$0xf]
    %v1669 = vld [vmem:[%s1659 + $0x24] sm:$0xf]
    %v1670 = vld [vmem:[%s1659 + $0x28] sm:$0xf]
    %v1671 = vld [vmem:[%s1659 + $0x2c] sm:$0xf]
    %v1672 = vld [vmem:[%s1659 + $0x30] sm:$0xf]
    %v1673 = vld [vmem:[%s1659 + $0x34] sm:$0xf]
    %v1674 = vld [vmem:[%s1659 + $0x38] sm:$0xf]
    %v1675 = vld [vmem:[%s1659 + $0x3c] sm:$0xf]
    %v1676 = vrot.slane %v1186, 3
    %v1694 = vunpack.c.l.b16 %v1660
    %v1695 = vunpack.c.l.b16 %v1661
    %v1696 = vunpack.c.l.b16 %v1662
    %v1697 = vunpack.c.l.b16 %v1663
    %v1698 = vunpack.c.l.b16 %v1664
    %v1699 = vunpack.c.l.b16 %v1665
    %v1700 = vunpack.c.l.b16 %v1666
    %v1701 = vunpack.c.l.b16 %v1667
    %v1702 = vunpack.c.l.b16 %v1668
    %v1703 = vunpack.c.l.b16 %v1669
    %v1704 = vunpack.c.l.b16 %v1670
    %v1705 = vunpack.c.l.b16 %v1671
    %v1706 = vunpack.c.l.b16 %v1672
    %v1707 = vunpack.c.l.b16 %v1673
    %v1708 = vunpack.c.l.b16 %v1674
    %v1709 = vunpack.c.l.b16 %v1675
    %v1710 = vpack.c.b16 %v1695, %v1694
    %v1711 = vpack.c.b16 %v1697, %v1696
    %v1712 = vpack.c.b16 %v1699, %v1698
    %v1713 = vpack.c.b16 %v1701, %v1700
    %v1714 = vpack.c.b16 %v1703, %v1702
    %v1715 = vpack.c.b16 %v1705, %v1704
    %v1716 = vpack.c.b16 %v1707, %v1706
    %v1717 = vpack.c.b16 %v1709, %v1708
    %1726 = vmatpush.bf16.msra.mxu0 %v1717
    %1727 = vmatpush.bf16.msra.mxu0 %v1716
    %1728 = vmatpush.bf16.msra.mxu0 %v1715
    %1729 = vmatpush.bf16.msra.mxu0 %v1714
    %1730 = vmatpush.bf16.msra.mxu0 %v1713
    %1731 = vmatpush.bf16.msra.mxu0 %v1712
    %1732 = vmatpush.bf16.msra.mxu0 %v1711
    %1733 = vmatpush.bf16.msra.mxu0 %v1710
    %1734 = vmatmul.bf16.gmra.mxu0 %v1676
    %v1735 = vpop.f32.mrf.mxu0
    %v1736 = vadd.f32 0.0, %v1735
    %v1737 = vpop.f32.mrf.mxu0
    %1738 = vdwg.mxu0
    %v1739 = vadd.f32 %v1642, %v1736
    %v1740 = vrot.slane %v1152, 3
    %1742 = vmatpush.bf16.msra.mxu0 %v1717
    %1743 = vmatpush.bf16.msra.mxu0 %v1716
    %1744 = vmatpush.bf16.msra.mxu0 %v1715
    %1745 = vmatpush.bf16.msra.mxu0 %v1714
    %1746 = vmatpush.bf16.msra.mxu0 %v1713
    %1747 = vmatpush.bf16.msra.mxu0 %v1712
    %1748 = vmatpush.bf16.msra.mxu0 %v1711
    %1749 = vmatpush.bf16.msra.mxu0 %v1710
    %1750 = vmatmul.bf16.gmra.mxu0 %v1740
    %v1751 = vpop.f32.mrf.mxu0
    %v1752 = vadd.f32 0.0, %v1751
    %v1753 = vpop.f32.mrf.mxu0
    %1754 = vdwg.mxu0
    %v1755 = vadd.f32 %v1658, %v1752
    %s1756 = scalar_lea.vmem %s3, 448
    %v1757 = vld [vmem:[%s1756] sm:$0xf]
    %v1758 = vld [vmem:[%s1756 + $0x4] sm:$0xf]
    %v1759 = vld [vmem:[%s1756 + $0x8] sm:$0xf]
    %v1760 = vld [vmem:[%s1756 + $0xc] sm:$0xf]
    %v1761 = vld [vmem:[%s1756 + $0x10] sm:$0xf]
    %v1762 = vld [vmem:[%s1756 + $0x14] sm:$0xf]
    %v1763 = vld [vmem:[%s1756 + $0x18] sm:$0xf]
    %v1764 = vld [vmem:[%s1756 + $0x1c] sm:$0xf]
    %v1765 = vld [vmem:[%s1756 + $0x20] sm:$0xf]
    %v1766 = vld [vmem:[%s1756 + $0x24] sm:$0xf]
    %v1767 = vld [vmem:[%s1756 + $0x28] sm:$0xf]
    %v1768 = vld [vmem:[%s1756 + $0x2c] sm:$0xf]
    %v1769 = vld [vmem:[%s1756 + $0x30] sm:$0xf]
    %v1770 = vld [vmem:[%s1756 + $0x34] sm:$0xf]
    %v1771 = vld [vmem:[%s1756 + $0x38] sm:$0xf]
    %v1772 = vld [vmem:[%s1756 + $0x3c] sm:$0xf]
    %v1773 = vrot.slane %v1188, 3
    %v1791 = vunpack.c.l.b16 %v1757
    %v1792 = vunpack.c.l.b16 %v1758
    %v1793 = vunpack.c.l.b16 %v1759
    %v1794 = vunpack.c.l.b16 %v1760
    %v1795 = vunpack.c.l.b16 %v1761
    %v1796 = vunpack.c.l.b16 %v1762
    %v1797 = vunpack.c.l.b16 %v1763
    %v1798 = vunpack.c.l.b16 %v1764
    %v1799 = vunpack.c.l.b16 %v1765
    %v1800 = vunpack.c.l.b16 %v1766
    %v1801 = vunpack.c.l.b16 %v1767
    %v1802 = vunpack.c.l.b16 %v1768
    %v1803 = vunpack.c.l.b16 %v1769
    %v1804 = vunpack.c.l.b16 %v1770
    %v1805 = vunpack.c.l.b16 %v1771
    %v1806 = vunpack.c.l.b16 %v1772
    %v1807 = vpack.c.b16 %v1792, %v1791
    %v1808 = vpack.c.b16 %v1794, %v1793
    %v1809 = vpack.c.b16 %v1796, %v1795
    %v1810 = vpack.c.b16 %v1798, %v1797
    %v1811 = vpack.c.b16 %v1800, %v1799
    %v1812 = vpack.c.b16 %v1802, %v1801
    %v1813 = vpack.c.b16 %v1804, %v1803
    %v1814 = vpack.c.b16 %v1806, %v1805
    %1823 = vmatpush.bf16.msra.mxu0 %v1814
    %1824 = vmatpush.bf16.msra.mxu0 %v1813
    %1825 = vmatpush.bf16.msra.mxu0 %v1812
    %1826 = vmatpush.bf16.msra.mxu0 %v1811
    %1827 = vmatpush.bf16.msra.mxu0 %v1810
    %1828 = vmatpush.bf16.msra.mxu0 %v1809
    %1829 = vmatpush.bf16.msra.mxu0 %v1808
    %1830 = vmatpush.bf16.msra.mxu0 %v1807
    %1831 = vmatmul.bf16.gmra.mxu0 %v1773
    %v1832 = vpop.f32.mrf.mxu0
    %v1833 = vadd.f32 0.0, %v1832
    %v1834 = vpop.f32.mrf.mxu0
    %1835 = vdwg.mxu0
    %v1836 = vadd.f32 %v1739, %v1833
    %v1837 = vrot.slane %v1254, 3
    %1839 = vmatpush.bf16.msra.mxu0 %v1814
    %1840 = vmatpush.bf16.msra.mxu0 %v1813
    %1841 = vmatpush.bf16.msra.mxu0 %v1812
    %1842 = vmatpush.bf16.msra.mxu0 %v1811
    %1843 = vmatpush.bf16.msra.mxu0 %v1810
    %1844 = vmatpush.bf16.msra.mxu0 %v1809
    %1845 = vmatpush.bf16.msra.mxu0 %v1808
    %1846 = vmatpush.bf16.msra.mxu0 %v1807
    %1847 = vmatmul.bf16.gmra.mxu0 %v1837
    %v1848 = vpop.f32.mrf.mxu0
    %v1849 = vadd.f32 0.0, %v1848
    %v1850 = vpop.f32.mrf.mxu0
    %1851 = vdwg.mxu0
    %v1852 = vadd.f32 %v1755, %v1849
    %s1853 = scalar_lea.vmem %s3, 512
    %v1854 = vld [vmem:[%s1853] sm:$0xf]
    %v1855 = vld [vmem:[%s1853 + $0x4] sm:$0xf]
    %v1856 = vld [vmem:[%s1853 + $0x8] sm:$0xf]
    %v1857 = vld [vmem:[%s1853 + $0xc] sm:$0xf]
    %v1858 = vld [vmem:[%s1853 + $0x10] sm:$0xf]
    %v1859 = vld [vmem:[%s1853 + $0x14] sm:$0xf]
    %v1860 = vld [vmem:[%s1853 + $0x18] sm:$0xf]
    %v1861 = vld [vmem:[%s1853 + $0x1c] sm:$0xf]
    %v1862 = vld [vmem:[%s1853 + $0x20] sm:$0xf]
    %v1863 = vld [vmem:[%s1853 + $0x24] sm:$0xf]
    %v1864 = vld [vmem:[%s1853 + $0x28] sm:$0xf]
    %v1865 = vld [vmem:[%s1853 + $0x2c] sm:$0xf]
    %v1866 = vld [vmem:[%s1853 + $0x30] sm:$0xf]
    %v1867 = vld [vmem:[%s1853 + $0x34] sm:$0xf]
    %v1868 = vld [vmem:[%s1853 + $0x38] sm:$0xf]
    %v1869 = vld [vmem:[%s1853 + $0x3c] sm:$0xf]
    %v1886 = vunpack.c.l.b16 %v1854
    %v1887 = vunpack.c.l.b16 %v1855
    %v1888 = vunpack.c.l.b16 %v1856
    %v1889 = vunpack.c.l.b16 %v1857
    %v1890 = vunpack.c.l.b16 %v1858
    %v1891 = vunpack.c.l.b16 %v1859
    %v1892 = vunpack.c.l.b16 %v1860
    %v1893 = vunpack.c.l.b16 %v1861
    %v1894 = vunpack.c.l.b16 %v1862
    %v1895 = vunpack.c.l.b16 %v1863
    %v1896 = vunpack.c.l.b16 %v1864
    %v1897 = vunpack.c.l.b16 %v1865
    %v1898 = vunpack.c.l.b16 %v1866
    %v1899 = vunpack.c.l.b16 %v1867
    %v1900 = vunpack.c.l.b16 %v1868
    %v1901 = vunpack.c.l.b16 %v1869
    %v1902 = vpack.c.b16 %v1887, %v1886
    %v1903 = vpack.c.b16 %v1889, %v1888
    %v1904 = vpack.c.b16 %v1891, %v1890
    %v1905 = vpack.c.b16 %v1893, %v1892
    %v1906 = vpack.c.b16 %v1895, %v1894
    %v1907 = vpack.c.b16 %v1897, %v1896
    %v1908 = vpack.c.b16 %v1899, %v1898
    %v1909 = vpack.c.b16 %v1901, %v1900
    %1918 = vmatpush.bf16.msra.mxu0 %v1909
    %1919 = vmatpush.bf16.msra.mxu0 %v1908
    %1920 = vmatpush.bf16.msra.mxu0 %v1907
    %1921 = vmatpush.bf16.msra.mxu0 %v1906
    %1922 = vmatpush.bf16.msra.mxu0 %v1905
    %1923 = vmatpush.bf16.msra.mxu0 %v1904
    %1924 = vmatpush.bf16.msra.mxu0 %v1903
    %1925 = vmatpush.bf16.msra.mxu0 %v1902
    %1926 = vmatmul.bf16.gmra.mxu0 %v1070
    %v1927 = vpop.f32.mrf.mxu0
    %v1928 = vadd.f32 0.0, %v1927
    %v1929 = vpop.f32.mrf.mxu0
    %1930 = vdwg.mxu0
    %v1931 = vadd.f32 %v1836, %v1928
    %v1933 = vunpack.c.h.b16 %v1070
    %v1934 = vpack.c.b16 %v1933, %v1933
    %1936 = vmatpush.bf16.msra.mxu0 %v1909
    %1937 = vmatpush.bf16.msra.mxu0 %v1908
    %1938 = vmatpush.bf16.msra.mxu0 %v1907
    %1939 = vmatpush.bf16.msra.mxu0 %v1906
    %1940 = vmatpush.bf16.msra.mxu0 %v1905
    %1941 = vmatpush.bf16.msra.mxu0 %v1904
    %1942 = vmatpush.bf16.msra.mxu0 %v1903
    %1943 = vmatpush.bf16.msra.mxu0 %v1902
    %1944 = vmatmul.bf16.gmra.mxu0 %v1934
    %v1945 = vpop.f32.mrf.mxu0
    %v1946 = vadd.f32 0.0, %v1945
    %v1947 = vpop.f32.mrf.mxu0
    %1948 = vdwg.mxu0
    %v1949 = vadd.f32 %v1852, %v1946
    %s1950 = scalar_lea.vmem %s3, 576
    %v1951 = vld [vmem:[%s1950] sm:$0xf]
    %v1952 = vld [vmem:[%s1950 + $0x4] sm:$0xf]
    %v1953 = vld [vmem:[%s1950 + $0x8] sm:$0xf]
    %v1954 = vld [vmem:[%s1950 + $0xc] sm:$0xf]
    %v1955 = vld [vmem:[%s1950 + $0x10] sm:$0xf]
    %v1956 = vld [vmem:[%s1950 + $0x14] sm:$0xf]
    %v1957 = vld [vmem:[%s1950 + $0x18] sm:$0xf]
    %v1958 = vld [vmem:[%s1950 + $0x1c] sm:$0xf]
    %v1959 = vld [vmem:[%s1950 + $0x20] sm:$0xf]
    %v1960 = vld [vmem:[%s1950 + $0x24] sm:$0xf]
    %v1961 = vld [vmem:[%s1950 + $0x28] sm:$0xf]
    %v1962 = vld [vmem:[%s1950 + $0x2c] sm:$0xf]
    %v1963 = vld [vmem:[%s1950 + $0x30] sm:$0xf]
    %v1964 = vld [vmem:[%s1950 + $0x34] sm:$0xf]
    %v1965 = vld [vmem:[%s1950 + $0x38] sm:$0xf]
    %v1966 = vld [vmem:[%s1950 + $0x3c] sm:$0xf]
    %v1967 = vunpack.c.l.b16 %v1070
    %v1968 = vpack.c.b16 %v1967, %v1967
    %v1970 = vshrl.u32 %v1968, 16
    %v1989 = vunpack.c.l.b16 %v1951
    %v1990 = vunpack.c.l.b16 %v1952
    %v1991 = vunpack.c.l.b16 %v1953
    %v1992 = vunpack.c.l.b16 %v1954
    %v1993 = vunpack.c.l.b16 %v1955
    %v1994 = vunpack.c.l.b16 %v1956
    %v1995 = vunpack.c.l.b16 %v1957
    %v1996 = vunpack.c.l.b16 %v1958
    %v1997 = vunpack.c.l.b16 %v1959
    %v1998 = vunpack.c.l.b16 %v1960
    %v1999 = vunpack.c.l.b16 %v1961
    %v2000 = vunpack.c.l.b16 %v1962
    %v2001 = vunpack.c.l.b16 %v1963
    %v2002 = vunpack.c.l.b16 %v1964
    %v2003 = vunpack.c.l.b16 %v1965
    %v2004 = vunpack.c.l.b16 %v1966
    %v2005 = vpack.c.b16 %v1990, %v1989
    %v2006 = vpack.c.b16 %v1992, %v1991
    %v2007 = vpack.c.b16 %v1994, %v1993
    %v2008 = vpack.c.b16 %v1996, %v1995
    %v2009 = vpack.c.b16 %v1998, %v1997
    %v2010 = vpack.c.b16 %v2000, %v1999
    %v2011 = vpack.c.b16 %v2002, %v2001
    %v2012 = vpack.c.b16 %v2004, %v2003
    %2021 = vmatpush.bf16.msra.mxu0 %v2012
    %2022 = vmatpush.bf16.msra.mxu0 %v2011
    %2023 = vmatpush.bf16.msra.mxu0 %v2010
    %2024 = vmatpush.bf16.msra.mxu0 %v2009
    %2025 = vmatpush.bf16.msra.mxu0 %v2008
    %2026 = vmatpush.bf16.msra.mxu0 %v2007
    %2027 = vmatpush.bf16.msra.mxu0 %v2006
    %2028 = vmatpush.bf16.msra.mxu0 %v2005
    %2029 = vmatmul.bf16.gmra.mxu0 %v1970
    %v2030 = vpop.f32.mrf.mxu0
    %v2031 = vadd.f32 0.0, %v2030
    %v2032 = vpop.f32.mrf.mxu0
    %2033 = vdwg.mxu0
    %v2034 = vadd.f32 %v1931, %v2031
    %v2036 = vshrl.u32 %v1934, 16
    %2039 = vmatpush.bf16.msra.mxu0 %v2012
    %2040 = vmatpush.bf16.msra.mxu0 %v2011
    %2041 = vmatpush.bf16.msra.mxu0 %v2010
    %2042 = vmatpush.bf16.msra.mxu0 %v2009
    %2043 = vmatpush.bf16.msra.mxu0 %v2008
    %2044 = vmatpush.bf16.msra.mxu0 %v2007
    %2045 = vmatpush.bf16.msra.mxu0 %v2006
    %2046 = vmatpush.bf16.msra.mxu0 %v2005
    %2047 = vmatmul.bf16.gmra.mxu0 %v2036
    %v2048 = vpop.f32.mrf.mxu0
    %v2049 = vadd.f32 0.0, %v2048
    %v2050 = vpop.f32.mrf.mxu0
    %2051 = vdwg.mxu0
    %v2052 = vadd.f32 %v1949, %v2049
    %s2053 = scalar_lea.vmem %s3, 640
    %v2054 = vld [vmem:[%s2053] sm:$0xf]
    %v2055 = vld [vmem:[%s2053 + $0x4] sm:$0xf]
    %v2056 = vld [vmem:[%s2053 + $0x8] sm:$0xf]
    %v2057 = vld [vmem:[%s2053 + $0xc] sm:$0xf]
    %v2058 = vld [vmem:[%s2053 + $0x10] sm:$0xf]
    %v2059 = vld [vmem:[%s2053 + $0x14] sm:$0xf]
    %v2060 = vld [vmem:[%s2053 + $0x18] sm:$0xf]
    %v2061 = vld [vmem:[%s2053 + $0x1c] sm:$0xf]
    %v2062 = vld [vmem:[%s2053 + $0x20] sm:$0xf]
    %v2063 = vld [vmem:[%s2053 + $0x24] sm:$0xf]
    %v2064 = vld [vmem:[%s2053 + $0x28] sm:$0xf]
    %v2065 = vld [vmem:[%s2053 + $0x2c] sm:$0xf]
    %v2066 = vld [vmem:[%s2053 + $0x30] sm:$0xf]
    %v2067 = vld [vmem:[%s2053 + $0x34] sm:$0xf]
    %v2068 = vld [vmem:[%s2053 + $0x38] sm:$0xf]
    %v2069 = vld [vmem:[%s2053 + $0x3c] sm:$0xf]
    %v2070 = vrot.slane %v1968, 1
    %v2088 = vunpack.c.l.b16 %v2054
    %v2089 = vunpack.c.l.b16 %v2055
    %v2090 = vunpack.c.l.b16 %v2056
    %v2091 = vunpack.c.l.b16 %v2057
    %v2092 = vunpack.c.l.b16 %v2058
    %v2093 = vunpack.c.l.b16 %v2059
    %v2094 = vunpack.c.l.b16 %v2060
    %v2095 = vunpack.c.l.b16 %v2061
    %v2096 = vunpack.c.l.b16 %v2062
    %v2097 = vunpack.c.l.b16 %v2063
    %v2098 = vunpack.c.l.b16 %v2064
    %v2099 = vunpack.c.l.b16 %v2065
    %v2100 = vunpack.c.l.b16 %v2066
    %v2101 = vunpack.c.l.b16 %v2067
    %v2102 = vunpack.c.l.b16 %v2068
    %v2103 = vunpack.c.l.b16 %v2069
    %v2104 = vpack.c.b16 %v2089, %v2088
    %v2105 = vpack.c.b16 %v2091, %v2090
    %v2106 = vpack.c.b16 %v2093, %v2092
    %v2107 = vpack.c.b16 %v2095, %v2094
    %v2108 = vpack.c.b16 %v2097, %v2096
    %v2109 = vpack.c.b16 %v2099, %v2098
    %v2110 = vpack.c.b16 %v2101, %v2100
    %v2111 = vpack.c.b16 %v2103, %v2102
    %2120 = vmatpush.bf16.msra.mxu0 %v2111
    %2121 = vmatpush.bf16.msra.mxu0 %v2110
    %2122 = vmatpush.bf16.msra.mxu0 %v2109
    %2123 = vmatpush.bf16.msra.mxu0 %v2108
    %2124 = vmatpush.bf16.msra.mxu0 %v2107
    %2125 = vmatpush.bf16.msra.mxu0 %v2106
    %2126 = vmatpush.bf16.msra.mxu0 %v2105
    %2127 = vmatpush.bf16.msra.mxu0 %v2104
    %2128 = vmatmul.bf16.gmra.mxu0 %v2070
    %v2129 = vpop.f32.mrf.mxu0
    %v2130 = vadd.f32 0.0, %v2129
    %v2131 = vpop.f32.mrf.mxu0
    %2132 = vdwg.mxu0
    %v2133 = vadd.f32 %v2034, %v2130
    %v2134 = vrot.slane %v1934, 1
    %2136 = vmatpush.bf16.msra.mxu0 %v2111
    %2137 = vmatpush.bf16.msra.mxu0 %v2110
    %2138 = vmatpush.bf16.msra.mxu0 %v2109
    %2139 = vmatpush.bf16.msra.mxu0 %v2108
    %2140 = vmatpush.bf16.msra.mxu0 %v2107
    %2141 = vmatpush.bf16.msra.mxu0 %v2106
    %2142 = vmatpush.bf16.msra.mxu0 %v2105
    %2143 = vmatpush.bf16.msra.mxu0 %v2104
    %2144 = vmatmul.bf16.gmra.mxu0 %v2134
    %v2145 = vpop.f32.mrf.mxu0
    %v2146 = vadd.f32 0.0, %v2145
    %v2147 = vpop.f32.mrf.mxu0
    %2148 = vdwg.mxu0
    %v2149 = vadd.f32 %v2052, %v2146
    %s2150 = scalar_lea.vmem %s3, 704
    %v2151 = vld [vmem:[%s2150] sm:$0xf]
    %v2152 = vld [vmem:[%s2150 + $0x4] sm:$0xf]
    %v2153 = vld [vmem:[%s2150 + $0x8] sm:$0xf]
    %v2154 = vld [vmem:[%s2150 + $0xc] sm:$0xf]
    %v2155 = vld [vmem:[%s2150 + $0x10] sm:$0xf]
    %v2156 = vld [vmem:[%s2150 + $0x14] sm:$0xf]
    %v2157 = vld [vmem:[%s2150 + $0x18] sm:$0xf]
    %v2158 = vld [vmem:[%s2150 + $0x1c] sm:$0xf]
    %v2159 = vld [vmem:[%s2150 + $0x20] sm:$0xf]
    %v2160 = vld [vmem:[%s2150 + $0x24] sm:$0xf]
    %v2161 = vld [vmem:[%s2150 + $0x28] sm:$0xf]
    %v2162 = vld [vmem:[%s2150 + $0x2c] sm:$0xf]
    %v2163 = vld [vmem:[%s2150 + $0x30] sm:$0xf]
    %v2164 = vld [vmem:[%s2150 + $0x34] sm:$0xf]
    %v2165 = vld [vmem:[%s2150 + $0x38] sm:$0xf]
    %v2166 = vld [vmem:[%s2150 + $0x3c] sm:$0xf]
    %v2167 = vrot.slane %v1970, 1
    %v2185 = vunpack.c.l.b16 %v2151
    %v2186 = vunpack.c.l.b16 %v2152
    %v2187 = vunpack.c.l.b16 %v2153
    %v2188 = vunpack.c.l.b16 %v2154
    %v2189 = vunpack.c.l.b16 %v2155
    %v2190 = vunpack.c.l.b16 %v2156
    %v2191 = vunpack.c.l.b16 %v2157
    %v2192 = vunpack.c.l.b16 %v2158
    %v2193 = vunpack.c.l.b16 %v2159
    %v2194 = vunpack.c.l.b16 %v2160
    %v2195 = vunpack.c.l.b16 %v2161
    %v2196 = vunpack.c.l.b16 %v2162
    %v2197 = vunpack.c.l.b16 %v2163
    %v2198 = vunpack.c.l.b16 %v2164
    %v2199 = vunpack.c.l.b16 %v2165
    %v2200 = vunpack.c.l.b16 %v2166
    %v2201 = vpack.c.b16 %v2186, %v2185
    %v2202 = vpack.c.b16 %v2188, %v2187
    %v2203 = vpack.c.b16 %v2190, %v2189
    %v2204 = vpack.c.b16 %v2192, %v2191
    %v2205 = vpack.c.b16 %v2194, %v2193
    %v2206 = vpack.c.b16 %v2196, %v2195
    %v2207 = vpack.c.b16 %v2198, %v2197
    %v2208 = vpack.c.b16 %v2200, %v2199
    %2217 = vmatpush.bf16.msra.mxu0 %v2208
    %2218 = vmatpush.bf16.msra.mxu0 %v2207
    %2219 = vmatpush.bf16.msra.mxu0 %v2206
    %2220 = vmatpush.bf16.msra.mxu0 %v2205
    %2221 = vmatpush.bf16.msra.mxu0 %v2204
    %2222 = vmatpush.bf16.msra.mxu0 %v2203
    %2223 = vmatpush.bf16.msra.mxu0 %v2202
    %2224 = vmatpush.bf16.msra.mxu0 %v2201
    %2225 = vmatmul.bf16.gmra.mxu0 %v2167
    %v2226 = vpop.f32.mrf.mxu0
    %v2227 = vadd.f32 0.0, %v2226
    %v2228 = vpop.f32.mrf.mxu0
    %2229 = vdwg.mxu0
    %v2230 = vadd.f32 %v2133, %v2227
    %v2231 = vrot.slane %v2036, 1
    %2233 = vmatpush.bf16.msra.mxu0 %v2208
    %2234 = vmatpush.bf16.msra.mxu0 %v2207
    %2235 = vmatpush.bf16.msra.mxu0 %v2206
    %2236 = vmatpush.bf16.msra.mxu0 %v2205
    %2237 = vmatpush.bf16.msra.mxu0 %v2204
    %2238 = vmatpush.bf16.msra.mxu0 %v2203
    %2239 = vmatpush.bf16.msra.mxu0 %v2202
    %2240 = vmatpush.bf16.msra.mxu0 %v2201
    %2241 = vmatmul.bf16.gmra.mxu0 %v2231
    %v2242 = vpop.f32.mrf.mxu0
    %v2243 = vadd.f32 0.0, %v2242
    %v2244 = vpop.f32.mrf.mxu0
    %2245 = vdwg.mxu0
    %v2246 = vadd.f32 %v2149, %v2243
    %s2247 = scalar_lea.vmem %s3, 768
    %v2248 = vld [vmem:[%s2247] sm:$0xf]
    %v2249 = vld [vmem:[%s2247 + $0x4] sm:$0xf]
    %v2250 = vld [vmem:[%s2247 + $0x8] sm:$0xf]
    %v2251 = vld [vmem:[%s2247 + $0xc] sm:$0xf]
    %v2252 = vld [vmem:[%s2247 + $0x10] sm:$0xf]
    %v2253 = vld [vmem:[%s2247 + $0x14] sm:$0xf]
    %v2254 = vld [vmem:[%s2247 + $0x18] sm:$0xf]
    %v2255 = vld [vmem:[%s2247 + $0x1c] sm:$0xf]
    %v2256 = vld [vmem:[%s2247 + $0x20] sm:$0xf]
    %v2257 = vld [vmem:[%s2247 + $0x24] sm:$0xf]
    %v2258 = vld [vmem:[%s2247 + $0x28] sm:$0xf]
    %v2259 = vld [vmem:[%s2247 + $0x2c] sm:$0xf]
    %v2260 = vld [vmem:[%s2247 + $0x30] sm:$0xf]
    %v2261 = vld [vmem:[%s2247 + $0x34] sm:$0xf]
    %v2262 = vld [vmem:[%s2247 + $0x38] sm:$0xf]
    %v2263 = vld [vmem:[%s2247 + $0x3c] sm:$0xf]
    %v2264 = vrot.slane %v1968, 2
    %v2282 = vunpack.c.l.b16 %v2248
    %v2283 = vunpack.c.l.b16 %v2249
    %v2284 = vunpack.c.l.b16 %v2250
    %v2285 = vunpack.c.l.b16 %v2251
    %v2286 = vunpack.c.l.b16 %v2252
    %v2287 = vunpack.c.l.b16 %v2253
    %v2288 = vunpack.c.l.b16 %v2254
    %v2289 = vunpack.c.l.b16 %v2255
    %v2290 = vunpack.c.l.b16 %v2256
    %v2291 = vunpack.c.l.b16 %v2257
    %v2292 = vunpack.c.l.b16 %v2258
    %v2293 = vunpack.c.l.b16 %v2259
    %v2294 = vunpack.c.l.b16 %v2260
    %v2295 = vunpack.c.l.b16 %v2261
    %v2296 = vunpack.c.l.b16 %v2262
    %v2297 = vunpack.c.l.b16 %v2263
    %v2298 = vpack.c.b16 %v2283, %v2282
    %v2299 = vpack.c.b16 %v2285, %v2284
    %v2300 = vpack.c.b16 %v2287, %v2286
    %v2301 = vpack.c.b16 %v2289, %v2288
    %v2302 = vpack.c.b16 %v2291, %v2290
    %v2303 = vpack.c.b16 %v2293, %v2292
    %v2304 = vpack.c.b16 %v2295, %v2294
    %v2305 = vpack.c.b16 %v2297, %v2296
    %2314 = vmatpush.bf16.msra.mxu0 %v2305
    %2315 = vmatpush.bf16.msra.mxu0 %v2304
    %2316 = vmatpush.bf16.msra.mxu0 %v2303
    %2317 = vmatpush.bf16.msra.mxu0 %v2302
    %2318 = vmatpush.bf16.msra.mxu0 %v2301
    %2319 = vmatpush.bf16.msra.mxu0 %v2300
    %2320 = vmatpush.bf16.msra.mxu0 %v2299
    %2321 = vmatpush.bf16.msra.mxu0 %v2298
    %2322 = vmatmul.bf16.gmra.mxu0 %v2264
    %v2323 = vpop.f32.mrf.mxu0
    %v2324 = vadd.f32 0.0, %v2323
    %v2325 = vpop.f32.mrf.mxu0
    %2326 = vdwg.mxu0
    %v2327 = vadd.f32 %v2230, %v2324
    %v2328 = vrot.slane %v1934, 2
    %2330 = vmatpush.bf16.msra.mxu0 %v2305
    %2331 = vmatpush.bf16.msra.mxu0 %v2304
    %2332 = vmatpush.bf16.msra.mxu0 %v2303
    %2333 = vmatpush.bf16.msra.mxu0 %v2302
    %2334 = vmatpush.bf16.msra.mxu0 %v2301
    %2335 = vmatpush.bf16.msra.mxu0 %v2300
    %2336 = vmatpush.bf16.msra.mxu0 %v2299
    %2337 = vmatpush.bf16.msra.mxu0 %v2298
    %2338 = vmatmul.bf16.gmra.mxu0 %v2328
    %v2339 = vpop.f32.mrf.mxu0
    %v2340 = vadd.f32 0.0, %v2339
    %v2341 = vpop.f32.mrf.mxu0
    %2342 = vdwg.mxu0
    %v2343 = vadd.f32 %v2246, %v2340
    %s2344 = scalar_lea.vmem %s3, 832
    %v2345 = vld [vmem:[%s2344] sm:$0xf]
    %v2346 = vld [vmem:[%s2344 + $0x4] sm:$0xf]
    %v2347 = vld [vmem:[%s2344 + $0x8] sm:$0xf]
    %v2348 = vld [vmem:[%s2344 + $0xc] sm:$0xf]
    %v2349 = vld [vmem:[%s2344 + $0x10] sm:$0xf]
    %v2350 = vld [vmem:[%s2344 + $0x14] sm:$0xf]
    %v2351 = vld [vmem:[%s2344 + $0x18] sm:$0xf]
    %v2352 = vld [vmem:[%s2344 + $0x1c] sm:$0xf]
    %v2353 = vld [vmem:[%s2344 + $0x20] sm:$0xf]
    %v2354 = vld [vmem:[%s2344 + $0x24] sm:$0xf]
    %v2355 = vld [vmem:[%s2344 + $0x28] sm:$0xf]
    %v2356 = vld [vmem:[%s2344 + $0x2c] sm:$0xf]
    %v2357 = vld [vmem:[%s2344 + $0x30] sm:$0xf]
    %v2358 = vld [vmem:[%s2344 + $0x34] sm:$0xf]
    %v2359 = vld [vmem:[%s2344 + $0x38] sm:$0xf]
    %v2360 = vld [vmem:[%s2344 + $0x3c] sm:$0xf]
    %v2361 = vrot.slane %v1970, 2
    %v2379 = vunpack.c.l.b16 %v2345
    %v2380 = vunpack.c.l.b16 %v2346
    %v2381 = vunpack.c.l.b16 %v2347
    %v2382 = vunpack.c.l.b16 %v2348
    %v2383 = vunpack.c.l.b16 %v2349
    %v2384 = vunpack.c.l.b16 %v2350
    %v2385 = vunpack.c.l.b16 %v2351
    %v2386 = vunpack.c.l.b16 %v2352
    %v2387 = vunpack.c.l.b16 %v2353
    %v2388 = vunpack.c.l.b16 %v2354
    %v2389 = vunpack.c.l.b16 %v2355
    %v2390 = vunpack.c.l.b16 %v2356
    %v2391 = vunpack.c.l.b16 %v2357
    %v2392 = vunpack.c.l.b16 %v2358
    %v2393 = vunpack.c.l.b16 %v2359
    %v2394 = vunpack.c.l.b16 %v2360
    %v2395 = vpack.c.b16 %v2380, %v2379
    %v2396 = vpack.c.b16 %v2382, %v2381
    %v2397 = vpack.c.b16 %v2384, %v2383
    %v2398 = vpack.c.b16 %v2386, %v2385
    %v2399 = vpack.c.b16 %v2388, %v2387
    %v2400 = vpack.c.b16 %v2390, %v2389
    %v2401 = vpack.c.b16 %v2392, %v2391
    %v2402 = vpack.c.b16 %v2394, %v2393
    %2411 = vmatpush.bf16.msra.mxu0 %v2402
    %2412 = vmatpush.bf16.msra.mxu0 %v2401
    %2413 = vmatpush.bf16.msra.mxu0 %v2400
    %2414 = vmatpush.bf16.msra.mxu0 %v2399
    %2415 = vmatpush.bf16.msra.mxu0 %v2398
    %2416 = vmatpush.bf16.msra.mxu0 %v2397
    %2417 = vmatpush.bf16.msra.mxu0 %v2396
    %2418 = vmatpush.bf16.msra.mxu0 %v2395
    %2419 = vmatmul.bf16.gmra.mxu0 %v2361
    %v2420 = vpop.f32.mrf.mxu0
    %v2421 = vadd.f32 0.0, %v2420
    %v2422 = vpop.f32.mrf.mxu0
    %2423 = vdwg.mxu0
    %v2424 = vadd.f32 %v2327, %v2421
    %v2425 = vrot.slane %v2036, 2
    %2427 = vmatpush.bf16.msra.mxu0 %v2402
    %2428 = vmatpush.bf16.msra.mxu0 %v2401
    %2429 = vmatpush.bf16.msra.mxu0 %v2400
    %2430 = vmatpush.bf16.msra.mxu0 %v2399
    %2431 = vmatpush.bf16.msra.mxu0 %v2398
    %2432 = vmatpush.bf16.msra.mxu0 %v2397
    %2433 = vmatpush.bf16.msra.mxu0 %v2396
    %2434 = vmatpush.bf16.msra.mxu0 %v2395
    %2435 = vmatmul.bf16.gmra.mxu0 %v2425
    %v2436 = vpop.f32.mrf.mxu0
    %v2437 = vadd.f32 0.0, %v2436
    %v2438 = vpop.f32.mrf.mxu0
    %2439 = vdwg.mxu0
    %v2440 = vadd.f32 %v2343, %v2437
    %s2441 = scalar_lea.vmem %s3, 896
    %v2442 = vld [vmem:[%s2441] sm:$0xf]
    %v2443 = vld [vmem:[%s2441 + $0x4] sm:$0xf]
    %v2444 = vld [vmem:[%s2441 + $0x8] sm:$0xf]
    %v2445 = vld [vmem:[%s2441 + $0xc] sm:$0xf]
    %v2446 = vld [vmem:[%s2441 + $0x10] sm:$0xf]
    %v2447 = vld [vmem:[%s2441 + $0x14] sm:$0xf]
    %v2448 = vld [vmem:[%s2441 + $0x18] sm:$0xf]
    %v2449 = vld [vmem:[%s2441 + $0x1c] sm:$0xf]
    %v2450 = vld [vmem:[%s2441 + $0x20] sm:$0xf]
    %v2451 = vld [vmem:[%s2441 + $0x24] sm:$0xf]
    %v2452 = vld [vmem:[%s2441 + $0x28] sm:$0xf]
    %v2453 = vld [vmem:[%s2441 + $0x2c] sm:$0xf]
    %v2454 = vld [vmem:[%s2441 + $0x30] sm:$0xf]
    %v2455 = vld [vmem:[%s2441 + $0x34] sm:$0xf]
    %v2456 = vld [vmem:[%s2441 + $0x38] sm:$0xf]
    %v2457 = vld [vmem:[%s2441 + $0x3c] sm:$0xf]
    %v2458 = vrot.slane %v1968, 3
    %v2476 = vunpack.c.l.b16 %v2442
    %v2477 = vunpack.c.l.b16 %v2443
    %v2478 = vunpack.c.l.b16 %v2444
    %v2479 = vunpack.c.l.b16 %v2445
    %v2480 = vunpack.c.l.b16 %v2446
    %v2481 = vunpack.c.l.b16 %v2447
    %v2482 = vunpack.c.l.b16 %v2448
    %v2483 = vunpack.c.l.b16 %v2449
    %v2484 = vunpack.c.l.b16 %v2450
    %v2485 = vunpack.c.l.b16 %v2451
    %v2486 = vunpack.c.l.b16 %v2452
    %v2487 = vunpack.c.l.b16 %v2453
    %v2488 = vunpack.c.l.b16 %v2454
    %v2489 = vunpack.c.l.b16 %v2455
    %v2490 = vunpack.c.l.b16 %v2456
    %v2491 = vunpack.c.l.b16 %v2457
    %v2492 = vpack.c.b16 %v2477, %v2476
    %v2493 = vpack.c.b16 %v2479, %v2478
    %v2494 = vpack.c.b16 %v2481, %v2480
    %v2495 = vpack.c.b16 %v2483, %v2482
    %v2496 = vpack.c.b16 %v2485, %v2484
    %v2497 = vpack.c.b16 %v2487, %v2486
    %v2498 = vpack.c.b16 %v2489, %v2488
    %v2499 = vpack.c.b16 %v2491, %v2490
    %2508 = vmatpush.bf16.msra.mxu0 %v2499
    %2509 = vmatpush.bf16.msra.mxu0 %v2498
    %2510 = vmatpush.bf16.msra.mxu0 %v2497
    %2511 = vmatpush.bf16.msra.mxu0 %v2496
    %2512 = vmatpush.bf16.msra.mxu0 %v2495
    %2513 = vmatpush.bf16.msra.mxu0 %v2494
    %2514 = vmatpush.bf16.msra.mxu0 %v2493
    %2515 = vmatpush.bf16.msra.mxu0 %v2492
    %2516 = vmatmul.bf16.gmra.mxu0 %v2458
    %v2517 = vpop.f32.mrf.mxu0
    %v2518 = vadd.f32 0.0, %v2517
    %v2519 = vpop.f32.mrf.mxu0
    %2520 = vdwg.mxu0
    %v2521 = vadd.f32 %v2424, %v2518
    %v2522 = vrot.slane %v1934, 3
    %2524 = vmatpush.bf16.msra.mxu0 %v2499
    %2525 = vmatpush.bf16.msra.mxu0 %v2498
    %2526 = vmatpush.bf16.msra.mxu0 %v2497
    %2527 = vmatpush.bf16.msra.mxu0 %v2496
    %2528 = vmatpush.bf16.msra.mxu0 %v2495
    %2529 = vmatpush.bf16.msra.mxu0 %v2494
    %2530 = vmatpush.bf16.msra.mxu0 %v2493
    %2531 = vmatpush.bf16.msra.mxu0 %v2492
    %2532 = vmatmul.bf16.gmra.mxu0 %v2522
    %v2533 = vpop.f32.mrf.mxu0
    %v2534 = vadd.f32 0.0, %v2533
    %v2535 = vpop.f32.mrf.mxu0
    %2536 = vdwg.mxu0
    %v2537 = vadd.f32 %v2440, %v2534
    %s2538 = scalar_lea.vmem %s3, 960
    %v2539 = vld [vmem:[%s2538] sm:$0xf]
    %v2540 = vld [vmem:[%s2538 + $0x4] sm:$0xf]
    %v2541 = vld [vmem:[%s2538 + $0x8] sm:$0xf]
    %v2542 = vld [vmem:[%s2538 + $0xc] sm:$0xf]
    %v2543 = vld [vmem:[%s2538 + $0x10] sm:$0xf]
    %v2544 = vld [vmem:[%s2538 + $0x14] sm:$0xf]
    %v2545 = vld [vmem:[%s2538 + $0x18] sm:$0xf]
    %v2546 = vld [vmem:[%s2538 + $0x1c] sm:$0xf]
    %v2547 = vld [vmem:[%s2538 + $0x20] sm:$0xf]
    %v2548 = vld [vmem:[%s2538 + $0x24] sm:$0xf]
    %v2549 = vld [vmem:[%s2538 + $0x28] sm:$0xf]
    %v2550 = vld [vmem:[%s2538 + $0x2c] sm:$0xf]
    %v2551 = vld [vmem:[%s2538 + $0x30] sm:$0xf]
    %v2552 = vld [vmem:[%s2538 + $0x34] sm:$0xf]
    %v2553 = vld [vmem:[%s2538 + $0x38] sm:$0xf]
    %v2554 = vld [vmem:[%s2538 + $0x3c] sm:$0xf]
    %v2555 = vrot.slane %v1970, 3
    %v2573 = vunpack.c.l.b16 %v2539
    %v2574 = vunpack.c.l.b16 %v2540
    %v2575 = vunpack.c.l.b16 %v2541
    %v2576 = vunpack.c.l.b16 %v2542
    %v2577 = vunpack.c.l.b16 %v2543
    %v2578 = vunpack.c.l.b16 %v2544
    %v2579 = vunpack.c.l.b16 %v2545
    %v2580 = vunpack.c.l.b16 %v2546
    %v2581 = vunpack.c.l.b16 %v2547
    %v2582 = vunpack.c.l.b16 %v2548
    %v2583 = vunpack.c.l.b16 %v2549
    %v2584 = vunpack.c.l.b16 %v2550
    %v2585 = vunpack.c.l.b16 %v2551
    %v2586 = vunpack.c.l.b16 %v2552
    %v2587 = vunpack.c.l.b16 %v2553
    %v2588 = vunpack.c.l.b16 %v2554
    %v2589 = vpack.c.b16 %v2574, %v2573
    %v2590 = vpack.c.b16 %v2576, %v2575
    %v2591 = vpack.c.b16 %v2578, %v2577
    %v2592 = vpack.c.b16 %v2580, %v2579
    %v2593 = vpack.c.b16 %v2582, %v2581
    %v2594 = vpack.c.b16 %v2584, %v2583
    %v2595 = vpack.c.b16 %v2586, %v2585
    %v2596 = vpack.c.b16 %v2588, %v2587
    %2605 = vmatpush.bf16.msra.mxu0 %v2596
    %2606 = vmatpush.bf16.msra.mxu0 %v2595
    %2607 = vmatpush.bf16.msra.mxu0 %v2594
    %2608 = vmatpush.bf16.msra.mxu0 %v2593
    %2609 = vmatpush.bf16.msra.mxu0 %v2592
    %2610 = vmatpush.bf16.msra.mxu0 %v2591
    %2611 = vmatpush.bf16.msra.mxu0 %v2590
    %2612 = vmatpush.bf16.msra.mxu0 %v2589
    %2613 = vmatmul.bf16.gmra.mxu0 %v2555
    %v2614 = vpop.f32.mrf.mxu0
    %v2615 = vadd.f32 0.0, %v2614
    %v2616 = vpop.f32.mrf.mxu0
    %2617 = vdwg.mxu0
    %v2618 = vadd.f32 %v2521, %v2615
    %v2619 = vrot.slane %v2036, 3
    %2621 = vmatpush.bf16.msra.mxu0 %v2596
    %2622 = vmatpush.bf16.msra.mxu0 %v2595
    %2623 = vmatpush.bf16.msra.mxu0 %v2594
    %2624 = vmatpush.bf16.msra.mxu0 %v2593
    %2625 = vmatpush.bf16.msra.mxu0 %v2592
    %2626 = vmatpush.bf16.msra.mxu0 %v2591
    %2627 = vmatpush.bf16.msra.mxu0 %v2590
    %2628 = vmatpush.bf16.msra.mxu0 %v2589
    %2629 = vmatmul.bf16.gmra.mxu0 %v2619
    %v2630 = vpop.f32.mrf.mxu0
    %v2631 = vadd.f32 0.0, %v2630
    %v2632 = vpop.f32.mrf.mxu0
    %2633 = vdwg.mxu0
    %v2634 = vadd.f32 %v2537, %v2631
    %v2635 = vmax.f32 %v2618, 0.0
    %v2636 = vpack.c.bf16 %v2635, %v2635
    %v2637 = vld [vmem:[%s5] sm:$0xf]
    %v2638 = vld [vmem:[%s5 + $0x4] sm:$0xf]
    %v2639 = vld [vmem:[%s5 + $0x8] sm:$0xf]
    %v2640 = vld [vmem:[%s5 + $0xc] sm:$0xf]
    %v2641 = vld [vmem:[%s5 + $0x10] sm:$0xf]
    %v2642 = vld [vmem:[%s5 + $0x14] sm:$0xf]
    %v2643 = vld [vmem:[%s5 + $0x18] sm:$0xf]
    %v2644 = vld [vmem:[%s5 + $0x1c] sm:$0xf]
    %v2645 = vld [vmem:[%s5 + $0x20] sm:$0xf]
    %v2646 = vld [vmem:[%s5 + $0x24] sm:$0xf]
    %v2647 = vld [vmem:[%s5 + $0x28] sm:$0xf]
    %v2648 = vld [vmem:[%s5 + $0x2c] sm:$0xf]
    %v2649 = vld [vmem:[%s5 + $0x30] sm:$0xf]
    %v2650 = vld [vmem:[%s5 + $0x34] sm:$0xf]
    %v2651 = vld [vmem:[%s5 + $0x38] sm:$0xf]
    %v2652 = vld [vmem:[%s5 + $0x3c] sm:$0xf]
    %v2653 = vld [vmem:[%s6] sm:$0x1]
    %v2670 = vunpack.c.l.b16 %v2637
    %v2671 = vunpack.c.l.b16 %v2638
    %v2672 = vunpack.c.l.b16 %v2639
    %v2673 = vunpack.c.l.b16 %v2640
    %v2674 = vunpack.c.l.b16 %v2641
    %v2675 = vunpack.c.l.b16 %v2642
    %v2676 = vunpack.c.l.b16 %v2643
    %v2677 = vunpack.c.l.b16 %v2644
    %v2678 = vunpack.c.l.b16 %v2645
    %v2679 = vunpack.c.l.b16 %v2646
    %v2680 = vunpack.c.l.b16 %v2647
    %v2681 = vunpack.c.l.b16 %v2648
    %v2682 = vunpack.c.l.b16 %v2649
    %v2683 = vunpack.c.l.b16 %v2650
    %v2684 = vunpack.c.l.b16 %v2651
    %v2685 = vunpack.c.l.b16 %v2652
    %v2686 = vpack.c.b16 %v2671, %v2670
    %v2687 = vpack.c.b16 %v2673, %v2672
    %v2688 = vpack.c.b16 %v2675, %v2674
    %v2689 = vpack.c.b16 %v2677, %v2676
    %v2690 = vpack.c.b16 %v2679, %v2678
    %v2691 = vpack.c.b16 %v2681, %v2680
    %v2692 = vpack.c.b16 %v2683, %v2682
    %v2693 = vpack.c.b16 %v2685, %v2684
    %2702 = vmatpush.bf16.msra.mxu0 %v2693
    %2703 = vmatpush.bf16.msra.mxu0 %v2692
    %2704 = vmatpush.bf16.msra.mxu0 %v2691
    %2705 = vmatpush.bf16.msra.mxu0 %v2690
    %2706 = vmatpush.bf16.msra.mxu0 %v2689
    %2707 = vmatpush.bf16.msra.mxu0 %v2688
    %2708 = vmatpush.bf16.msra.mxu0 %v2687
    %2709 = vmatpush.bf16.msra.mxu0 %v2686
    %2710 = vmatmul.bf16.gmra.mxu0 %v2636
    %v2711 = vpop.f32.mrf.mxu0
    %v2712 = vadd.f32 %v2653, %v2711
    %v2713 = vpop.f32.mrf.mxu0
    %2714 = vdwg.mxu0
    %v2715 = vmax.f32 %v2712, 0.0
    %v2716 = vpack.c.bf16 %v2715, %v2715
    %v2717 = vld [vmem:[%s7] sm:$0xf]
    %v2718 = vld [vmem:[%s7 + $0x4] sm:$0xf]
    %v2719 = vld [vmem:[%s7 + $0x8] sm:$0xf]
    %v2720 = vld [vmem:[%s7 + $0xc] sm:$0xf]
    %v2721 = vld [vmem:[%s7 + $0x10] sm:$0xf]
    %v2722 = vld [vmem:[%s7 + $0x14] sm:$0xf]
    %v2723 = vld [vmem:[%s7 + $0x18] sm:$0xf]
    %v2724 = vld [vmem:[%s7 + $0x1c] sm:$0xf]
    %v2725 = vld [vmem:[%s7 + $0x20] sm:$0xf]
    %v2726 = vld [vmem:[%s7 + $0x24] sm:$0xf]
    %v2727 = vld [vmem:[%s7 + $0x28] sm:$0xf]
    %v2728 = vld [vmem:[%s7 + $0x2c] sm:$0xf]
    %v2729 = vld [vmem:[%s7 + $0x30] sm:$0xf]
    %v2730 = vld [vmem:[%s7 + $0x34] sm:$0xf]
    %v2731 = vld [vmem:[%s7 + $0x38] sm:$0xf]
    %v2732 = vld [vmem:[%s7 + $0x3c] sm:$0xf]
    %v2733 = vld [vmem:[%s8] sm:$0x1]
    %v2750 = vunpack.c.l.b16 %v2717
    %v2751 = vunpack.c.l.b16 %v2718
    %v2752 = vunpack.c.l.b16 %v2719
    %v2753 = vunpack.c.l.b16 %v2720
    %v2754 = vunpack.c.l.b16 %v2721
    %v2755 = vunpack.c.l.b16 %v2722
    %v2756 = vunpack.c.l.b16 %v2723
    %v2757 = vunpack.c.l.b16 %v2724
    %v2758 = vunpack.c.l.b16 %v2725
    %v2759 = vunpack.c.l.b16 %v2726
    %v2760 = vunpack.c.l.b16 %v2727
    %v2761 = vunpack.c.l.b16 %v2728
    %v2762 = vunpack.c.l.b16 %v2729
    %v2763 = vunpack.c.l.b16 %v2730
    %v2764 = vunpack.c.l.b16 %v2731
    %v2765 = vunpack.c.l.b16 %v2732
    %v2766 = vpack.c.b16 %v2751, %v2750
    %v2767 = vpack.c.b16 %v2753, %v2752
    %v2768 = vpack.c.b16 %v2755, %v2754
    %v2769 = vpack.c.b16 %v2757, %v2756
    %v2770 = vpack.c.b16 %v2759, %v2758
    %v2771 = vpack.c.b16 %v2761, %v2760
    %v2772 = vpack.c.b16 %v2763, %v2762
    %v2773 = vpack.c.b16 %v2765, %v2764
    %2782 = vmatpush.bf16.msra.mxu0 %v2773
    %2783 = vmatpush.bf16.msra.mxu0 %v2772
    %2784 = vmatpush.bf16.msra.mxu0 %v2771
    %2785 = vmatpush.bf16.msra.mxu0 %v2770
    %2786 = vmatpush.bf16.msra.mxu0 %v2769
    %2787 = vmatpush.bf16.msra.mxu0 %v2768
    %2788 = vmatpush.bf16.msra.mxu0 %v2767
    %2789 = vmatpush.bf16.msra.mxu0 %v2766
    %2790 = vmatmul.bf16.gmra.mxu0 %v2716
    %v2791 = vpop.f32.mrf.mxu0
    %v2792 = vadd.f32 %v2733, %v2791
    %v2793 = vpop.f32.mrf.mxu0
    %2794 = vdwg.mxu0
    %v2795 = vmax.f32 %v2634, 0.0
    %v2796 = vpack.c.bf16 %v2795, %v2795
    %2797 = vmatpush.bf16.msra.mxu0 %v2693
    %2798 = vmatpush.bf16.msra.mxu0 %v2692
    %2799 = vmatpush.bf16.msra.mxu0 %v2691
    %2800 = vmatpush.bf16.msra.mxu0 %v2690
    %2801 = vmatpush.bf16.msra.mxu0 %v2689
    %2802 = vmatpush.bf16.msra.mxu0 %v2688
    %2803 = vmatpush.bf16.msra.mxu0 %v2687
    %2804 = vmatpush.bf16.msra.mxu0 %v2686
    %2805 = vmatmul.bf16.gmra.mxu0 %v2796
    %v2806 = vpop.f32.mrf.mxu0
    %v2807 = vadd.f32 %v2653, %v2806
    %v2808 = vpop.f32.mrf.mxu0
    %2809 = vdwg.mxu0
    %v2810 = vmax.f32 %v2807, 0.0
    %v2811 = vpack.c.bf16 %v2810, %v2810
    %2812 = vmatpush.bf16.msra.mxu0 %v2773
    %2813 = vmatpush.bf16.msra.mxu0 %v2772
    %2814 = vmatpush.bf16.msra.mxu0 %v2771
    %2815 = vmatpush.bf16.msra.mxu0 %v2770
    %2816 = vmatpush.bf16.msra.mxu0 %v2769
    %2817 = vmatpush.bf16.msra.mxu0 %v2768
    %2818 = vmatpush.bf16.msra.mxu0 %v2767
    %2819 = vmatpush.bf16.msra.mxu0 %v2766
    %2820 = vmatmul.bf16.gmra.mxu0 %v2811
    %v2821 = vpop.f32.mrf.mxu0
    %v2822 = vadd.f32 %v2733, %v2821
    %v2823 = vpop.f32.mrf.mxu0
    %2824 = vdwg.mxu0
    %v2826 = vrot.slane %v2822, 7
    %vm2828 = vcmask 1040384
    %v2829 = vsel %vm2828, %v2792, %v2826
    %2830 = vst [vmem:[#allocation2] sm:$0x3] %v2829
    // Predicated region
    $region38: #{conv2dnet_forward.3} parent=1 // pred_check
      _
    $region39: #{conv2dnet_forward.3} parent=1 // pred_check_branch
      %2832 = sbr.rel (0) target = $region41
    $region40: #{conv2dnet_forward.3} parent=1 // pred_region
      %2834 = vsyncadd [#allocation3], 0
      %s2836 = sshll.u32 [#allocation2], 4
      %s2837 = int_to_ptr.vmem [resolvable:$true] %s2836
      %s2838 = sshll.u32 %s9, 4
      %s2839 = int_to_ptr.hbm [resolvable:$true] %s2838
      %2841 = dma.vmem_to_hbm [thread:$0]  %s2837, 32, %s2839, [#allocation3]
    $region41: #{conv2dnet_forward.3} parent=1 // pred_fallthru
      _
    // Predicated region
    $region42: #{conv2dnet_forward.3} parent=1 // pred_check
      _
    $region43: #{conv2dnet_forward.3} parent=1 // pred_check_branch
      %2843 = sbr.rel (0) target = $region45
    $region44: #{conv2dnet_forward.3} parent=1 // pred_region
      %2845 = dma.done [#allocation3], 32
    $region45: #{conv2dnet_forward.3} parent=1 // pred_fallthru
      _
    %2846 = vsyncpa [#allocation3], 1

</llo_original>
